<compile_context>
chip_gen: v6e
topology: v6e:2x2x1
jax: 0.10.0
libtpu: 0.0.40
codegen_flags: <defaults>
</compile_context>

<pallas_src>
import functools

import jax
import jax.numpy as jnp
from jax.experimental import pallas as pl
from jax.experimental.pallas import tpu as pltpu

LN_EPS = 1e-5                      # PyTorch nn.LayerNorm default
_VMEM_LIMIT = 48 * 1024 * 1024     # > v5e/v6e scoped defaults, < v7x 64 MiB physical


def _layernorm(x, g, b):
    mu = jnp.mean(x, axis=-1, keepdims=True)
    var = jnp.mean((x - mu) ** 2, axis=-1, keepdims=True)
    return (x - mu) * jax.lax.rsqrt(var + LN_EPS) * g + b


# ----------------------------------------------------------------------------
# Pallas kernels
# ----------------------------------------------------------------------------
def qkv_kernel(x_ref, g_ref, b_ref, w_ref, q_ref, k_ref, v_ref):
    """LN1(x) @ Wqkv for one (row_tile, C) slab; head split done in-kernel so the
    outputs are already head-major (H, tq, hs) bf16 (no wrapper split/transpose)."""
    H, _, hs = q_ref.shape
    C = x_ref.shape[-1]
    xn = _layernorm(x_ref[...].astype(jnp.float32), g_ref[...], b_ref[...])
    qkv = jnp.dot(xn.astype(jnp.bfloat16), w_ref[...],
                  preferred_element_type=jnp.float32).astype(jnp.bfloat16)  # (tq, 3C)
    for h in range(H):                       # static trace-time loop, lane slices
        q_ref[h] = qkv[:, h * hs:(h + 1) * hs]
        k_ref[h] = qkv[:, C + h * hs:C + (h + 1) * hs]
        v_ref[h] = qkv[:, 2 * C + h * hs:2 * C + (h + 1) * hs]


def attn_mlp_kernel(x_ref, q_ref, k_ref, v_ref, wo_ref, bo_ref,
                    ln2g_ref, ln2b_ref, w1_ref, b1_ref, w2_ref, b2_ref, o_ref):
    """Causal MHA + out-proj + residual + LN2 + MLP + residual for one q tile.

    Grid is (B, T // q_tile).  q tile is (H, tq, hs); K/V are the full (H, T, hs)
    sequence (constant block index across the q-tile axis -> resident per batch).
    Head merge is a lane concat + single (tq,C)@(C,C) matmul so the head reduction
    lives in the MXU accumulator.
    """
    t = pl.program_id(1)
    H, tq, hs = q_ref.shape
    T = k_ref.shape[1]
    scale = hs ** -0.5

    x = x_ref[...].astype(jnp.float32)                     # (tq, C) residual, f32

    # causal mask with q-tile row offset (shared by all heads)
    q_pos = t * tq + jax.lax.broadcasted_iota(jnp.int32, (tq, T), 0)
    k_pos = jax.lax.broadcasted_iota(jnp.int32, (tq, T), 1)
    causal = k_pos <= q_pos

    # TODO(synk): for long sequences, replace resident K/V with flash-style KV
    # tiling (online softmax + causal tile skipping); block_size=256 here is tiny.
    o_cols = []
    for h in range(H):                                     # static trace-time loop
        qh = q_ref[h]                                      # (tq, hs) bf16
        kh = k_ref[h]                                      # (T,  hs) bf16
        vh = v_ref[h]                                      # (T,  hs) bf16
        # scores: contraction on hs, "NT" form (no explicit transpose of kh)
        s = jax.lax.dot_general(qh, kh, (((1,), (1,)), ((), ())),
                                preferred_element_type=jnp.float32) * scale
        s = jnp.where(causal, s, -jnp.inf)                 # diagonal never masked
        s = s - jnp.max(s, axis=-1, keepdims=True)
        p = jnp.exp(s)
        p = p * pl.reciprocal(jnp.sum(p, axis=-1, keepdims=True), approx=True)
        o_cols.append(jnp.dot(p.astype(jnp.bfloat16), vh,
                              preferred_element_type=jnp.float32))   # (tq, hs) f32
    o = jnp.concatenate(o_cols, axis=-1)                   # (tq, C) head merge (lanes)

    # output projection: single full-width MXU contraction (head-sum in accumulator)
    y = jnp.dot(o.astype(jnp.bfloat16), wo_ref[...],
                preferred_element_type=jnp.float32)
    x = x + y + bo_ref[...]                                # residual (f32)

    # feed-forward on ln2(x)
    xn = _layernorm(x, ln2g_ref[...], ln2b_ref[...])
    h1 = jnp.dot(xn.astype(jnp.bfloat16), w1_ref[...],
                 preferred_element_type=jnp.float32) + b1_ref[...]
    h1 = jnp.maximum(h1, 0.0)                              # ReLU
    ff = jnp.dot(h1.astype(jnp.bfloat16), w2_ref[...],
                 preferred_element_type=jnp.float32) + b2_ref[...]
    o_ref[...] = (x + ff).astype(o_ref.dtype)              # residual -> bf16 stream


def lm_head_kernel(x_ref, g_ref, b_ref, w_ref, bias_ref, o_ref, xn_ref):
    """Final LayerNorm (computed once per row tile, reused across the vocab-tile
    axis via VMEM scratch) + vocab-tiled lm_head projection."""
    @pl.when(pl.program_id(2) == 0)
    def _():
        xn = _layernorm(x_ref[...].astype(jnp.float32), g_ref[...], b_ref[...])
        xn_ref[...] = xn.astype(jnp.bfloat16)
    o_ref[...] = jnp.dot(xn_ref[...], w_ref[...],
                         preferred_element_type=jnp.float32) + bias_ref[...]


# ----------------------------------------------------------------------------
# Wrappers (pallas_call plumbing)
# ----------------------------------------------------------------------------
def _const2(arr):
    """Full-array BlockSpec, constant over a rank-2 grid."""
    nd = arr.ndim
    return pl.BlockSpec(arr.shape, lambda b, t, _nd=nd: (0,) * _nd)


def qkv_proj_forward(x, ln1g, ln1b, wqkv, *, n_head, row_tile):
    B, T, C = x.shape
    hs = C // n_head
    hv_shape = jax.ShapeDtypeStruct((B, n_head, T, hs), jnp.bfloat16)
    hv_spec = pl.BlockSpec((pl.Squeezed(), n_head, row_tile, hs),
                           lambda b, r: (b, 0, r, 0))
    # TODO(synk): on v7x, single-buffer (pl.Buffered(1)) the constant weight specs
    # to cut VMEM; left at defaults here for lowering robustness.
    return pl.pallas_call(
        qkv_kernel,
        out_shape=(hv_shape, hv_shape, hv_shape),
        grid=(B, T // row_tile),
        in_specs=[
            pl.BlockSpec((pl.Squeezed(), row_tile, C), lambda b, r: (b, r, 0)),
            _const2(ln1g), _const2(ln1b), _const2(wqkv),
        ],
        out_specs=(hv_spec, hv_spec, hv_spec),
        compiler_params=pltpu.CompilerParams(
            dimension_semantics=("parallel", "parallel"),
            vmem_limit_bytes=_VMEM_LIMIT),
    )(x, ln1g, ln1b, wqkv)


def attn_mlp_forward(x, q, k, v, blk, *, q_tile):
    B, T, C = x.shape
    H, hs = q.shape[1], q.shape[3]
    weights = [blk["wo"], blk["bo"], blk["ln2g"], blk["ln2b"],
               blk["w1"], blk["b1"], blk["w2"], blk["b2"]]
    in_specs = [
        pl.BlockSpec((pl.Squeezed(), q_tile, C), lambda b, t: (b, t, 0)),
        pl.BlockSpec((pl.Squeezed(), H, q_tile, hs), lambda b, t: (b, 0, t, 0)),
        pl.BlockSpec((pl.Squeezed(), H, T, hs), lambda b, t: (b, 0, 0, 0)),  # resident
        pl.BlockSpec((pl.Squeezed(), H, T, hs), lambda b, t: (b, 0, 0, 0)),  # resident
    ] + [_const2(w) for w in weights]
    return pl.pallas_call(
        attn_mlp_kernel,
        out_shape=jax.ShapeDtypeStruct((B, T, C), jnp.bfloat16),   # bf16 residual stream
        grid=(B, T // q_tile),
        in_specs=in_specs,
        out_specs=pl.BlockSpec((pl.Squeezed(), q_tile, C), lambda b, t: (b, t, 0)),
        compiler_params=pltpu.CompilerParams(
            dimension_semantics=("parallel", "parallel"),
            vmem_limit_bytes=_VMEM_LIMIT),
    )(x, q, k, v, *weights)


def lm_head_forward(x, lnfg, lnfb, wlm, blm, *, row_tile, vocab_tile):
    B, T, C = x.shape
    Vp = wlm.shape[1]
    vocab_tile = min(vocab_tile, Vp)
    return pl.pallas_call(
        lm_head_kernel,
        out_shape=jax.ShapeDtypeStruct((B, T, Vp), jnp.float32),
        grid=(B, T // row_tile, Vp // vocab_tile),     # vocab axis last ("arbitrary")
        in_specs=[
            pl.BlockSpec((pl.Squeezed(), row_tile, C), lambda b, r, j: (b, r, 0)),
            pl.BlockSpec((1, C), lambda b, r, j: (0, 0)),
            pl.BlockSpec((1, C), lambda b, r, j: (0, 0)),
            pl.BlockSpec((C, vocab_tile), lambda b, r, j: (0, j)),
            pl.BlockSpec((1, vocab_tile), lambda b, r, j: (0, j)),
        ],
        out_specs=pl.BlockSpec((pl.Squeezed(), row_tile, vocab_tile),
                               lambda b, r, j: (b, r, j)),
        scratch_shapes=[pltpu.VMEM((row_tile, C), jnp.bfloat16)],
        compiler_params=pltpu.CompilerParams(
            dimension_semantics=("parallel", "parallel", "arbitrary"),
            vmem_limit_bytes=_VMEM_LIMIT),
    )(x, lnfg, lnfb, wlm, blm)


def gpt_forward(idx, params, *, n_head, vocab_size, row_tile=256, vocab_tile=512):
    """Equivalent of GPTLanguageModel.forward(idx, targets=None)."""
    B, T = idx.shape
    row_tile = min(row_tile, T)
    # token/position embedding gathers are plain-JAX glue; residual stream in bf16
    x = (params["tok_emb"][idx] + params["pos_emb"][:T][None, :, :]).astype(jnp.bfloat16)

    # TODO(synk): cross-layer fusion (activations resident in VMEM across layers with
    # weight prefetch) not implemented; layers run as sequential calls.
    # TODO(synk): on v7x with B == 1, put the row axis first in the grid so both TCs get work.
    for blk in params["blocks"]:
        q, k, v = qkv_proj_forward(x, blk["ln1g"], blk["ln1b"], blk["wqkv"],
                                   n_head=n_head, row_tile=row_tile)
        x = attn_mlp_forward(x, q, k, v, blk, q_tile=row_tile)

    logits = lm_head_forward(x, params["lnfg"], params["lnfb"],
                             params["wlm"], params["blm"],
                             row_tile=row_tile, vocab_tile=vocab_tile)
    # TODO(synk): consumers that tolerate padded-vocab logits (or a fused loss) should
    # skip this crop — it is a full extra pass over the largest tensor.
    return logits[:, :, :vocab_size], None   # targets=None -> loss=None
    # TODO(synk): cross-entropy loss branch (targets != None) is plain-JAX glue, omitted.


# ----------------------------------------------------------------------------
# Pure-JAX reference (mirrors the kernel math: bf16 matmuls / residual, f32 stats)
# ----------------------------------------------------------------------------
def gpt_reference(idx, params, *, n_head, vocab_size):
    B, T = idx.shape
    C = params["tok_emb"].shape[1]
    hs = C // n_head
    bf = jnp.bfloat16
    x = (params["tok_emb"][idx] + params["pos_emb"][:T][None, :, :]).astype(bf)
    mask = jnp.tril(jnp.ones((T, T), dtype=bool))
    for p in params["blocks"]:
        xn = _layernorm(x.astype(jnp.float32), p["ln1g"], p["ln1b"])
        qkv = jnp.einsum("btc,cf->btf", xn.astype(bf), p["wqkv"],
                         preferred_element_type=jnp.float32).astype(bf)
        q, k, v = jnp.split(qkv, 3, axis=-1)
        q = q.reshape(B, T, n_head, hs).transpose(0, 2, 1, 3)
        k = k.reshape(B, T, n_head, hs).transpose(0, 2, 1, 3)
        v = v.reshape(B, T, n_head, hs).transpose(0, 2, 1, 3)
        s = jnp.einsum("bhqd,bhkd->bhqk", q, k,
                       preferred_element_type=jnp.float32) * (hs ** -0.5)
        s = jnp.where(mask, s, -jnp.inf)
        pr = jax.nn.softmax(s, axis=-1)
        o = jnp.einsum("bhqk,bhkd->bhqd", pr.astype(bf), v,
                       preferred_element_type=jnp.float32)
        o = o.transpose(0, 2, 1, 3).reshape(B, T, C)
        y = jnp.einsum("btc,cd->btd", o.astype(bf), p["wo"],
                       preferred_element_type=jnp.float32)
        x32 = x.astype(jnp.float32) + y + p["bo"]
        xn2 = _layernorm(x32, p["ln2g"], p["ln2b"])
        h1 = jnp.einsum("btc,cf->btf", xn2.astype(bf), p["w1"],
                        preferred_element_type=jnp.float32) + p["b1"]
        h1 = jnp.maximum(h1, 0.0)
        ff = jnp.einsum("btf,fc->btc", h1.astype(bf), p["w2"],
                        preferred_element_type=jnp.float32) + p["b2"]
        x = (x32 + ff).astype(bf)
    xn = _layernorm(x.astype(jnp.float32), params["lnfg"], params["lnfb"])
    logits = jnp.einsum("btc,cv->btv", xn.astype(bf), params["wlm"],
                        preferred_element_type=jnp.float32) + params["blm"]
    return logits[:, :, :vocab_size], None


# ----------------------------------------------------------------------------
# Deterministic parameter init (mirrors _init_weights: N(0, 0.02) / zeros / LN)
# ----------------------------------------------------------------------------
def init_params(key, vocab_size, n_embd, n_head, n_layer, block_size):
    C = n_embd
    H4 = 4 * C
    Vp = ((vocab_size + 127) // 128) * 128        # lane-dense padded vocab
    keys = iter(jax.random.split(key, 2 + n_layer * 4 + 1))

    def w(k, fan_in, fan_out):                    # stored as (in, out)
        return 0.02 * jax.random.normal(k, (fan_in, fan_out), jnp.float32)

    params = {
        "tok_emb": w(next(keys), vocab_size, C),
        "pos_emb": w(next(keys), block_size, C),
        "blocks": [],
    }
    for _ in range(n_layer):
        params["blocks"].append({
            "ln1g": jnp.ones((1, C), jnp.float32),
            "ln1b": jnp.zeros((1, C), jnp.float32),
            "wqkv": w(next(keys), C, 3 * C).astype(jnp.bfloat16),   # fused [Wq|Wk|Wv]
            "wo": w(next(keys), C, C).astype(jnp.bfloat16),         # output projection
            "bo": jnp.zeros((1, C), jnp.float32),
            "ln2g": jnp.ones((1, C), jnp.float32),
            "ln2b": jnp.zeros((1, C), jnp.float32),
            "w1": w(next(keys), C, H4).astype(jnp.bfloat16),
            "b1": jnp.zeros((1, H4), jnp.float32),
            "w2": w(next(keys), H4, C).astype(jnp.bfloat16),
            "b2": jnp.zeros((1, C), jnp.float32),
        })
    params["lnfg"] = jnp.ones((1, C), jnp.float32)
    params["lnfb"] = jnp.zeros((1, C), jnp.float32)
    wlm = w(next(keys), C, vocab_size)
    params["wlm"] = jnp.pad(wlm, ((0, 0), (0, Vp - vocab_size))).astype(jnp.bfloat16)
    params["blm"] = jnp.zeros((1, Vp), jnp.float32)
    return params


if __name__ == "__main__":
    # Small, module-consistent config: C lane-aligned to 128, head_size = 64
    # (same head_size as the full 384/6 model), T a multiple of the row tile.
    vocab_size = 65
    n_embd = 128
    n_head = 2
    n_layer = 2
    block_size = 128
    B, T = 4, 128

    key = jax.random.PRNGKey(0)
    pkey, ikey = jax.random.split(key)
    params = init_params(pkey, vocab_size, n_embd, n_head, n_layer, block_size)
    idx = jax.random.randint(ikey, (B, T), 0, vocab_size, dtype=jnp.int32)

    fwd = jax.jit(functools.partial(gpt_forward, n_head=n_head, vocab_size=vocab_size))
    logits, loss = fwd(idx, params)
    logits = jax.block_until_ready(logits)
    assert logits.shape == (B, T, vocab_size) and loss is None

    ref = jax.jit(functools.partial(gpt_reference, n_head=n_head, vocab_size=vocab_size))
    ref_logits, _ = ref(idx, params)
    ref_logits = jax.block_until_ready(ref_logits)
    assert jnp.allclose(logits, ref_logits, atol=2e-2, rtol=2e-2), \
        float(jnp.max(jnp.abs(logits - ref_logits)))
    print("KERNEL_OK")
</pallas_src>

<mosaic_0001>
module attributes {stable_mosaic.version = 11 : i64} {
  func.func @qkv_kernel(%arg0: i32, %arg1: i32, %arg2: memref<1x128x128xbf16, #tpu.memory_space<vmem>>, %arg3: memref<1x128xf32, #tpu.memory_space<vmem>>, %arg4: memref<1x128xf32, #tpu.memory_space<vmem>>, %arg5: memref<128x384xbf16, #tpu.memory_space<vmem>>, %arg6: memref<1x2x128x64xbf16, #tpu.memory_space<vmem>>, %arg7: memref<1x2x128x64xbf16, #tpu.memory_space<vmem>>, %arg8: memref<1x2x128x64xbf16, #tpu.memory_space<vmem>>) attributes {dimension_semantics = [#tpu.dimension_semantics<parallel>, #tpu.dimension_semantics<parallel>], iteration_bounds = array<i64: 4, 1>, scalar_prefetch = 0 : i64, scratch_operands = 0 : i64, tpu.core_type = #tpu.core_type<tc>, window_params = [{transform_indices = @transform_0, window_bounds = array<i64: 1, 128, 128>}, {pipeline_mode = #tpu.pipeline_mode<synchronous>, transform_indices = @transform_1, window_bounds = array<i64: 1, 128>}, {pipeline_mode = #tpu.pipeline_mode<synchronous>, transform_indices = @transform_2, window_bounds = array<i64: 1, 128>}, {pipeline_mode = #tpu.pipeline_mode<synchronous>, transform_indices = @transform_3, window_bounds = array<i64: 128, 384>}, {transform_indices = @transform_4, window_bounds = array<i64: 1, 2, 128, 64>}, {transform_indices = @transform_5, window_bounds = array<i64: 1, 2, 128, 64>}, {transform_indices = @transform_6, window_bounds = array<i64: 1, 2, 128, 64>}]} {
    %c0 = arith.constant 0 : index
    %c0_0 = arith.constant 0 : index
    %c0_1 = arith.constant 0 : index
    %0 = vector.load %arg2[%c0, %c0_0, %c0_1] : memref<1x128x128xbf16, #tpu.memory_space<vmem>>, vector<1x128x128xbf16>
    %1 = vector.shape_cast %0 : vector<1x128x128xbf16> to vector<128x128xbf16>
    %2 = arith.extf %1 : vector<128x128xbf16> to vector<128x128xf32>
    %c0_2 = arith.constant 0 : index
    %c0_3 = arith.constant 0 : index
    %3 = vector.load %arg3[%c0_2, %c0_3] : memref<1x128xf32, #tpu.memory_space<vmem>>, vector<1x128xf32>
    %c0_4 = arith.constant 0 : index
    %c0_5 = arith.constant 0 : index
    %4 = vector.load %arg4[%c0_4, %c0_5] : memref<1x128xf32, #tpu.memory_space<vmem>>, vector<1x128xf32>
    %cst = arith.constant dense<0.000000e+00> : vector<128xf32>
    %5 = vector.multi_reduction <add>, %2, %cst [1] : vector<128x128xf32> to vector<128xf32>
    %6 = vector.shape_cast %5 : vector<128xf32> to vector<128x1xf32>
    %cst_6 = arith.constant 1.280000e+02 : f32
    %7 = vector.broadcast %cst_6 : f32 to vector<128x1xf32>
    %8 = arith.divf %6, %7 : vector<128x1xf32>
    %9 = vector.broadcast %8 : vector<128x1xf32> to vector<128x128xf32>
    %10 = arith.subf %2, %9 : vector<128x128xf32>
    %11 = arith.mulf %10, %10 : vector<128x128xf32>
    %cst_7 = arith.constant dense<0.000000e+00> : vector<128xf32>
    %12 = vector.multi_reduction <add>, %11, %cst_7 [1] : vector<128x128xf32> to vector<128xf32>
    %13 = vector.shape_cast %12 : vector<128xf32> to vector<128x1xf32>
    %cst_8 = arith.constant 1.280000e+02 : f32
    %14 = vector.broadcast %cst_8 : f32 to vector<128x1xf32>
    %15 = arith.divf %13, %14 : vector<128x1xf32>
    %16 = vector.broadcast %8 : vector<128x1xf32> to vector<128x128xf32>
    %17 = arith.subf %2, %16 : vector<128x128xf32>
    %cst_9 = arith.constant 9.99999974E-6 : f32
    %18 = vector.broadcast %cst_9 : f32 to vector<128x1xf32>
    %19 = arith.addf %15, %18 : vector<128x1xf32>
    %20 = math.rsqrt %19 : vector<128x1xf32>
    %21 = vector.broadcast %20 : vector<128x1xf32> to vector<128x128xf32>
    %22 = arith.mulf %17, %21 : vector<128x128xf32>
    %23 = vector.broadcast %3 : vector<1x128xf32> to vector<128x128xf32>
    %24 = arith.mulf %22, %23 : vector<128x128xf32>
    %25 = vector.broadcast %4 : vector<1x128xf32> to vector<128x128xf32>
    %26 = arith.addf %24, %25 : vector<128x128xf32>
    %27 = arith.truncf %26 : vector<128x128xf32> to vector<128x128xbf16>
    %c0_10 = arith.constant 0 : index
    %c0_11 = arith.constant 0 : index
    %28 = vector.load %arg5[%c0_10, %c0_11] : memref<128x384xbf16, #tpu.memory_space<vmem>>, vector<128x384xbf16>
    %cst_12 = arith.constant dense<0.000000e+00> : vector<128x384xf32>
    %29 = tpu.matmul %27, %28, %cst_12 {dimension_numbers = #tpu.dot_dimension_numbers<[1], [0], [0], [1], [0, 0, 1, 1], [], []>} : vector<128x128xbf16>, vector<128x384xbf16>, vector<128x384xf32> -> vector<128x384xf32>
    %30 = arith.truncf %29 : vector<128x384xf32> to vector<128x384xbf16>
    %31 = vector.extract_strided_slice %30 {offsets = [0, 0], sizes = [128, 64], strides = [1, 1]} : vector<128x384xbf16> to vector<128x64xbf16>
    %c0_13 = arith.constant 0 : index
    %c0_14 = arith.constant 0 : index
    %c0_15 = arith.constant 0 : index
    %c0_16 = arith.constant 0 : index
    %32 = vector.load %arg6[%c0_13, %c0_14, %c0_15, %c0_16] : memref<1x2x128x64xbf16, #tpu.memory_space<vmem>>, vector<1x1x128x64xbf16>
    %33 = vector.shape_cast %32 : vector<1x1x128x64xbf16> to vector<128x64xbf16>
    %34 = vector.shape_cast %31 : vector<128x64xbf16> to vector<1x1x128x64xbf16>
    tpu.vector_store %arg6[%c0_13, %c0_14, %c0_15, %c0_16], %34 {strides = array<i32>} : memref<1x2x128x64xbf16, #tpu.memory_space<vmem>>, vector<1x1x128x64xbf16>,
    %35 = vector.extract_strided_slice %30 {offsets = [0, 128], sizes = [128, 64], strides = [1, 1]} : vector<128x384xbf16> to vector<128x64xbf16>
    %c0_17 = arith.constant 0 : index
    %c0_18 = arith.constant 0 : index
    %c0_19 = arith.constant 0 : index
    %c0_20 = arith.constant 0 : index
    %36 = vector.load %arg7[%c0_17, %c0_18, %c0_19, %c0_20] : memref<1x2x128x64xbf16, #tpu.memory_space<vmem>>, vector<1x1x128x64xbf16>
    %37 = vector.shape_cast %36 : vector<1x1x128x64xbf16> to vector<128x64xbf16>
    %38 = vector.shape_cast %35 : vector<128x64xbf16> to vector<1x1x128x64xbf16>
    tpu.vector_store %arg7[%c0_17, %c0_18, %c0_19, %c0_20], %38 {strides = array<i32>} : memref<1x2x128x64xbf16, #tpu.memory_space<vmem>>, vector<1x1x128x64xbf16>,
    %39 = vector.extract_strided_slice %30 {offsets = [0, 256], sizes = [128, 64], strides = [1, 1]} : vector<128x384xbf16> to vector<128x64xbf16>
    %c0_21 = arith.constant 0 : index
    %c0_22 = arith.constant 0 : index
    %c0_23 = arith.constant 0 : index
    %c0_24 = arith.constant 0 : index
    %40 = vector.load %arg8[%c0_21, %c0_22, %c0_23, %c0_24] : memref<1x2x128x64xbf16, #tpu.memory_space<vmem>>, vector<1x1x128x64xbf16>
    %41 = vector.shape_cast %40 : vector<1x1x128x64xbf16> to vector<128x64xbf16>
    %42 = vector.shape_cast %39 : vector<128x64xbf16> to vector<1x1x128x64xbf16>
    tpu.vector_store %arg8[%c0_21, %c0_22, %c0_23, %c0_24], %42 {strides = array<i32>} : memref<1x2x128x64xbf16, #tpu.memory_space<vmem>>, vector<1x1x128x64xbf16>,
    %43 = vector.extract_strided_slice %30 {offsets = [0, 64], sizes = [128, 64], strides = [1, 1]} : vector<128x384xbf16> to vector<128x64xbf16>
    %c0_25 = arith.constant 0 : index
    %c1 = arith.constant 1 : index
    %c0_26 = arith.constant 0 : index
    %c0_27 = arith.constant 0 : index
    %44 = vector.load %arg6[%c0_25, %c1, %c0_26, %c0_27] : memref<1x2x128x64xbf16, #tpu.memory_space<vmem>>, vector<1x1x128x64xbf16>
    %45 = vector.shape_cast %44 : vector<1x1x128x64xbf16> to vector<128x64xbf16>
    %46 = vector.shape_cast %43 : vector<128x64xbf16> to vector<1x1x128x64xbf16>
    tpu.vector_store %arg6[%c0_25, %c1, %c0_26, %c0_27], %46 {strides = array<i32>} : memref<1x2x128x64xbf16, #tpu.memory_space<vmem>>, vector<1x1x128x64xbf16>,
    %47 = vector.extract_strided_slice %30 {offsets = [0, 192], sizes = [128, 64], strides = [1, 1]} : vector<128x384xbf16> to vector<128x64xbf16>
    %c0_28 = arith.constant 0 : index
    %c1_29 = arith.constant 1 : index
    %c0_30 = arith.constant 0 : index
    %c0_31 = arith.constant 0 : index
    %48 = vector.load %arg7[%c0_28, %c1_29, %c0_30, %c0_31] : memref<1x2x128x64xbf16, #tpu.memory_space<vmem>>, vector<1x1x128x64xbf16>
    %49 = vector.shape_cast %48 : vector<1x1x128x64xbf16> to vector<128x64xbf16>
    %50 = vector.shape_cast %47 : vector<128x64xbf16> to vector<1x1x128x64xbf16>
    tpu.vector_store %arg7[%c0_28, %c1_29, %c0_30, %c0_31], %50 {strides = array<i32>} : memref<1x2x128x64xbf16, #tpu.memory_space<vmem>>, vector<1x1x128x64xbf16>,
    %51 = vector.extract_strided_slice %30 {offsets = [0, 320], sizes = [128, 64], strides = [1, 1]} : vector<128x384xbf16> to vector<128x64xbf16>
    %c0_32 = arith.constant 0 : index
    %c1_33 = arith.constant 1 : index
    %c0_34 = arith.constant 0 : index
    %c0_35 = arith.constant 0 : index
    %52 = vector.load %arg8[%c0_32, %c1_33, %c0_34, %c0_35] : memref<1x2x128x64xbf16, #tpu.memory_space<vmem>>, vector<1x1x128x64xbf16>
    %53 = vector.shape_cast %52 : vector<1x1x128x64xbf16> to vector<128x64xbf16>
    %54 = vector.shape_cast %51 : vector<128x64xbf16> to vector<1x1x128x64xbf16>
    tpu.vector_store %arg8[%c0_32, %c1_33, %c0_34, %c0_35], %54 {strides = array<i32>} : memref<1x2x128x64xbf16, #tpu.memory_space<vmem>>, vector<1x1x128x64xbf16>,
    return
  }
  func.func @transform_0(%arg0: i32, %arg1: i32) -> (i32, i32, i32) {
    %c0_i32 = arith.constant 0 : i32
    %c0_i32_0 = arith.constant 0 : i32
    return %arg0, %arg1, %c0_i32 : i32, i32, i32
  }
  func.func @transform_1(%arg0: i32, %arg1: i32) -> (i32, i32) {
    %c0_i32 = arith.constant 0 : i32
    %c0_i32_0 = arith.constant 0 : i32
    %c0_i32_1 = arith.constant 0 : i32
    return %c0_i32, %c0_i32_0 : i32, i32
  }
  func.func @transform_2(%arg0: i32, %arg1: i32) -> (i32, i32) {
    %c0_i32 = arith.constant 0 : i32
    %c0_i32_0 = arith.constant 0 : i32
    %c0_i32_1 = arith.constant 0 : i32
    return %c0_i32, %c0_i32_0 : i32, i32
  }
  func.func @transform_3(%arg0: i32, %arg1: i32) -> (i32, i32) {
    %c0_i32 = arith.constant 0 : i32
    %c0_i32_0 = arith.constant 0 : i32
    %c0_i32_1 = arith.constant 0 : i32
    return %c0_i32, %c0_i32_0 : i32, i32
  }
  func.func @transform_4(%arg0: i32, %arg1: i32) -> (i32, i32, i32, i32) {
    %c0_i32 = arith.constant 0 : i32
    %c0_i32_0 = arith.constant 0 : i32
    %c0_i32_1 = arith.constant 0 : i32
    return %arg0, %c0_i32, %arg1, %c0_i32_0 : i32, i32, i32, i32
  }
  func.func @transform_5(%arg0: i32, %arg1: i32) -> (i32, i32, i32, i32) {
    %c0_i32 = arith.constant 0 : i32
    %c0_i32_0 = arith.constant 0 : i32
    %c0_i32_1 = arith.constant 0 : i32
    return %arg0, %c0_i32, %arg1, %c0_i32_0 : i32, i32, i32, i32
  }
  func.func @transform_6(%arg0: i32, %arg1: i32) -> (i32, i32, i32, i32) {
    %c0_i32 = arith.constant 0 : i32
    %c0_i32_0 = arith.constant 0 : i32
    %c0_i32_1 = arith.constant 0 : i32
    return %arg0, %c0_i32, %arg1, %c0_i32_0 : i32, i32, i32, i32
  }
}

module attributes {stable_mosaic.version = 11 : i64} {
  func.func @attn_mlp_kernel(%arg0: i32, %arg1: i32, %arg2: memref<1x128x128xbf16, #tpu.memory_space<vmem>>, %arg3: memref<1x2x128x64xbf16, #tpu.memory_space<vmem>>, %arg4: memref<1x2x128x64xbf16, #tpu.memory_space<vmem>>, %arg5: memref<1x2x128x64xbf16, #tpu.memory_space<vmem>>, %arg6: memref<128x128xbf16, #tpu.memory_space<vmem>>, %arg7: memref<1x128xf32, #tpu.memory_space<vmem>>, %arg8: memref<1x128xf32, #tpu.memory_space<vmem>>, %arg9: memref<1x128xf32, #tpu.memory_space<vmem>>, %arg10: memref<128x512xbf16, #tpu.memory_space<vmem>>, %arg11: memref<1x512xf32, #tpu.memory_space<vmem>>, %arg12: memref<512x128xbf16, #tpu.memory_space<vmem>>, %arg13: memref<1x128xf32, #tpu.memory_space<vmem>>, %arg14: memref<1x128x128xbf16, #tpu.memory_space<vmem>>) attributes {dimension_semantics = [#tpu.dimension_semantics<parallel>, #tpu.dimension_semantics<parallel>], iteration_bounds = array<i64: 4, 1>, scalar_prefetch = 0 : i64, scratch_operands = 0 : i64, tpu.core_type = #tpu.core_type<tc>, window_params = [{transform_indices = @transform_0, window_bounds = array<i64: 1, 128, 128>}, {transform_indices = @transform_1, window_bounds = array<i64: 1, 2, 128, 64>}, {transform_indices = @transform_2, window_bounds = array<i64: 1, 2, 128, 64>}, {transform_indices = @transform_3, window_bounds = array<i64: 1, 2, 128, 64>}, {pipeline_mode = #tpu.pipeline_mode<synchronous>, transform_indices = @transform_4, window_bounds = array<i64: 128, 128>}, {pipeline_mode = #tpu.pipeline_mode<synchronous>, transform_indices = @transform_5, window_bounds = array<i64: 1, 128>}, {pipeline_mode = #tpu.pipeline_mode<synchronous>, transform_indices = @transform_6, window_bounds = array<i64: 1, 128>}, {pipeline_mode = #tpu.pipeline_mode<synchronous>, transform_indices = @transform_7, window_bounds = array<i64: 1, 128>}, {pipeline_mode = #tpu.pipeline_mode<synchronous>, transform_indices = @transform_8, window_bounds = array<i64: 128, 512>}, {pipeline_mode = #tpu.pipeline_mode<synchronous>, transform_indices = @transform_9, window_bounds = array<i64: 1, 512>}, {pipeline_mode = #tpu.pipeline_mode<synchronous>, transform_indices = @transform_10, window_bounds = array<i64: 512, 128>}, {pipeline_mode = #tpu.pipeline_mode<synchronous>, transform_indices = @transform_11, window_bounds = array<i64: 1, 128>}, {transform_indices = @transform_12, window_bounds = array<i64: 1, 128, 128>}]} {
    %c0 = arith.constant 0 : index
    %c0_0 = arith.constant 0 : index
    %c0_1 = arith.constant 0 : index
    %0 = vector.load %arg2[%c0, %c0_0, %c0_1] : memref<1x128x128xbf16, #tpu.memory_space<vmem>>, vector<1x128x128xbf16>
    %1 = vector.shape_cast %0 : vector<1x128x128xbf16> to vector<128x128xbf16>
    %2 = arith.extf %1 : vector<128x128xbf16> to vector<128x128xf32>
    %c128_i32 = arith.constant 128 : i32
    %3 = arith.muli %arg1, %c128_i32 : i32
    %4 = tpu.iota {dimensions = array<i32: 0>} : vector<128x128xi32>
    %5 = vector.broadcast %3 : i32 to vector<128x128xi32>
    %6 = arith.addi %5, %4 : vector<128x128xi32>
    %7 = tpu.iota {dimensions = array<i32: 1>} : vector<128x128xi32>
    %8 = arith.cmpi sle, %7, %6 : vector<128x128xi32>
    %c0_2 = arith.constant 0 : index
    %c0_3 = arith.constant 0 : index
    %c0_4 = arith.constant 0 : index
    %c0_5 = arith.constant 0 : index
    %9 = vector.load %arg3[%c0_2, %c0_3, %c0_4, %c0_5] : memref<1x2x128x64xbf16, #tpu.memory_space<vmem>>, vector<1x1x128x64xbf16>
    %10 = vector.shape_cast %9 : vector<1x1x128x64xbf16> to vector<128x64xbf16>
    %c0_6 = arith.constant 0 : index
    %c0_7 = arith.constant 0 : index
    %c0_8 = arith.constant 0 : index
    %c0_9 = arith.constant 0 : index
    %11 = vector.load %arg4[%c0_6, %c0_7, %c0_8, %c0_9] : memref<1x2x128x64xbf16, #tpu.memory_space<vmem>>, vector<1x1x128x64xbf16>
    %12 = vector.shape_cast %11 : vector<1x1x128x64xbf16> to vector<128x64xbf16>
    %c0_10 = arith.constant 0 : index
    %c0_11 = arith.constant 0 : index
    %c0_12 = arith.constant 0 : index
    %c0_13 = arith.constant 0 : index
    %13 = vector.load %arg5[%c0_10, %c0_11, %c0_12, %c0_13] : memref<1x2x128x64xbf16, #tpu.memory_space<vmem>>, vector<1x1x128x64xbf16>
    %14 = vector.shape_cast %13 : vector<1x1x128x64xbf16> to vector<128x64xbf16>
    %cst = arith.constant dense<0.000000e+00> : vector<128x128xf32>
    %15 = tpu.matmul %10, %12, %cst {dimension_numbers = #tpu.dot_dimension_numbers<[1], [1], [0], [0], [0, 0, 1, 0], [], []>} : vector<128x64xbf16>, vector<128x64xbf16>, vector<128x128xf32> -> vector<128x128xf32>
    %cst_14 = arith.constant 1.250000e-01 : f32
    %16 = vector.broadcast %cst_14 : f32 to vector<128x128xf32>
    %17 = arith.mulf %15, %16 : vector<128x128xf32>
    %cst_15 = arith.constant 0xFF800000 : f32
    %18 = vector.broadcast %cst_15 : f32 to vector<128x128xf32>
    %19 = arith.select %8, %17, %18 : vector<128x128xi1>, vector<128x128xf32>
    %cst_16 = arith.constant dense<0xFF800000> : vector<128xf32>
    %20 = vector.multi_reduction <maximumf>, %19, %cst_16 [1] : vector<128x128xf32> to vector<128xf32>
    %21 = vector.shape_cast %20 : vector<128xf32> to vector<128x1xf32>
    %22 = vector.broadcast %21 : vector<128x1xf32> to vector<128x128xf32>
    %23 = arith.subf %19, %22 : vector<128x128xf32>
    %24 = math.exp %23 : vector<128x128xf32>
    %cst_17 = arith.constant dense<0.000000e+00> : vector<128xf32>
    %25 = vector.multi_reduction <add>, %24, %cst_17 [1] : vector<128x128xf32> to vector<128xf32>
    %26 = vector.shape_cast %25 : vector<128xf32> to vector<128x1xf32>
    %27 = tpu.reciprocal %26 {approx = true} : vector<128x1xf32> -> vector<128x1xf32>
    %28 = vector.broadcast %27 : vector<128x1xf32> to vector<128x128xf32>
    %29 = arith.mulf %24, %28 : vector<128x128xf32>
    %30 = arith.truncf %29 : vector<128x128xf32> to vector<128x128xbf16>
    %cst_18 = arith.constant dense<0.000000e+00> : vector<128x64xf32>
    %31 = tpu.matmul %30, %14, %cst_18 {dimension_numbers = #tpu.dot_dimension_numbers<[1], [0], [0], [1], [0, 0, 1, 1], [], []>} : vector<128x128xbf16>, vector<128x64xbf16>, vector<128x64xf32> -> vector<128x64xf32>
    %c0_19 = arith.constant 0 : index
    %c1 = arith.constant 1 : index
    %c0_20 = arith.constant 0 : index
    %c0_21 = arith.constant 0 : index
    %32 = vector.load %arg3[%c0_19, %c1, %c0_20, %c0_21] : memref<1x2x128x64xbf16, #tpu.memory_space<vmem>>, vector<1x1x128x64xbf16>
    %33 = vector.shape_cast %32 : vector<1x1x128x64xbf16> to vector<128x64xbf16>
    %c0_22 = arith.constant 0 : index
    %c1_23 = arith.constant 1 : index
    %c0_24 = arith.constant 0 : index
    %c0_25 = arith.constant 0 : index
    %34 = vector.load %arg4[%c0_22, %c1_23, %c0_24, %c0_25] : memref<1x2x128x64xbf16, #tpu.memory_space<vmem>>, vector<1x1x128x64xbf16>
    %35 = vector.shape_cast %34 : vector<1x1x128x64xbf16> to vector<128x64xbf16>
    %c0_26 = arith.constant 0 : index
    %c1_27 = arith.constant 1 : index
    %c0_28 = arith.constant 0 : index
    %c0_29 = arith.constant 0 : index
    %36 = vector.load %arg5[%c0_26, %c1_27, %c0_28, %c0_29] : memref<1x2x128x64xbf16, #tpu.memory_space<vmem>>, vector<1x1x128x64xbf16>
    %37 = vector.shape_cast %36 : vector<1x1x128x64xbf16> to vector<128x64xbf16>
    %cst_30 = arith.constant dense<0.000000e+00> : vector<128x128xf32>
    %38 = tpu.matmul %33, %35, %cst_30 {dimension_numbers = #tpu.dot_dimension_numbers<[1], [1], [0], [0], [0, 0, 1, 0], [], []>} : vector<128x64xbf16>, vector<128x64xbf16>, vector<128x128xf32> -> vector<128x128xf32>
    %cst_31 = arith.constant 1.250000e-01 : f32
    %39 = vector.broadcast %cst_31 : f32 to vector<128x128xf32>
    %40 = arith.mulf %38, %39 : vector<128x128xf32>
    %cst_32 = arith.constant 0xFF800000 : f32
    %41 = vector.broadcast %cst_32 : f32 to vector<128x128xf32>
    %42 = arith.select %8, %40, %41 : vector<128x128xi1>, vector<128x128xf32>
    %cst_33 = arith.constant dense<0xFF800000> : vector<128xf32>
    %43 = vector.multi_reduction <maximumf>, %42, %cst_33 [1] : vector<128x128xf32> to vector<128xf32>
    %44 = vector.shape_cast %43 : vector<128xf32> to vector<128x1xf32>
    %45 = vector.broadcast %44 : vector<128x1xf32> to vector<128x128xf32>
    %46 = arith.subf %42, %45 : vector<128x128xf32>
    %47 = math.exp %46 : vector<128x128xf32>
    %cst_34 = arith.constant dense<0.000000e+00> : vector<128xf32>
    %48 = vector.multi_reduction <add>, %47, %cst_34 [1] : vector<128x128xf32> to vector<128xf32>
    %49 = vector.shape_cast %48 : vector<128xf32> to vector<128x1xf32>
    %50 = tpu.reciprocal %49 {approx = true} : vector<128x1xf32> -> vector<128x1xf32>
    %51 = vector.broadcast %50 : vector<128x1xf32> to vector<128x128xf32>
    %52 = arith.mulf %47, %51 : vector<128x128xf32>
    %53 = arith.truncf %52 : vector<128x128xf32> to vector<128x128xbf16>
    %cst_35 = arith.constant dense<0.000000e+00> : vector<128x64xf32>
    %54 = tpu.matmul %53, %37, %cst_35 {dimension_numbers = #tpu.dot_dimension_numbers<[1], [0], [0], [1], [0, 0, 1, 1], [], []>} : vector<128x128xbf16>, vector<128x64xbf16>, vector<128x64xf32> -> vector<128x64xf32>
    %55 = tpu.concatenate %31, %54 in 1 : vector<128x64xf32>, vector<128x64xf32> -> vector<128x128xf32>
    %56 = arith.truncf %55 : vector<128x128xf32> to vector<128x128xbf16>
    %c0_36 = arith.constant 0 : index
    %c0_37 = arith.constant 0 : index
    %57 = vector.load %arg6[%c0_36, %c0_37] : memref<128x128xbf16, #tpu.memory_space<vmem>>, vector<128x128xbf16>
    %cst_38 = arith.constant dense<0.000000e+00> : vector<128x128xf32>
    %58 = tpu.matmul %56, %57, %cst_38 {dimension_numbers = #tpu.dot_dimension_numbers<[1], [0], [0], [1], [0, 0, 1, 1], [], []>} : vector<128x128xbf16>, vector<128x128xbf16>, vector<128x128xf32> -> vector<128x128xf32>
    %59 = arith.addf %2, %58 : vector<128x128xf32>
    %c0_39 = arith.constant 0 : index
    %c0_40 = arith.constant 0 : index
    %60 = vector.load %arg7[%c0_39, %c0_40] : memref<1x128xf32, #tpu.memory_space<vmem>>, vector<1x128xf32>
    %61 = vector.broadcast %60 : vector<1x128xf32> to vector<128x128xf32>
    %62 = arith.addf %59, %61 : vector<128x128xf32>
    %c0_41 = arith.constant 0 : index
    %c0_42 = arith.constant 0 : index
    %63 = vector.load %arg8[%c0_41, %c0_42] : memref<1x128xf32, #tpu.memory_space<vmem>>, vector<1x128xf32>
    %c0_43 = arith.constant 0 : index
    %c0_44 = arith.constant 0 : index
    %64 = vector.load %arg9[%c0_43, %c0_44] : memref<1x128xf32, #tpu.memory_space<vmem>>, vector<1x128xf32>
    %cst_45 = arith.constant dense<0.000000e+00> : vector<128xf32>
    %65 = vector.multi_reduction <add>, %62, %cst_45 [1] : vector<128x128xf32> to vector<128xf32>
    %66 = vector.shape_cast %65 : vector<128xf32> to vector<128x1xf32>
    %cst_46 = arith.constant 1.280000e+02 : f32
    %67 = vector.broadcast %cst_46 : f32 to vector<128x1xf32>
    %68 = arith.divf %66, %67 : vector<128x1xf32>
    %69 = vector.broadcast %68 : vector<128x1xf32> to vector<128x128xf32>
    %70 = arith.subf %62, %69 : vector<128x128xf32>
    %71 = arith.mulf %70, %70 : vector<128x128xf32>
    %cst_47 = arith.constant dense<0.000000e+00> : vector<128xf32>
    %72 = vector.multi_reduction <add>, %71, %cst_47 [1] : vector<128x128xf32> to vector<128xf32>
    %73 = vector.shape_cast %72 : vector<128xf32> to vector<128x1xf32>
    %cst_48 = arith.constant 1.280000e+02 : f32
    %74 = vector.broadcast %cst_48 : f32 to vector<128x1xf32>
    %75 = arith.divf %73, %74 : vector<128x1xf32>
    %76 = vector.broadcast %68 : vector<128x1xf32> to vector<128x128xf32>
    %77 = arith.subf %62, %76 : vector<128x128xf32>
    %cst_49 = arith.constant 9.99999974E-6 : f32
    %78 = vector.broadcast %cst_49 : f32 to vector<128x1xf32>
    %79 = arith.addf %75, %78 : vector<128x1xf32>
    %80 = math.rsqrt %79 : vector<128x1xf32>
    %81 = vector.broadcast %80 : vector<128x1xf32> to vector<128x128xf32>
    %82 = arith.mulf %77, %81 : vector<128x128xf32>
    %83 = vector.broadcast %63 : vector<1x128xf32> to vector<128x128xf32>
    %84 = arith.mulf %82, %83 : vector<128x128xf32>
    %85 = vector.broadcast %64 : vector<1x128xf32> to vector<128x128xf32>
    %86 = arith.addf %84, %85 : vector<128x128xf32>
    %87 = arith.truncf %86 : vector<128x128xf32> to vector<128x128xbf16>
    %c0_50 = arith.constant 0 : index
    %c0_51 = arith.constant 0 : index
    %88 = vector.load %arg10[%c0_50, %c0_51] : memref<128x512xbf16, #tpu.memory_space<vmem>>, vector<128x512xbf16>
    %cst_52 = arith.constant dense<0.000000e+00> : vector<128x512xf32>
    %89 = tpu.matmul %87, %88, %cst_52 {dimension_numbers = #tpu.dot_dimension_numbers<[1], [0], [0], [1], [0, 0, 1, 1], [], []>} : vector<128x128xbf16>, vector<128x512xbf16>, vector<128x512xf32> -> vector<128x512xf32>
    %c0_53 = arith.constant 0 : index
    %c0_54 = arith.constant 0 : index
    %90 = vector.load %arg11[%c0_53, %c0_54] : memref<1x512xf32, #tpu.memory_space<vmem>>, vector<1x512xf32>
    %91 = vector.broadcast %90 : vector<1x512xf32> to vector<128x512xf32>
    %92 = arith.addf %89, %91 : vector<128x512xf32>
    %cst_55 = arith.constant 0.000000e+00 : f32
    %93 = vector.broadcast %cst_55 : f32 to vector<128x512xf32>
    %94 = arith.maximumf %92, %93 : vector<128x512xf32>
    %95 = arith.truncf %94 : vector<128x512xf32> to vector<128x512xbf16>
    %c0_56 = arith.constant 0 : index
    %c0_57 = arith.constant 0 : index
    %96 = vector.load %arg12[%c0_56, %c0_57] : memref<512x128xbf16, #tpu.memory_space<vmem>>, vector<512x128xbf16>
    %cst_58 = arith.constant dense<0.000000e+00> : vector<128x128xf32>
    %97 = tpu.matmul %95, %96, %cst_58 {dimension_numbers = #tpu.dot_dimension_numbers<[1], [0], [0], [1], [0, 0, 1, 1], [], []>} : vector<128x512xbf16>, vector<512x128xbf16>, vector<128x128xf32> -> vector<128x128xf32>
    %c0_59 = arith.constant 0 : index
    %c0_60 = arith.constant 0 : index
    %98 = vector.load %arg13[%c0_59, %c0_60] : memref<1x128xf32, #tpu.memory_space<vmem>>, vector<1x128xf32>
    %99 = vector.broadcast %98 : vector<1x128xf32> to vector<128x128xf32>
    %100 = arith.addf %97, %99 : vector<128x128xf32>
    %101 = arith.addf %62, %100 : vector<128x128xf32>
    %102 = arith.truncf %101 : vector<128x128xf32> to vector<128x128xbf16>
    %c0_61 = arith.constant 0 : index
    %c0_62 = arith.constant 0 : index
    %c0_63 = arith.constant 0 : index
    %103 = vector.load %arg14[%c0_61, %c0_62, %c0_63] : memref<1x128x128xbf16, #tpu.memory_space<vmem>>, vector<1x128x128xbf16>
    %104 = vector.shape_cast %103 : vector<1x128x128xbf16> to vector<128x128xbf16>
    %105 = vector.shape_cast %102 : vector<128x128xbf16> to vector<1x128x128xbf16>
    tpu.vector_store %arg14[%c0_61, %c0_62, %c0_63], %105 {strides = array<i32>} : memref<1x128x128xbf16, #tpu.memory_space<vmem>>, vector<1x128x128xbf16>,
    return
  }
  func.func @transform_0(%arg0: i32, %arg1: i32) -> (i32, i32, i32) {
    %c0_i32 = arith.constant 0 : i32
    %c0_i32_0 = arith.constant 0 : i32
    return %arg0, %arg1, %c0_i32 : i32, i32, i32
  }
  func.func @transform_1(%arg0: i32, %arg1: i32) -> (i32, i32, i32, i32) {
    %c0_i32 = arith.constant 0 : i32
    %c0_i32_0 = arith.constant 0 : i32
    %c0_i32_1 = arith.constant 0 : i32
    return %arg0, %c0_i32, %arg1, %c0_i32_0 : i32, i32, i32, i32
  }
  func.func @transform_2(%arg0: i32, %arg1: i32) -> (i32, i32, i32, i32) {
    %c0_i32 = arith.constant 0 : i32
    %c0_i32_0 = arith.constant 0 : i32
    %c0_i32_1 = arith.constant 0 : i32
    %c0_i32_2 = arith.constant 0 : i32
    return %arg0, %c0_i32, %c0_i32_0, %c0_i32_1 : i32, i32, i32, i32
  }
  func.func @transform_3(%arg0: i32, %arg1: i32) -> (i32, i32, i32, i32) {
    %c0_i32 = arith.constant 0 : i32
    %c0_i32_0 = arith.constant 0 : i32
    %c0_i32_1 = arith.constant 0 : i32
    %c0_i32_2 = arith.constant 0 : i32
    return %arg0, %c0_i32, %c0_i32_0, %c0_i32_1 : i32, i32, i32, i32
  }
  func.func @transform_4(%arg0: i32, %arg1: i32) -> (i32, i32) {
    %c0_i32 = arith.constant 0 : i32
    %c0_i32_0 = arith.constant 0 : i32
    %c0_i32_1 = arith.constant 0 : i32
    return %c0_i32, %c0_i32_0 : i32, i32
  }
  func.func @transform_5(%arg0: i32, %arg1: i32) -> (i32, i32) {
    %c0_i32 = arith.constant 0 : i32
    %c0_i32_0 = arith.constant 0 : i32
    %c0_i32_1 = arith.constant 0 : i32
    return %c0_i32, %c0_i32_0 : i32, i32
  }
  func.func @transform_6(%arg0: i32, %arg1: i32) -> (i32, i32) {
    %c0_i32 = arith.constant 0 : i32
    %c0_i32_0 = arith.constant 0 : i32
    %c0_i32_1 = arith.constant 0 : i32
    return %c0_i32, %c0_i32_0 : i32, i32
  }
  func.func @transform_7(%arg0: i32, %arg1: i32) -> (i32, i32) {
    %c0_i32 = arith.constant 0 : i32
    %c0_i32_0 = arith.constant 0 : i32
    %c0_i32_1 = arith.constant 0 : i32
    return %c0_i32, %c0_i32_0 : i32, i32
  }
  func.func @transform_8(%arg0: i32, %arg1: i32) -> (i32, i32) {
    %c0_i32 = arith.constant 0 : i32
    %c0_i32_0 = arith.constant 0 : i32
    %c0_i32_1 = arith.constant 0 : i32
    return %c0_i32, %c0_i32_0 : i32, i32
  }
  func.func @transform_9(%arg0: i32, %arg1: i32) -> (i32, i32) {
    %c0_i32 = arith.constant 0 : i32
    %c0_i32_0 = arith.constant 0 : i32
    %c0_i32_1 = arith.constant 0 : i32
    return %c0_i32, %c0_i32_0 : i32, i32
  }
  func.func @transform_10(%arg0: i32, %arg1: i32) -> (i32, i32) {
    %c0_i32 = arith.constant 0 : i32
    %c0_i32_0 = arith.constant 0 : i32
    %c0_i32_1 = arith.constant 0 : i32
    return %c0_i32, %c0_i32_0 : i32, i32
  }
  func.func @transform_11(%arg0: i32, %arg1: i32) -> (i32, i32) {
    %c0_i32 = arith.constant 0 : i32
    %c0_i32_0 = arith.constant 0 : i32
    %c0_i32_1 = arith.constant 0 : i32
    return %c0_i32, %c0_i32_0 : i32, i32
  }
  func.func @transform_12(%arg0: i32, %arg1: i32) -> (i32, i32, i32) {
    %c0_i32 = arith.constant 0 : i32
    %c0_i32_0 = arith.constant 0 : i32
    return %arg0, %arg1, %c0_i32 : i32, i32, i32
  }
}

module attributes {stable_mosaic.version = 11 : i64} {
  func.func @lm_head_kernel(%arg0: i32, %arg1: i32, %arg2: i32, %arg3: memref<1x128x128xbf16, #tpu.memory_space<vmem>>, %arg4: memref<1x128xf32, #tpu.memory_space<vmem>>, %arg5: memref<1x128xf32, #tpu.memory_space<vmem>>, %arg6: memref<128x128xbf16, #tpu.memory_space<vmem>>, %arg7: memref<1x128xf32, #tpu.memory_space<vmem>>, %arg8: memref<1x128x128xf32, #tpu.memory_space<vmem>>, %arg9: memref<128x128xbf16, #tpu.memory_space<vmem>>) attributes {dimension_semantics = [#tpu.dimension_semantics<parallel>, #tpu.dimension_semantics<parallel>, #tpu.dimension_semantics<arbitrary>], iteration_bounds = array<i64: 4, 1, 1>, scalar_prefetch = 0 : i64, scratch_operands = 1 : i64, tpu.core_type = #tpu.core_type<tc>, window_params = [{transform_indices = @transform_0, window_bounds = array<i64: 1, 128, 128>}, {pipeline_mode = #tpu.pipeline_mode<synchronous>, transform_indices = @transform_1, window_bounds = array<i64: 1, 128>}, {pipeline_mode = #tpu.pipeline_mode<synchronous>, transform_indices = @transform_2, window_bounds = array<i64: 1, 128>}, {transform_indices = @transform_3, window_bounds = array<i64: 128, 128>}, {transform_indices = @transform_4, window_bounds = array<i64: 1, 128>}, {transform_indices = @transform_5, window_bounds = array<i64: 1, 128, 128>}]} {
    %c0_i32 = arith.constant 0 : i32
    %0 = arith.cmpi eq, %arg2, %c0_i32 : i32
    %1 = arith.extui %0 : i1 to i32
    %c0_i32_0 = arith.constant 0 : i32
    %2 = arith.cmpi ne, %1, %c0_i32_0 : i32
    scf.if %2 {
      %c0_9 = arith.constant 0 : index
      %c0_10 = arith.constant 0 : index
      %c0_11 = arith.constant 0 : index
      %12 = vector.load %arg3[%c0_9, %c0_10, %c0_11] : memref<1x128x128xbf16, #tpu.memory_space<vmem>>, vector<1x128x128xbf16>
      %13 = vector.shape_cast %12 : vector<1x128x128xbf16> to vector<128x128xbf16>
      %14 = arith.extf %13 : vector<128x128xbf16> to vector<128x128xf32>
      %c0_12 = arith.constant 0 : index
      %c0_13 = arith.constant 0 : index
      %15 = vector.load %arg4[%c0_12, %c0_13] : memref<1x128xf32, #tpu.memory_space<vmem>>, vector<1x128xf32>
      %c0_14 = arith.constant 0 : index
      %c0_15 = arith.constant 0 : index
      %16 = vector.load %arg5[%c0_14, %c0_15] : memref<1x128xf32, #tpu.memory_space<vmem>>, vector<1x128xf32>
      %cst_16 = arith.constant dense<0.000000e+00> : vector<128xf32>
      %17 = vector.multi_reduction <add>, %14, %cst_16 [1] : vector<128x128xf32> to vector<128xf32>
      %18 = vector.shape_cast %17 : vector<128xf32> to vector<128x1xf32>
      %cst_17 = arith.constant 1.280000e+02 : f32
      %19 = vector.broadcast %cst_17 : f32 to vector<128x1xf32>
      %20 = arith.divf %18, %19 : vector<128x1xf32>
      %21 = vector.broadcast %20 : vector<128x1xf32> to vector<128x128xf32>
      %22 = arith.subf %14, %21 : vector<128x128xf32>
      %23 = arith.mulf %22, %22 : vector<128x128xf32>
      %cst_18 = arith.constant dense<0.000000e+00> : vector<128xf32>
      %24 = vector.multi_reduction <add>, %23, %cst_18 [1] : vector<128x128xf32> to vector<128xf32>
      %25 = vector.shape_cast %24 : vector<128xf32> to vector<128x1xf32>
      %cst_19 = arith.constant 1.280000e+02 : f32
      %26 = vector.broadcast %cst_19 : f32 to vector<128x1xf32>
      %27 = arith.divf %25, %26 : vector<128x1xf32>
      %28 = vector.broadcast %20 : vector<128x1xf32> to vector<128x128xf32>
      %29 = arith.subf %14, %28 : vector<128x128xf32>
      %cst_20 = arith.constant 9.99999974E-6 : f32
      %30 = vector.broadcast %cst_20 : f32 to vector<128x1xf32>
      %31 = arith.addf %27, %30 : vector<128x1xf32>
      %32 = math.rsqrt %31 : vector<128x1xf32>
      %33 = vector.broadcast %32 : vector<128x1xf32> to vector<128x128xf32>
      %34 = arith.mulf %29, %33 : vector<128x128xf32>
      %35 = vector.broadcast %15 : vector<1x128xf32> to vector<128x128xf32>
      %36 = arith.mulf %34, %35 : vector<128x128xf32>
      %37 = vector.broadcast %16 : vector<1x128xf32> to vector<128x128xf32>
      %38 = arith.addf %36, %37 : vector<128x128xf32>
      %39 = arith.truncf %38 : vector<128x128xf32> to vector<128x128xbf16>
      %c0_21 = arith.constant 0 : index
      %c0_22 = arith.constant 0 : index
      %40 = vector.load %arg9[%c0_21, %c0_22] : memref<128x128xbf16, #tpu.memory_space<vmem>>, vector<128x128xbf16>
      tpu.vector_store %arg9[%c0_21, %c0_22], %39 {strides = array<i32>} : memref<128x128xbf16, #tpu.memory_space<vmem>>, vector<128x128xbf16>,
    } else {
    }
    %c0 = arith.constant 0 : index
    %c0_1 = arith.constant 0 : index
    %3 = vector.load %arg9[%c0, %c0_1] : memref<128x128xbf16, #tpu.memory_space<vmem>>, vector<128x128xbf16>
    %c0_2 = arith.constant 0 : index
    %c0_3 = arith.constant 0 : index
    %4 = vector.load %arg6[%c0_2, %c0_3] : memref<128x128xbf16, #tpu.memory_space<vmem>>, vector<128x128xbf16>
    %cst = arith.constant dense<0.000000e+00> : vector<128x128xf32>
    %5 = tpu.matmul %3, %4, %cst {dimension_numbers = #tpu.dot_dimension_numbers<[1], [0], [0], [1], [0, 0, 1, 1], [], []>} : vector<128x128xbf16>, vector<128x128xbf16>, vector<128x128xf32> -> vector<128x128xf32>
    %c0_4 = arith.constant 0 : index
    %c0_5 = arith.constant 0 : index
    %6 = vector.load %arg7[%c0_4, %c0_5] : memref<1x128xf32, #tpu.memory_space<vmem>>, vector<1x128xf32>
    %7 = vector.broadcast %6 : vector<1x128xf32> to vector<128x128xf32>
    %8 = arith.addf %5, %7 : vector<128x128xf32>
    %c0_6 = arith.constant 0 : index
    %c0_7 = arith.constant 0 : index
    %c0_8 = arith.constant 0 : index
    %9 = vector.load %arg8[%c0_6, %c0_7, %c0_8] : memref<1x128x128xf32, #tpu.memory_space<vmem>>, vector<1x128x128xf32>
    %10 = vector.shape_cast %9 : vector<1x128x128xf32> to vector<128x128xf32>
    %11 = vector.shape_cast %8 : vector<128x128xf32> to vector<1x128x128xf32>
    tpu.vector_store %arg8[%c0_6, %c0_7, %c0_8], %11 {strides = array<i32>} : memref<1x128x128xf32, #tpu.memory_space<vmem>>, vector<1x128x128xf32>,
    return
  }
  func.func @transform_0(%arg0: i32, %arg1: i32, %arg2: i32) -> (i32, i32, i32) {
    %c0_i32 = arith.constant 0 : i32
    %c0_i32_0 = arith.constant 0 : i32
    return %arg0, %arg1, %c0_i32 : i32, i32, i32
  }
  func.func @transform_1(%arg0: i32, %arg1: i32, %arg2: i32) -> (i32, i32) {
    %c0_i32 = arith.constant 0 : i32
    %c0_i32_0 = arith.constant 0 : i32
    %c0_i32_1 = arith.constant 0 : i32
    return %c0_i32, %c0_i32_0 : i32, i32
  }
  func.func @transform_2(%arg0: i32, %arg1: i32, %arg2: i32) -> (i32, i32) {
    %c0_i32 = arith.constant 0 : i32
    %c0_i32_0 = arith.constant 0 : i32
    %c0_i32_1 = arith.constant 0 : i32
    return %c0_i32, %c0_i32_0 : i32, i32
  }
  func.func @transform_3(%arg0: i32, %arg1: i32, %arg2: i32) -> (i32, i32) {
    %c0_i32 = arith.constant 0 : i32
    %c0_i32_0 = arith.constant 0 : i32
    return %c0_i32, %arg2 : i32, i32
  }
  func.func @transform_4(%arg0: i32, %arg1: i32, %arg2: i32) -> (i32, i32) {
    %c0_i32 = arith.constant 0 : i32
    %c0_i32_0 = arith.constant 0 : i32
    return %c0_i32, %arg2 : i32, i32
  }
  func.func @transform_5(%arg0: i32, %arg1: i32, %arg2: i32) -> (i32, i32, i32) {
    %c0_i32 = arith.constant 0 : i32
    return %arg0, %arg1, %arg2 : i32, i32, i32
  }
}

</mosaic_0001>

<llo_original>
// kernel: gpt_forward.9
$region0: #{gpt_forward.9}
  #allocation0 [shape = 'u32[]', space=smem, size = 0x4, offset = 0x4, fixed_abs, tag = 'smem constant byte address 0x4 - core index']
  #allocation1 [shape = 'u32[144,128]{1,0:T(1,128)}', space=vmem, size = 0x12000, scoped, tag = 'internal scratch']
  #allocation2 [shape = 'bf16[128,128]{1,0:T(8,128)(2,1)}', space=vmem, size = 0x8000, scoped, tag = 'scratch operand']
  %s0 = inlined_call_operand.vmem [shape: bf16[4,128,128], index: 0, kind: input, shape index: {}]
  %s1 = inlined_call_operand.vmem [shape: f32[1,128], index: 1, kind: input, shape index: {}]
  %s2 = inlined_call_operand.vmem [shape: f32[1,128], index: 2, kind: input, shape index: {}]
  %s3 = inlined_call_operand.vmem [shape: bf16[128,128], index: 3, kind: input, shape index: {}]
  %s4 = inlined_call_operand.vmem [shape: f32[1,128], index: 4, kind: input, shape index: {}]
  %s5 = inlined_call_operand.vmem [shape: f32[4,128,128], index: 5, kind: output, shape index: {}]
  %s6 = sld [smem:[#allocation0]]
  $region57: #{gpt_forward.9} parent=0
    _
  %s8 = ssub.s32 1, %s6
  %s9 = scalar_select 0, %s8, %s6
  loop: start=0, step=1, limit=6
  $region2: #{gpt_forward.9} parent=0 // loop_pre_header
    _
  $region3: #{gpt_forward.9} parent=0 // loop_header
    %s11 = sphi 0, %s15
    %p12 = scmp.ge.s32.totalorder %s11, 6
    %s18 = sphi 0, %s37
    %s19 = sphi 0, %s33
    %s20 = sphi 0, %s29
    %s21 = sphi 0, %s18
    %s22 = sphi 0, %s19
    %s23 = sphi 0, %s20
    %s24 = sphi 0, %s21
    %s25 = sphi 0, %s22
    %s26 = sphi 0, %s23
    %s42 = sphi 0, %s44
    %s45 = sphi 0, %s42
    %s46 = sphi 0, %s45
    %s62 = sphi 0, %s46
    %s66 = sphi 0, %s66
    %s68 = sphi 0, %s66
    %s69 = sphi 0, %s68
    %s83 = sphi 0, %s69
    %s87 = sphi 0, %s87
    %s89 = sphi 0, %s87
    %s90 = sphi 0, %s89
    %s104 = sphi 0, %s90
    %s110 = sphi 0, %s112
    %s113 = sphi 0, %s110
    %s114 = sphi 0, %s113
    %s130 = sphi 0, %s114
    %s136 = sphi 0, %s138
    %s139 = sphi 0, %s136
    %s140 = sphi 0, %s139
    %s156 = sphi 0, %s140
    %s166 = sphi 0, %s168
    %s169 = sphi 0, %s166
    %s170 = sphi 0, %s169
    %s186 = sphi 0, %s170
  $region4: #{gpt_forward.9} parent=0 // loop_header_branch
    %14 = sbr.rel (%p12) target = $region8
  $region5: #{gpt_forward.9} parent=0 // loop_body
    %s16 = ssub.s32 %s11, 1
    %s17 = ssub.s32 %s11, 2
    %s27 = sadd.s32 1, %s20
    %p28 = scmp.ge.s32.totalorder %s27, 1
    %s29 = scalar_select %p28, 0, %s27
    %s30 = sadd.s32 1, %s19
    %s31 = scalar_select %p28, %s30, %s19
    %p32 = scmp.ge.s32.totalorder %s31, 1
    %s33 = scalar_select %p32, 0, %s31
    %s34 = sadd.s32 1, %s18
    %s35 = scalar_select %p32, %s34, %s18
    %p36 = scmp.ge.s32.totalorder %s35, 4
    %s37 = scalar_select %p36, 0, %s35
    %s38 = ssub.s32 %s18, %s37
    %s39 = ssub.s32 %s19, %s33
    %s40 = sor.u32 %s38, %s39
    %p41 = scmp.eq.s32.totalorder %s40, 0
    %s43 = sadd.s32 %s42, 1
    %s44 = scalar_select %p41, %s42, %s43
    %p47 = pneg %p41
    %p48 = scmp.eq.s32.totalorder %s11, 3
    %p49 = por %p47, %p48
    %p50 = scmp.ne.s32.totalorder %s42, %s45
    %p51 = scmp.eq.s32.totalorder %s11, 0
    %p52 = por %p50, %p51
    %p53 = scmp.ne.s32.totalorder %s42, %s45
    %p54 = scmp.eq.s32.totalorder %s16, 3
    %p55 = por %p53, %p54
    %p56 = scmp.ne.s32.totalorder %s45, %s46
    %p57 = scmp.eq.s32.totalorder %s16, 0
    %p58 = por %p56, %p57
    %p59 = scmp.ne.s32.totalorder %s45, %s46
    %p60 = scmp.eq.s32.totalorder %s17, 3
    %p61 = por %p59, %p60
    %p63 = scmp.ne.s32.totalorder %s46, %s62
    %p64 = scmp.eq.s32.totalorder %s17, 0
    %p65 = por %p63, %p64
    %s67 = sadd.s32 %s66, 1
    %p70 = scmp.eq.s32.totalorder %s11, 3
    %p71 = scmp.ne.s32.totalorder %s66, %s68
    %p72 = scmp.eq.s32.totalorder %s11, 0
    %p73 = por %p71, %p72
    %p74 = scmp.ne.s32.totalorder %s66, %s68
    %p75 = scmp.eq.s32.totalorder %s16, 3
    %p76 = por %p74, %p75
    %p77 = scmp.ne.s32.totalorder %s68, %s69
    %p78 = scmp.eq.s32.totalorder %s16, 0
    %p79 = por %p77, %p78
    %p80 = scmp.ne.s32.totalorder %s68, %s69
    %p81 = scmp.eq.s32.totalorder %s17, 3
    %p82 = por %p80, %p81
    %p84 = scmp.ne.s32.totalorder %s69, %s83
    %p85 = scmp.eq.s32.totalorder %s17, 0
    %p86 = por %p84, %p85
    %s88 = sadd.s32 %s87, 1
    %p91 = scmp.eq.s32.totalorder %s11, 3
    %p92 = scmp.ne.s32.totalorder %s87, %s89
    %p93 = scmp.eq.s32.totalorder %s11, 0
    %p94 = por %p92, %p93
    %p95 = scmp.ne.s32.totalorder %s87, %s89
    %p96 = scmp.eq.s32.totalorder %s16, 3
    %p97 = por %p95, %p96
    %p98 = scmp.ne.s32.totalorder %s89, %s90
    %p99 = scmp.eq.s32.totalorder %s16, 0
    %p100 = por %p98, %p99
    %p101 = scmp.ne.s32.totalorder %s89, %s90
    %p102 = scmp.eq.s32.totalorder %s17, 3
    %p103 = por %p101, %p102
    %p105 = scmp.ne.s32.totalorder %s90, %s104
    %p106 = scmp.eq.s32.totalorder %s17, 0
    %p107 = por %p105, %p106
    %s108 = ssub.s32 %s20, %s29
    %p109 = scmp.eq.s32.totalorder %s108, 0
    %s111 = sadd.s32 %s110, 1
    %s112 = scalar_select %p109, %s110, %s111
    %p115 = pneg %p109
    %p116 = scmp.eq.s32.totalorder %s11, 3
    %p117 = por %p115, %p116
    %p118 = scmp.ne.s32.totalorder %s110, %s113
    %p119 = scmp.eq.s32.totalorder %s11, 0
    %p120 = por %p118, %p119
    %p121 = scmp.ne.s32.totalorder %s110, %s113
    %p122 = scmp.eq.s32.totalorder %s16, 3
    %p123 = por %p121, %p122
    %p124 = scmp.ne.s32.totalorder %s113, %s114
    %p125 = scmp.eq.s32.totalorder %s16, 0
    %p126 = por %p124, %p125
    %p127 = scmp.ne.s32.totalorder %s113, %s114
    %p128 = scmp.eq.s32.totalorder %s17, 3
    %p129 = por %p127, %p128
    %p131 = scmp.ne.s32.totalorder %s114, %s130
    %p132 = scmp.eq.s32.totalorder %s17, 0
    %p133 = por %p131, %p132
    %s134 = ssub.s32 %s20, %s29
    %p135 = scmp.eq.s32.totalorder %s134, 0
    %s137 = sadd.s32 %s136, 1
    %s138 = scalar_select %p135, %s136, %s137
    %p141 = pneg %p135
    %p142 = scmp.eq.s32.totalorder %s11, 3
    %p143 = por %p141, %p142
    %p144 = scmp.ne.s32.totalorder %s136, %s139
    %p145 = scmp.eq.s32.totalorder %s11, 0
    %p146 = por %p144, %p145
    %p147 = scmp.ne.s32.totalorder %s136, %s139
    %p148 = scmp.eq.s32.totalorder %s16, 3
    %p149 = por %p147, %p148
    %p150 = scmp.ne.s32.totalorder %s139, %s140
    %p151 = scmp.eq.s32.totalorder %s16, 0
    %p152 = por %p150, %p151
    %p153 = scmp.ne.s32.totalorder %s139, %s140
    %p154 = scmp.eq.s32.totalorder %s17, 3
    %p155 = por %p153, %p154
    %p157 = scmp.ne.s32.totalorder %s140, %s156
    %p158 = scmp.eq.s32.totalorder %s17, 0
    %p159 = por %p157, %p158
    %s160 = ssub.s32 %s18, %s37
    %s161 = ssub.s32 %s19, %s33
    %s162 = sor.u32 %s160, %s161
    %s163 = ssub.s32 %s20, %s29
    %s164 = sor.u32 %s162, %s163
    %p165 = scmp.eq.s32.totalorder %s164, 0
    %s167 = sadd.s32 %s166, 1
    %s168 = scalar_select %p165, %s166, %s167
    %p171 = pneg %p165
    %p172 = scmp.eq.s32.totalorder %s11, 3
    %p173 = por %p171, %p172
    %p174 = scmp.ne.s32.totalorder %s166, %s169
    %p175 = scmp.eq.s32.totalorder %s11, 0
    %p176 = por %p174, %p175
    %p177 = scmp.ne.s32.totalorder %s166, %s169
    %p178 = scmp.eq.s32.totalorder %s16, 3
    %p179 = por %p177, %p178
    %p180 = scmp.ne.s32.totalorder %s169, %s170
    %p181 = scmp.eq.s32.totalorder %s16, 0
    %p182 = por %p180, %p181
    %p183 = scmp.ne.s32.totalorder %s169, %s170
    %p184 = scmp.eq.s32.totalorder %s17, 3
    %p185 = por %p183, %p184
    %p187 = scmp.ne.s32.totalorder %s170, %s186
    %p188 = scmp.eq.s32.totalorder %s17, 0
    %p189 = por %p187, %p188
    %p190 = scmp.le.s32.totalorder 1, %s11
    %p191 = scmp.lt.s32.totalorder %s11, 5
    %p192 = pnand %p190, %p191
    %p193 = pneg %p192
    // Predicated region
    $region9: #{gpt_forward.9} parent=5 // pred_check
      _
    $region10: #{gpt_forward.9} parent=5 // pred_check_branch
      %195 = sbr.rel (%p192) target = $region12
    $region11: #{gpt_forward.9} parent=5 // pred_region
      %s196 = ssub.s32 %s11, 1
      // Predicated region
      $region13: #{gpt_forward.9} parent=11 // pred_check
        %p197 = pneg %p79
      $region14: #{gpt_forward.9} parent=11 // pred_check_branch
        %199 = sbr.rel (%p197) target = $region16
      $region15: #{gpt_forward.9} parent=11 // pred_region
        _
      $region16: #{gpt_forward.9} parent=11 // pred_fallthru
        _
      // Predicated region
      $region17: #{gpt_forward.9} parent=11 // pred_check
        %p200 = pneg %p100
      $region18: #{gpt_forward.9} parent=11 // pred_check_branch
        %202 = sbr.rel (%p200) target = $region20
      $region19: #{gpt_forward.9} parent=11 // pred_region
        _
      $region20: #{gpt_forward.9} parent=11 // pred_fallthru
        _
      // Predicated region
      $region21: #{gpt_forward.9} parent=11 // pred_check
        %p203 = pneg %p126
      $region22: #{gpt_forward.9} parent=11 // pred_check_branch
        %205 = sbr.rel (%p203) target = $region24
      $region23: #{gpt_forward.9} parent=11 // pred_region
        %p206 = scmp.lt.s32.totalorder %s23, 0
        %s207 = scalar_select %p206, %s23, 0
        %s208 = smul.addr %s207, 4
        %s209 = scalar_lea.vmem %s3, %s208
      $region24: #{gpt_forward.9} parent=11 // pred_fallthru
        _
      // Predicated region
      $region25: #{gpt_forward.9} parent=11 // pred_check
        %p210 = pneg %p152
      $region26: #{gpt_forward.9} parent=11 // pred_check_branch
        %212 = sbr.rel (%p210) target = $region28
      $region27: #{gpt_forward.9} parent=11 // pred_region
        %p213 = scmp.lt.s32.totalorder %s23, 0
        %s214 = scalar_select %p213, %s23, 0
        %s215 = scalar_lea.vmem %s4, %s214
      $region28: #{gpt_forward.9} parent=11 // pred_fallthru
        _
    $region12: #{gpt_forward.9} parent=5 // pred_fallthru
      _
    %p216 = scmp.lt.s32.totalorder %s11, 4
    // Predicated region
    $region29: #{gpt_forward.9} parent=5 // pred_check
      %p217 = pneg %p216
    $region30: #{gpt_forward.9} parent=5 // pred_check_branch
      %219 = sbr.rel (%p217) target = $region32
    $region31: #{gpt_forward.9} parent=5 // pred_region
      // Predicated region
      $region33: #{gpt_forward.9} parent=31 // pred_check
        %p220 = pneg %p52
      $region34: #{gpt_forward.9} parent=31 // pred_check_branch
        %222 = sbr.rel (%p220) target = $region36
      $region35: #{gpt_forward.9} parent=31 // pred_region
        %s223 = smul.u32 16, %s19
        %p224 = scmp.lt.s32.totalorder %s18, 3
        %s225 = scalar_select %p224, %s18, 3
        %p226 = scmp.lt.s32.totalorder %s223, 15
        %s227 = scalar_select %p226, %s223, 15
        %s228 = smul.addr %s225, 16
        %s229 = sadd.s32 %s227, %s228
        %s230 = smul.addr %s229, 4
        %s231 = scalar_lea.vmem %s0, %s230
        %s232 = smul.u32 16, %s19
      $region36: #{gpt_forward.9} parent=31 // pred_fallthru
        _
    $region32: #{gpt_forward.9} parent=5 // pred_fallthru
      _
    %p233 = scmp.le.s32.totalorder 1, %s11
    %p234 = scmp.lt.s32.totalorder %s11, 5
    %p235 = pnand %p233, %p234
    %p236 = pneg %p235
    // Predicated region
    $region37: #{gpt_forward.9} parent=5 // pred_check
      _
    $region38: #{gpt_forward.9} parent=5 // pred_check_branch
      %238 = sbr.rel (%p235) target = $region40
    $region39: #{gpt_forward.9} parent=5 // pred_region
      %s239 = ssub.s32 %s11, 1
      %s240 = smul.u32 16, %s22
      %p241 = scmp.lt.s32.totalorder %s21, 3
      %s242 = scalar_select %p241, %s21, 3
      %p243 = scmp.lt.s32.totalorder %s240, 15
      %s244 = scalar_select %p243, %s240, 15
      %s245 = smul.addr %s242, 16
      %s246 = sadd.s32 %s244, %s245
      %s247 = smul.addr %s246, 4
      %s248 = scalar_lea.vmem %s0, %s247
      %p249 = pneg %p58
      %p250 = pneg %p55
      %p251 = pneg %p79
      %p252 = pneg %p76
      %p253 = pneg %p100
      %p254 = pneg %p97
      %p255 = scmp.lt.s32.totalorder %s23, 0
      %s256 = scalar_select %p255, %s23, 0
      %s257 = smul.addr %s256, 4
      %s258 = scalar_lea.vmem %s3, %s257
      %p259 = pneg %p126
      %p260 = pneg %p123
      %p261 = scmp.lt.s32.totalorder %s23, 0
      %s262 = scalar_select %p261, %s23, 0
      %s263 = scalar_lea.vmem %s4, %s262
      %p264 = pneg %p152
      %p265 = pneg %p149
      %p266 = pneg %p182
      %p267 = pneg %p179
      %s268 = smul.u32 16, %s22
      %p269 = scmp.lt.s32.totalorder %s21, 3
      %s270 = scalar_select %p269, %s21, 3
      %p271 = scmp.lt.s32.totalorder %s268, 15
      %s272 = scalar_select %p271, %s268, 15
      %p273 = scmp.lt.s32.totalorder %s23, 0
      %s274 = scalar_select %p273, %s23, 0
      %s275 = sadd.s32 %s274, %s272
      %s276 = smul.addr %s270, 16
      %s277 = sadd.s32 %s275, %s276
      %s278 = smul.addr %s277, 8
      %s279 = scalar_lea.vmem %s5, %s278
      %s280 = smul.u32 16, %s22
      %p281 = scmp.lt.s32.totalorder %s21, 3
      %s282 = scalar_select %p281, %s21, 3
      %p283 = scmp.lt.s32.totalorder %s280, 15
      %s284 = scalar_select %p283, %s280, 15
      %s285 = smul.addr %s282, 16
      %s286 = sadd.s32 %s284, %s285
      %s287 = smul.addr %s286, 4
      %s288 = scalar_lea.vmem %s0, %s287
      %s289 = smul.u32 16, %s22
      %p290 = scmp.lt.s32.totalorder %s23, 0
      %s291 = scalar_select %p290, %s23, 0
      %s292 = smul.addr %s291, 4
      %s293 = scalar_lea.vmem %s3, %s292
      %p294 = scmp.lt.s32.totalorder %s23, 0
      %s295 = scalar_select %p294, %s23, 0
      %s296 = scalar_lea.vmem %s4, %s295
      %s297 = smul.u32 16, %s22
      %p298 = scmp.lt.s32.totalorder %s21, 3
      %s299 = scalar_select %p298, %s21, 3
      %p300 = scmp.lt.s32.totalorder %s297, 15
      %s301 = scalar_select %p300, %s297, 15
      %p302 = scmp.lt.s32.totalorder %s23, 0
      %s303 = scalar_select %p302, %s23, 0
      %s304 = sadd.s32 %s303, %s301
      %s305 = smul.addr %s299, 16
      %s306 = sadd.s32 %s304, %s305
      %s307 = smul.addr %s306, 8
      %s308 = scalar_lea.vmem %s5, %s307
      %s309 = smul.u32 16, %s22
      %p311 = scmp.eq.s32.totalorder %s23, 0
      // Predicated region
      $region41: #{gpt_forward.9} parent=39 // pred_check
        %p312 = pneg %p311
      $region42: #{gpt_forward.9} parent=39 // pred_check_branch
        %314 = sbr.rel (%p312) target = $region44
      $region43: #{gpt_forward.9} parent=39 // pred_region
        %v315 = vld [vmem:[%s288] sm:$0xf]
        %v316 = vld [vmem:[%s288 + $0x4] sm:$0xf]
        %v317 = vld [vmem:[%s288 + $0x8] sm:$0xf]
        %v318 = vld [vmem:[%s288 + $0xc] sm:$0xf]
        %v319 = vld [vmem:[%s288 + $0x10] sm:$0xf]
        %v320 = vld [vmem:[%s288 + $0x14] sm:$0xf]
        %v321 = vld [vmem:[%s288 + $0x18] sm:$0xf]
        %v322 = vld [vmem:[%s288 + $0x1c] sm:$0xf]
        %v323 = vld [vmem:[%s288 + $0x20] sm:$0xf]
        %v324 = vld [vmem:[%s288 + $0x24] sm:$0xf]
        %v325 = vld [vmem:[%s288 + $0x28] sm:$0xf]
        %v326 = vld [vmem:[%s288 + $0x2c] sm:$0xf]
        %v327 = vld [vmem:[%s288 + $0x30] sm:$0xf]
        %v328 = vld [vmem:[%s288 + $0x34] sm:$0xf]
        %v329 = vld [vmem:[%s288 + $0x38] sm:$0xf]
        %v330 = vld [vmem:[%s288 + $0x3c] sm:$0xf]
        %v331 = vunpack.c.l.bf16 %v315
        %v332 = vunpack.c.l.bf16 %v316
        %v333 = vunpack.c.l.bf16 %v317
        %v334 = vunpack.c.l.bf16 %v318
        %v335 = vunpack.c.l.bf16 %v319
        %v336 = vunpack.c.l.bf16 %v320
        %v337 = vunpack.c.l.bf16 %v321
        %v338 = vunpack.c.l.bf16 %v322
        %v339 = vunpack.c.l.bf16 %v323
        %v340 = vunpack.c.l.bf16 %v324
        %v341 = vunpack.c.l.bf16 %v325
        %v342 = vunpack.c.l.bf16 %v326
        %v343 = vunpack.c.l.bf16 %v327
        %v344 = vunpack.c.l.bf16 %v328
        %v345 = vunpack.c.l.bf16 %v329
        %v346 = vunpack.c.l.bf16 %v330
        %v347 = vld [vmem:[%s1] sm:$0x1]
        %v348 = vld [vmem:[%s2] sm:$0x1]
        %349 = vadd.xlane.f32.xlu0 %v331
        %v350 = vpop.xlane.xlu0 %349
        %351 = vadd.xlane.f32.xlu0 %v332
        %v352 = vpop.xlane.xlu0 %351
        %353 = vadd.xlane.f32.xlu0 %v333
        %v354 = vpop.xlane.xlu0 %353
        %355 = vadd.xlane.f32.xlu0 %v334
        %v356 = vpop.xlane.xlu0 %355
        %357 = vadd.xlane.f32.xlu0 %v335
        %v358 = vpop.xlane.xlu0 %357
        %359 = vadd.xlane.f32.xlu0 %v336
        %v360 = vpop.xlane.xlu0 %359
        %361 = vadd.xlane.f32.xlu0 %v337
        %v362 = vpop.xlane.xlu0 %361
        %363 = vadd.xlane.f32.xlu0 %v338
        %v364 = vpop.xlane.xlu0 %363
        %365 = vadd.xlane.f32.xlu0 %v339
        %v366 = vpop.xlane.xlu0 %365
        %367 = vadd.xlane.f32.xlu0 %v340
        %v368 = vpop.xlane.xlu0 %367
        %369 = vadd.xlane.f32.xlu0 %v341
        %v370 = vpop.xlane.xlu0 %369
        %371 = vadd.xlane.f32.xlu0 %v342
        %v372 = vpop.xlane.xlu0 %371
        %373 = vadd.xlane.f32.xlu0 %v343
        %v374 = vpop.xlane.xlu0 %373
        %375 = vadd.xlane.f32.xlu0 %v344
        %v376 = vpop.xlane.xlu0 %375
        %377 = vadd.xlane.f32.xlu0 %v345
        %v378 = vpop.xlane.xlu0 %377
        %379 = vadd.xlane.f32.xlu0 %v346
        %v380 = vpop.xlane.xlu0 %379
        %v381 = vrcp.pop 128.0
        %v382 = vmul.f32 %v350, %v381
        %v383 = vmul.f32 %v352, %v381
        %v384 = vmul.f32 %v354, %v381
        %v385 = vmul.f32 %v356, %v381
        %v386 = vmul.f32 %v358, %v381
        %v387 = vmul.f32 %v360, %v381
        %v388 = vmul.f32 %v362, %v381
        %v389 = vmul.f32 %v364, %v381
        %v390 = vmul.f32 %v366, %v381
        %v391 = vmul.f32 %v368, %v381
        %v392 = vmul.f32 %v370, %v381
        %v393 = vmul.f32 %v372, %v381
        %v394 = vmul.f32 %v374, %v381
        %v395 = vmul.f32 %v376, %v381
        %v396 = vmul.f32 %v378, %v381
        %v397 = vmul.f32 %v380, %v381
        %v398 = vsub.f32 %v331, %v382
        %v399 = vsub.f32 %v332, %v383
        %v400 = vsub.f32 %v333, %v384
        %v401 = vsub.f32 %v334, %v385
        %v402 = vsub.f32 %v335, %v386
        %v403 = vsub.f32 %v336, %v387
        %v404 = vsub.f32 %v337, %v388
        %v405 = vsub.f32 %v338, %v389
        %v406 = vsub.f32 %v339, %v390
        %v407 = vsub.f32 %v340, %v391
        %v408 = vsub.f32 %v341, %v392
        %v409 = vsub.f32 %v342, %v393
        %v410 = vsub.f32 %v343, %v394
        %v411 = vsub.f32 %v344, %v395
        %v412 = vsub.f32 %v345, %v396
        %v413 = vsub.f32 %v346, %v397
        %v414 = vmul.f32 %v398, %v398
        %v415 = vmul.f32 %v399, %v399
        %v416 = vmul.f32 %v400, %v400
        %v417 = vmul.f32 %v401, %v401
        %v418 = vmul.f32 %v402, %v402
        %v419 = vmul.f32 %v403, %v403
        %v420 = vmul.f32 %v404, %v404
        %v421 = vmul.f32 %v405, %v405
        %v422 = vmul.f32 %v406, %v406
        %v423 = vmul.f32 %v407, %v407
        %v424 = vmul.f32 %v408, %v408
        %v425 = vmul.f32 %v409, %v409
        %v426 = vmul.f32 %v410, %v410
        %v427 = vmul.f32 %v411, %v411
        %v428 = vmul.f32 %v412, %v412
        %v429 = vmul.f32 %v413, %v413
        %430 = vadd.xlane.f32.xlu0 %v414
        %v431 = vpop.xlane.xlu0 %430
        %432 = vadd.xlane.f32.xlu0 %v415
        %v433 = vpop.xlane.xlu0 %432
        %434 = vadd.xlane.f32.xlu0 %v416
        %v435 = vpop.xlane.xlu0 %434
        %436 = vadd.xlane.f32.xlu0 %v417
        %v437 = vpop.xlane.xlu0 %436
        %438 = vadd.xlane.f32.xlu0 %v418
        %v439 = vpop.xlane.xlu0 %438
        %440 = vadd.xlane.f32.xlu0 %v419
        %v441 = vpop.xlane.xlu0 %440
        %442 = vadd.xlane.f32.xlu0 %v420
        %v443 = vpop.xlane.xlu0 %442
        %444 = vadd.xlane.f32.xlu0 %v421
        %v445 = vpop.xlane.xlu0 %444
        %446 = vadd.xlane.f32.xlu0 %v422
        %v447 = vpop.xlane.xlu0 %446
        %448 = vadd.xlane.f32.xlu0 %v423
        %v449 = vpop.xlane.xlu0 %448
        %450 = vadd.xlane.f32.xlu0 %v424
        %v451 = vpop.xlane.xlu0 %450
        %452 = vadd.xlane.f32.xlu0 %v425
        %v453 = vpop.xlane.xlu0 %452
        %454 = vadd.xlane.f32.xlu0 %v426
        %v455 = vpop.xlane.xlu0 %454
        %456 = vadd.xlane.f32.xlu0 %v427
        %v457 = vpop.xlane.xlu0 %456
        %458 = vadd.xlane.f32.xlu0 %v428
        %v459 = vpop.xlane.xlu0 %458
        %460 = vadd.xlane.f32.xlu0 %v429
        %v461 = vpop.xlane.xlu0 %460
        %v462 = vmul.f32 %v431, %v381
        %v463 = vmul.f32 %v433, %v381
        %v464 = vmul.f32 %v435, %v381
        %v465 = vmul.f32 %v437, %v381
        %v466 = vmul.f32 %v439, %v381
        %v467 = vmul.f32 %v441, %v381
        %v468 = vmul.f32 %v443, %v381
        %v469 = vmul.f32 %v445, %v381
        %v470 = vmul.f32 %v447, %v381
        %v471 = vmul.f32 %v449, %v381
        %v472 = vmul.f32 %v451, %v381
        %v473 = vmul.f32 %v453, %v381
        %v474 = vmul.f32 %v455, %v381
        %v475 = vmul.f32 %v457, %v381
        %v476 = vmul.f32 %v459, %v381
        %v477 = vmul.f32 %v461, %v381
        %v478 = vadd.f32 %v462, 1e-05
        %v479 = vadd.f32 %v463, 1e-05
        %v480 = vadd.f32 %v464, 1e-05
        %v481 = vadd.f32 %v465, 1e-05
        %v482 = vadd.f32 %v466, 1e-05
        %v483 = vadd.f32 %v467, 1e-05
        %v484 = vadd.f32 %v468, 1e-05
        %v485 = vadd.f32 %v469, 1e-05
        %v486 = vadd.f32 %v470, 1e-05
        %v487 = vadd.f32 %v471, 1e-05
        %v488 = vadd.f32 %v472, 1e-05
        %v489 = vadd.f32 %v473, 1e-05
        %v490 = vadd.f32 %v474, 1e-05
        %v491 = vadd.f32 %v475, 1e-05
        %v492 = vadd.f32 %v476, 1e-05
        %v493 = vadd.f32 %v477, 1e-05
        %v494 = vrsqrt.pop %v478
        %v495 = vrsqrt.pop %v479
        %v496 = vrsqrt.pop %v480
        %v497 = vrsqrt.pop %v481
        %v498 = vrsqrt.pop %v482
        %v499 = vrsqrt.pop %v483
        %v500 = vrsqrt.pop %v484
        %v501 = vrsqrt.pop %v485
        %v502 = vrsqrt.pop %v486
        %v503 = vrsqrt.pop %v487
        %v504 = vrsqrt.pop %v488
        %v505 = vrsqrt.pop %v489
        %v506 = vrsqrt.pop %v490
        %v507 = vrsqrt.pop %v491
        %v508 = vrsqrt.pop %v492
        %v509 = vrsqrt.pop %v493
        %v510 = vmul.f32 %v398, %v494
        %v511 = vmul.f32 %v399, %v495
        %v512 = vmul.f32 %v400, %v496
        %v513 = vmul.f32 %v401, %v497
        %v514 = vmul.f32 %v402, %v498
        %v515 = vmul.f32 %v403, %v499
        %v516 = vmul.f32 %v404, %v500
        %v517 = vmul.f32 %v405, %v501
        %v518 = vmul.f32 %v406, %v502
        %v519 = vmul.f32 %v407, %v503
        %v520 = vmul.f32 %v408, %v504
        %v521 = vmul.f32 %v409, %v505
        %v522 = vmul.f32 %v410, %v506
        %v523 = vmul.f32 %v411, %v507
        %v524 = vmul.f32 %v412, %v508
        %v525 = vmul.f32 %v413, %v509
        %v527 = vlaneseq
        %v528 = vshrl.u32 %v527, 7
        %v529 = vsub.s32 0, %v528
        %v530 = vrot.slane %v347, %v529
        %v532 = vmul.f32 %v510, %v530
        %v533 = vmul.f32 %v511, %v530
        %v534 = vmul.f32 %v512, %v530
        %v535 = vmul.f32 %v513, %v530
        %v536 = vmul.f32 %v514, %v530
        %v537 = vmul.f32 %v515, %v530
        %v538 = vmul.f32 %v516, %v530
        %v539 = vmul.f32 %v517, %v530
        %v540 = vmul.f32 %v518, %v530
        %v541 = vmul.f32 %v519, %v530
        %v542 = vmul.f32 %v520, %v530
        %v543 = vmul.f32 %v521, %v530
        %v544 = vmul.f32 %v522, %v530
        %v545 = vmul.f32 %v523, %v530
        %v546 = vmul.f32 %v524, %v530
        %v547 = vmul.f32 %v525, %v530
        %v549 = vlaneseq
        %v550 = vshrl.u32 %v549, 7
        %v551 = vsub.s32 0, %v550
        %v552 = vrot.slane %v348, %v551
        %v554 = vadd.f32 %v532, %v552
        %v555 = vadd.f32 %v533, %v552
        %v556 = vadd.f32 %v534, %v552
        %v557 = vadd.f32 %v535, %v552
        %v558 = vadd.f32 %v536, %v552
        %v559 = vadd.f32 %v537, %v552
        %v560 = vadd.f32 %v538, %v552
        %v561 = vadd.f32 %v539, %v552
        %v562 = vadd.f32 %v540, %v552
        %v563 = vadd.f32 %v541, %v552
        %v564 = vadd.f32 %v542, %v552
        %v565 = vadd.f32 %v543, %v552
        %v566 = vadd.f32 %v544, %v552
        %v567 = vadd.f32 %v545, %v552
        %v568 = vadd.f32 %v546, %v552
        %v569 = vadd.f32 %v547, %v552
        %v570 = vpack.c.bf16 %v555, %v554
        %v571 = vpack.c.bf16 %v557, %v556
        %v572 = vpack.c.bf16 %v559, %v558
        %v573 = vpack.c.bf16 %v561, %v560
        %v574 = vpack.c.bf16 %v563, %v562
        %v575 = vpack.c.bf16 %v565, %v564
        %v576 = vpack.c.bf16 %v567, %v566
        %v577 = vpack.c.bf16 %v569, %v568
        %v586 = vunpack.c.l.b16 %v570
        %v587 = vunpack.c.h.b16 %v570
        %v588 = vunpack.c.l.b16 %v571
        %v589 = vunpack.c.h.b16 %v571
        %v590 = vunpack.c.l.b16 %v572
        %v591 = vunpack.c.h.b16 %v572
        %v592 = vunpack.c.l.b16 %v573
        %v593 = vunpack.c.h.b16 %v573
        %v594 = vunpack.c.l.b16 %v574
        %v595 = vunpack.c.h.b16 %v574
        %v596 = vunpack.c.l.b16 %v575
        %v597 = vunpack.c.h.b16 %v575
        %v598 = vunpack.c.l.b16 %v576
        %v599 = vunpack.c.h.b16 %v576
        %v600 = vunpack.c.l.b16 %v577
        %v601 = vunpack.c.h.b16 %v577
        %v602 = vpack.c.b16 %v586, %v586
        %v603 = vpack.c.b16 %v587, %v587
        %v604 = vpack.c.b16 %v588, %v588
        %v605 = vpack.c.b16 %v589, %v589
        %v606 = vpack.c.b16 %v590, %v590
        %v607 = vpack.c.b16 %v591, %v591
        %v608 = vpack.c.b16 %v592, %v592
        %v609 = vpack.c.b16 %v593, %v593
        %v610 = vpack.c.b16 %v594, %v594
        %v611 = vpack.c.b16 %v595, %v595
        %v612 = vpack.c.b16 %v596, %v596
        %v613 = vpack.c.b16 %v597, %v597
        %v614 = vpack.c.b16 %v598, %v598
        %v615 = vpack.c.b16 %v599, %v599
        %v616 = vpack.c.b16 %v600, %v600
        %v617 = vpack.c.b16 %v601, %v601
        %634 = vst [vmem:[#allocation2] sm:$0xf] %v602
        %635 = vst [vmem:[#allocation2 + $0x4] sm:$0xf] %v603
        %636 = vst [vmem:[#allocation2 + $0x8] sm:$0xf] %v604
        %637 = vst [vmem:[#allocation2 + $0xc] sm:$0xf] %v605
        %638 = vst [vmem:[#allocation2 + $0x10] sm:$0xf] %v606
        %639 = vst [vmem:[#allocation2 + $0x14] sm:$0xf] %v607
        %640 = vst [vmem:[#allocation2 + $0x18] sm:$0xf] %v608
        %641 = vst [vmem:[#allocation2 + $0x1c] sm:$0xf] %v609
        %642 = vst [vmem:[#allocation2 + $0x20] sm:$0xf] %v610
        %643 = vst [vmem:[#allocation2 + $0x24] sm:$0xf] %v611
        %644 = vst [vmem:[#allocation2 + $0x28] sm:$0xf] %v612
        %645 = vst [vmem:[#allocation2 + $0x2c] sm:$0xf] %v613
        %646 = vst [vmem:[#allocation2 + $0x30] sm:$0xf] %v614
        %647 = vst [vmem:[#allocation2 + $0x34] sm:$0xf] %v615
        %648 = vst [vmem:[#allocation2 + $0x38] sm:$0xf] %v616
        %649 = vst [vmem:[#allocation2 + $0x3c] sm:$0xf] %v617
      $region44: #{gpt_forward.9} parent=39 // pred_fallthru
        _
      %v650 = vld [vmem:[#allocation2] sm:$0xf]
      %v651 = vld [vmem:[#allocation2 + $0x4] sm:$0xf]
      %v652 = vld [vmem:[#allocation2 + $0x8] sm:$0xf]
      %v653 = vld [vmem:[#allocation2 + $0xc] sm:$0xf]
      %v654 = vld [vmem:[#allocation2 + $0x10] sm:$0xf]
      %v655 = vld [vmem:[#allocation2 + $0x14] sm:$0xf]
      %v656 = vld [vmem:[#allocation2 + $0x18] sm:$0xf]
      %v657 = vld [vmem:[#allocation2 + $0x1c] sm:$0xf]
      %v658 = vld [vmem:[#allocation2 + $0x20] sm:$0xf]
      %v659 = vld [vmem:[#allocation2 + $0x24] sm:$0xf]
      %v660 = vld [vmem:[#allocation2 + $0x28] sm:$0xf]
      %v661 = vld [vmem:[#allocation2 + $0x2c] sm:$0xf]
      %v662 = vld [vmem:[#allocation2 + $0x30] sm:$0xf]
      %v663 = vld [vmem:[#allocation2 + $0x34] sm:$0xf]
      %v664 = vld [vmem:[#allocation2 + $0x38] sm:$0xf]
      %v665 = vld [vmem:[#allocation2 + $0x3c] sm:$0xf]
      %v666 = vld [vmem:[%s293] sm:$0xf]
      %v667 = vld [vmem:[%s293 + $0x4] sm:$0xf]
      %v668 = vld [vmem:[%s293 + $0x8] sm:$0xf]
      %v669 = vld [vmem:[%s293 + $0xc] sm:$0xf]
      %v670 = vld [vmem:[%s293 + $0x10] sm:$0xf]
      %v671 = vld [vmem:[%s293 + $0x14] sm:$0xf]
      %v672 = vld [vmem:[%s293 + $0x18] sm:$0xf]
      %v673 = vld [vmem:[%s293 + $0x1c] sm:$0xf]
      %v674 = vld [vmem:[%s293 + $0x20] sm:$0xf]
      %v675 = vld [vmem:[%s293 + $0x24] sm:$0xf]
      %v676 = vld [vmem:[%s293 + $0x28] sm:$0xf]
      %v677 = vld [vmem:[%s293 + $0x2c] sm:$0xf]
      %v678 = vld [vmem:[%s293 + $0x30] sm:$0xf]
      %v679 = vld [vmem:[%s293 + $0x34] sm:$0xf]
      %v680 = vld [vmem:[%s293 + $0x38] sm:$0xf]
      %v681 = vld [vmem:[%s293 + $0x3c] sm:$0xf]
      %v682 = vld [vmem:[%s296] sm:$0x1]
      %v684 = vlaneseq
      %v685 = vshrl.u32 %v684, 7
      %v686 = vsub.s32 0, %v685
      %v687 = vrot.slane %v682, %v686
      %v705 = vunpack.c.l.b16 %v650
      %v706 = vunpack.c.l.b16 %v651
      %v707 = vunpack.c.l.b16 %v652
      %v708 = vunpack.c.l.b16 %v653
      %v709 = vunpack.c.l.b16 %v654
      %v710 = vunpack.c.l.b16 %v655
      %v711 = vunpack.c.l.b16 %v656
      %v712 = vunpack.c.l.b16 %v657
      %v713 = vunpack.c.l.b16 %v658
      %v714 = vunpack.c.l.b16 %v659
      %v715 = vunpack.c.l.b16 %v660
      %v716 = vunpack.c.l.b16 %v661
      %v717 = vunpack.c.l.b16 %v662
      %v718 = vunpack.c.l.b16 %v663
      %v719 = vunpack.c.l.b16 %v664
      %v720 = vunpack.c.l.b16 %v665
      %v721 = vpack.c.b16 %v706, %v705
      %v722 = vpack.c.b16 %v708, %v707
      %v723 = vpack.c.b16 %v710, %v709
      %v724 = vpack.c.b16 %v712, %v711
      %v725 = vpack.c.b16 %v714, %v713
      %v726 = vpack.c.b16 %v716, %v715
      %v727 = vpack.c.b16 %v718, %v717
      %v728 = vpack.c.b16 %v720, %v719
      %v753 = vunpack.c.l.b16 %v666
      %v754 = vunpack.c.l.b16 %v667
      %v755 = vunpack.c.l.b16 %v668
      %v756 = vunpack.c.l.b16 %v669
      %v757 = vunpack.c.l.b16 %v670
      %v758 = vunpack.c.l.b16 %v671
      %v759 = vunpack.c.l.b16 %v672
      %v760 = vunpack.c.l.b16 %v673
      %v761 = vunpack.c.l.b16 %v674
      %v762 = vunpack.c.l.b16 %v675
      %v763 = vunpack.c.l.b16 %v676
      %v764 = vunpack.c.l.b16 %v677
      %v765 = vunpack.c.l.b16 %v678
      %v766 = vunpack.c.l.b16 %v679
      %v767 = vunpack.c.l.b16 %v680
      %v768 = vunpack.c.l.b16 %v681
      %v769 = vpack.c.b16 %v754, %v753
      %v770 = vpack.c.b16 %v756, %v755
      %v771 = vpack.c.b16 %v758, %v757
      %v772 = vpack.c.b16 %v760, %v759
      %v773 = vpack.c.b16 %v762, %v761
      %v774 = vpack.c.b16 %v764, %v763
      %v775 = vpack.c.b16 %v766, %v765
      %v776 = vpack.c.b16 %v768, %v767
      %785 = vmatprep.subr.bf16.mxu0 0
      %786 = vmatpush1.bf16.msra.mxu0 %v776
      %787 = vmatprep.subr.bf16.mxu0 0
      %788 = vmatpush1.bf16.msra.mxu0 %v775
      %789 = vmatprep.subr.bf16.mxu0 0
      %790 = vmatpush1.bf16.msra.mxu0 %v774
      %791 = vmatprep.subr.bf16.mxu0 0
      %792 = vmatpush1.bf16.msra.mxu0 %v773
      %793 = vmatprep.subr.bf16.mxu0 0
      %794 = vmatpush1.bf16.msra.mxu0 %v772
      %795 = vmatprep.subr.bf16.mxu0 0
      %796 = vmatpush1.bf16.msra.mxu0 %v771
      %797 = vmatprep.subr.bf16.mxu0 0
      %798 = vmatpush1.bf16.msra.mxu0 %v770
      %799 = vmatprep.subr.bf16.mxu0 0
      %800 = vmatpush1.bf16.msra.mxu0 %v769
      %801 = vmatprep.subr.bf16.mxu0 0
      %802 = vmatpush2.bf16.msra.mxu0 0
      %803 = vmatprep.subr.bf16.mxu0 0
      %804 = vmatpush2.bf16.msra.mxu0 0
      %805 = vmatprep.subr.bf16.mxu0 0
      %806 = vmatpush2.bf16.msra.mxu0 0
      %807 = vmatprep.subr.bf16.mxu0 0
      %808 = vmatpush2.bf16.msra.mxu0 0
      %809 = vmatprep.subr.bf16.mxu0 0
      %810 = vmatpush2.bf16.msra.mxu0 0
      %811 = vmatprep.subr.bf16.mxu0 0
      %812 = vmatpush2.bf16.msra.mxu0 0
      %813 = vmatprep.subr.bf16.mxu0 0
      %814 = vmatpush2.bf16.msra.mxu0 0
      %815 = vmatprep.subr.bf16.mxu0 0
      %816 = vmatpush2.bf16.msra.mxu0 0
      %817 = vmatprep.mubr.bf16.mxu0 0
      %818 = vmatmul.mubr.bf16.gmra.mxu0 %v721
      %v819 = vpop.f32.mrf.mxu0
      %v820 = vadd.f32 %v687, %v819
      %v821 = vpop.f32.mrf.mxu0
      %v822 = vpop.f32.mrf.mxu0
      %v823 = vadd.f32 %v687, %v822
      %v824 = vpop.f32.mrf.mxu0
      %825 = vmatprep.mubr.bf16.mxu0 0
      %826 = vmatmul.mubr.bf16.gmra.mxu0 %v722
      %v827 = vpop.f32.mrf.mxu0
      %v828 = vadd.f32 %v687, %v827
      %v829 = vpop.f32.mrf.mxu0
      %v830 = vpop.f32.mrf.mxu0
      %v831 = vadd.f32 %v687, %v830
      %v832 = vpop.f32.mrf.mxu0
      %833 = vmatprep.mubr.bf16.mxu0 0
      %834 = vmatmul.mubr.bf16.gmra.mxu0 %v723
      %v835 = vpop.f32.mrf.mxu0
      %v836 = vadd.f32 %v687, %v835
      %v837 = vpop.f32.mrf.mxu0
      %v838 = vpop.f32.mrf.mxu0
      %v839 = vadd.f32 %v687, %v838
      %v840 = vpop.f32.mrf.mxu0
      %841 = vmatprep.mubr.bf16.mxu0 0
      %842 = vmatmul.mubr.bf16.gmra.mxu0 %v724
      %v843 = vpop.f32.mrf.mxu0
      %v844 = vadd.f32 %v687, %v843
      %v845 = vpop.f32.mrf.mxu0
      %v846 = vpop.f32.mrf.mxu0
      %v847 = vadd.f32 %v687, %v846
      %v848 = vpop.f32.mrf.mxu0
      %849 = vmatprep.mubr.bf16.mxu0 0
      %850 = vmatmul.mubr.bf16.gmra.mxu0 %v725
      %v851 = vpop.f32.mrf.mxu0
      %v852 = vadd.f32 %v687, %v851
      %v853 = vpop.f32.mrf.mxu0
      %v854 = vpop.f32.mrf.mxu0
      %v855 = vadd.f32 %v687, %v854
      %v856 = vpop.f32.mrf.mxu0
      %857 = vmatprep.mubr.bf16.mxu0 0
      %858 = vmatmul.mubr.bf16.gmra.mxu0 %v726
      %v859 = vpop.f32.mrf.mxu0
      %v860 = vadd.f32 %v687, %v859
      %v861 = vpop.f32.mrf.mxu0
      %v862 = vpop.f32.mrf.mxu0
      %v863 = vadd.f32 %v687, %v862
      %v864 = vpop.f32.mrf.mxu0
      %865 = vmatprep.mubr.bf16.mxu0 0
      %866 = vmatmul.mubr.bf16.gmra.mxu0 %v727
      %v867 = vpop.f32.mrf.mxu0
      %v868 = vadd.f32 %v687, %v867
      %v869 = vpop.f32.mrf.mxu0
      %v870 = vpop.f32.mrf.mxu0
      %v871 = vadd.f32 %v687, %v870
      %v872 = vpop.f32.mrf.mxu0
      %873 = vmatprep.mubr.bf16.mxu0 0
      %874 = vmatmul.mubr.bf16.gmra.mxu0 %v728
      %v875 = vpop.f32.mrf.mxu0
      %v876 = vadd.f32 %v687, %v875
      %v877 = vpop.f32.mrf.mxu0
      %v878 = vpop.f32.mrf.mxu0
      %v879 = vadd.f32 %v687, %v878
      %v880 = vpop.f32.mrf.mxu0
      %881 = vdwg.mxu0
      %882 = vst [vmem:[%s308] sm:$0xff] %v820
      %883 = vst [vmem:[%s308 + $0x8] sm:$0xff] %v823
      %884 = vst [vmem:[%s308 + $0x10] sm:$0xff] %v828
      %885 = vst [vmem:[%s308 + $0x18] sm:$0xff] %v831
      %886 = vst [vmem:[%s308 + $0x20] sm:$0xff] %v836
      %887 = vst [vmem:[%s308 + $0x28] sm:$0xff] %v839
      %888 = vst [vmem:[%s308 + $0x30] sm:$0xff] %v844
      %889 = vst [vmem:[%s308 + $0x38] sm:$0xff] %v847
      %890 = vst [vmem:[%s308 + $0x40] sm:$0xff] %v852
      %891 = vst [vmem:[%s308 + $0x48] sm:$0xff] %v855
      %892 = vst [vmem:[%s308 + $0x50] sm:$0xff] %v860
      %893 = vst [vmem:[%s308 + $0x58] sm:$0xff] %v863
      %894 = vst [vmem:[%s308 + $0x60] sm:$0xff] %v868
      %895 = vst [vmem:[%s308 + $0x68] sm:$0xff] %v871
      %896 = vst [vmem:[%s308 + $0x70] sm:$0xff] %v876
      %897 = vst [vmem:[%s308 + $0x78] sm:$0xff] %v879
      %s898 = smul.u32 16, %s22
      %p899 = scmp.lt.s32.totalorder %s21, 3
      %s900 = scalar_select %p899, %s21, 3
      %p901 = scmp.lt.s32.totalorder %s898, 15
      %s902 = scalar_select %p901, %s898, 15
      %p903 = scmp.lt.s32.totalorder %s23, 0
      %s904 = scalar_select %p903, %s23, 0
      %s905 = sadd.s32 %s904, %s902
      %s906 = smul.addr %s900, 16
      %s907 = sadd.s32 %s905, %s906
      %s908 = smul.addr %s907, 8
      %s909 = scalar_lea.vmem %s5, %s908
      // Predicated region
      $region45: #{gpt_forward.9} parent=39 // pred_check
        %p910 = pneg %p179
      $region46: #{gpt_forward.9} parent=39 // pred_check_branch
        %912 = sbr.rel (%p910) target = $region48
      $region47: #{gpt_forward.9} parent=39 // pred_region
        %s913 = smul.u32 16, %s22
      $region48: #{gpt_forward.9} parent=39 // pred_fallthru
        _
    $region40: #{gpt_forward.9} parent=5 // pred_fallthru
      _
    %p914 = scmp.le.s32.totalorder 2, %s11
    // Predicated region
    $region49: #{gpt_forward.9} parent=5 // pred_check
      %p915 = pneg %p914
    $region50: #{gpt_forward.9} parent=5 // pred_check_branch
      %917 = sbr.rel (%p915) target = $region52
    $region51: #{gpt_forward.9} parent=5 // pred_region
      %s918 = ssub.s32 %s11, 2
      // Predicated region
      $region53: #{gpt_forward.9} parent=51 // pred_check
        %p919 = pneg %p185
      $region54: #{gpt_forward.9} parent=51 // pred_check_branch
        %921 = sbr.rel (%p919) target = $region56
      $region55: #{gpt_forward.9} parent=51 // pred_region
        %s922 = smul.u32 16, %s25
        %p923 = scmp.lt.s32.totalorder %s24, 3
        %s924 = scalar_select %p923, %s24, 3
        %p925 = scmp.lt.s32.totalorder %s922, 15
        %s926 = scalar_select %p925, %s922, 15
        %p927 = scmp.lt.s32.totalorder %s26, 0
        %s928 = scalar_select %p927, %s26, 0
        %s929 = sadd.s32 %s928, %s926
        %s930 = smul.addr %s924, 16
        %s931 = sadd.s32 %s929, %s930
        %s932 = smul.addr %s931, 8
        %s933 = scalar_lea.vmem %s5, %s932
      $region56: #{gpt_forward.9} parent=51 // pred_fallthru
        _
    $region52: #{gpt_forward.9} parent=5 // pred_fallthru
      _
  $region6: #{gpt_forward.9} parent=0 // loop_footer
    %s15 = sadd.s32 1, %s11
  $region7: #{gpt_forward.9} parent=0 // loop_footer_branch
    %10 = sbr.rel target = $region3
  $region8: #{gpt_forward.9} parent=0 // loop_exit
    _

// kernel: gpt_forward.5
$region0: #{gpt_forward.5}
  #allocation0 [shape = 'u32[]', space=smem, size = 0x4, offset = 0x4, fixed_abs, tag = 'smem constant byte address 0x4 - core index']
  #allocation1 [shape = 'u32[144,128]{1,0:T(1,128)}', space=vmem, size = 0x12000, scoped, tag = 'internal scratch']
  %s0 = inlined_call_operand.vmem [shape: bf16[4,128,128], index: 0, kind: input, shape index: {}]
  %s1 = inlined_call_operand.vmem [shape: f32[1,128], index: 1, kind: input, shape index: {}]
  %s2 = inlined_call_operand.vmem [shape: f32[1,128], index: 2, kind: input, shape index: {}]
  %s3 = inlined_call_operand.vmem [shape: bf16[128,384], index: 3, kind: input, shape index: {}]
  %s4 = inlined_call_operand.vmem [shape: bf16[4,2,128,64], index: 4, kind: output, shape index: {0}]
  %s5 = inlined_call_operand.vmem [shape: bf16[4,2,128,64], index: 5, kind: output, shape index: {1}]
  %s6 = inlined_call_operand.vmem [shape: bf16[4,2,128,64], index: 6, kind: output, shape index: {2}]
  %7 = xla_tuple %s4, %s5, %s6
  %s8 = sld [smem:[#allocation0]]
  $region65: #{gpt_forward.5} parent=0
    _
  %s10 = ssub.s32 1, %s8
  %s11 = scalar_select 0, %s10, %s8
  loop: start=0, step=1, limit=6
  $region2: #{gpt_forward.5} parent=0 // loop_pre_header
    _
  $region3: #{gpt_forward.5} parent=0 // loop_header
    %s13 = sphi 0, %s17
    %p14 = scmp.ge.s32.totalorder %s13, 6
    %s20 = sphi 0, %s32
    %s21 = sphi 0, %s28
    %s22 = sphi 0, %s20
    %s23 = sphi 0, %s21
    %s24 = sphi 0, %s22
    %s25 = sphi 0, %s23
    %s37 = sphi 0, %s39
    %s40 = sphi 0, %s37
    %s41 = sphi 0, %s40
    %s57 = sphi 0, %s41
    %s61 = sphi 0, %s61
    %s63 = sphi 0, %s61
    %s64 = sphi 0, %s63
    %s78 = sphi 0, %s64
    %s82 = sphi 0, %s82
    %s84 = sphi 0, %s82
    %s85 = sphi 0, %s84
    %s99 = sphi 0, %s85
    %s103 = sphi 0, %s103
    %s105 = sphi 0, %s103
    %s106 = sphi 0, %s105
    %s120 = sphi 0, %s106
    %s128 = sphi 0, %s130
    %s131 = sphi 0, %s128
    %s132 = sphi 0, %s131
    %s148 = sphi 0, %s132
    %s156 = sphi 0, %s158
    %s159 = sphi 0, %s156
    %s160 = sphi 0, %s159
    %s176 = sphi 0, %s160
    %s184 = sphi 0, %s186
    %s187 = sphi 0, %s184
    %s188 = sphi 0, %s187
    %s204 = sphi 0, %s188
  $region4: #{gpt_forward.5} parent=0 // loop_header_branch
    %16 = sbr.rel (%p14) target = $region8
  $region5: #{gpt_forward.5} parent=0 // loop_body
    %s18 = ssub.s32 %s13, 1
    %s19 = ssub.s32 %s13, 2
    %s26 = sadd.s32 1, %s21
    %p27 = scmp.ge.s32.totalorder %s26, 1
    %s28 = scalar_select %p27, 0, %s26
    %s29 = sadd.s32 1, %s20
    %s30 = scalar_select %p27, %s29, %s20
    %p31 = scmp.ge.s32.totalorder %s30, 4
    %s32 = scalar_select %p31, 0, %s30
    %s33 = ssub.s32 %s20, %s32
    %s34 = ssub.s32 %s21, %s28
    %s35 = sor.u32 %s33, %s34
    %p36 = scmp.eq.s32.totalorder %s35, 0
    %s38 = sadd.s32 %s37, 1
    %s39 = scalar_select %p36, %s37, %s38
    %p42 = pneg %p36
    %p43 = scmp.eq.s32.totalorder %s13, 3
    %p44 = por %p42, %p43
    %p45 = scmp.ne.s32.totalorder %s37, %s40
    %p46 = scmp.eq.s32.totalorder %s13, 0
    %p47 = por %p45, %p46
    %p48 = scmp.ne.s32.totalorder %s37, %s40
    %p49 = scmp.eq.s32.totalorder %s18, 3
    %p50 = por %p48, %p49
    %p51 = scmp.ne.s32.totalorder %s40, %s41
    %p52 = scmp.eq.s32.totalorder %s18, 0
    %p53 = por %p51, %p52
    %p54 = scmp.ne.s32.totalorder %s40, %s41
    %p55 = scmp.eq.s32.totalorder %s19, 3
    %p56 = por %p54, %p55
    %p58 = scmp.ne.s32.totalorder %s41, %s57
    %p59 = scmp.eq.s32.totalorder %s19, 0
    %p60 = por %p58, %p59
    %s62 = sadd.s32 %s61, 1
    %p65 = scmp.eq.s32.totalorder %s13, 3
    %p66 = scmp.ne.s32.totalorder %s61, %s63
    %p67 = scmp.eq.s32.totalorder %s13, 0
    %p68 = por %p66, %p67
    %p69 = scmp.ne.s32.totalorder %s61, %s63
    %p70 = scmp.eq.s32.totalorder %s18, 3
    %p71 = por %p69, %p70
    %p72 = scmp.ne.s32.totalorder %s63, %s64
    %p73 = scmp.eq.s32.totalorder %s18, 0
    %p74 = por %p72, %p73
    %p75 = scmp.ne.s32.totalorder %s63, %s64
    %p76 = scmp.eq.s32.totalorder %s19, 3
    %p77 = por %p75, %p76
    %p79 = scmp.ne.s32.totalorder %s64, %s78
    %p80 = scmp.eq.s32.totalorder %s19, 0
    %p81 = por %p79, %p80
    %s83 = sadd.s32 %s82, 1
    %p86 = scmp.eq.s32.totalorder %s13, 3
    %p87 = scmp.ne.s32.totalorder %s82, %s84
    %p88 = scmp.eq.s32.totalorder %s13, 0
    %p89 = por %p87, %p88
    %p90 = scmp.ne.s32.totalorder %s82, %s84
    %p91 = scmp.eq.s32.totalorder %s18, 3
    %p92 = por %p90, %p91
    %p93 = scmp.ne.s32.totalorder %s84, %s85
    %p94 = scmp.eq.s32.totalorder %s18, 0
    %p95 = por %p93, %p94
    %p96 = scmp.ne.s32.totalorder %s84, %s85
    %p97 = scmp.eq.s32.totalorder %s19, 3
    %p98 = por %p96, %p97
    %p100 = scmp.ne.s32.totalorder %s85, %s99
    %p101 = scmp.eq.s32.totalorder %s19, 0
    %p102 = por %p100, %p101
    %s104 = sadd.s32 %s103, 1
    %p107 = scmp.eq.s32.totalorder %s13, 3
    %p108 = scmp.ne.s32.totalorder %s103, %s105
    %p109 = scmp.eq.s32.totalorder %s13, 0
    %p110 = por %p108, %p109
    %p111 = scmp.ne.s32.totalorder %s103, %s105
    %p112 = scmp.eq.s32.totalorder %s18, 3
    %p113 = por %p111, %p112
    %p114 = scmp.ne.s32.totalorder %s105, %s106
    %p115 = scmp.eq.s32.totalorder %s18, 0
    %p116 = por %p114, %p115
    %p117 = scmp.ne.s32.totalorder %s105, %s106
    %p118 = scmp.eq.s32.totalorder %s19, 3
    %p119 = por %p117, %p118
    %p121 = scmp.ne.s32.totalorder %s106, %s120
    %p122 = scmp.eq.s32.totalorder %s19, 0
    %p123 = por %p121, %p122
    %s124 = ssub.s32 %s20, %s32
    %s125 = ssub.s32 %s21, %s28
    %s126 = sor.u32 %s124, %s125
    %p127 = scmp.eq.s32.totalorder %s126, 0
    %s129 = sadd.s32 %s128, 1
    %s130 = scalar_select %p127, %s128, %s129
    %p133 = pneg %p127
    %p134 = scmp.eq.s32.totalorder %s13, 3
    %p135 = por %p133, %p134
    %p136 = scmp.ne.s32.totalorder %s128, %s131
    %p137 = scmp.eq.s32.totalorder %s13, 0
    %p138 = por %p136, %p137
    %p139 = scmp.ne.s32.totalorder %s128, %s131
    %p140 = scmp.eq.s32.totalorder %s18, 3
    %p141 = por %p139, %p140
    %p142 = scmp.ne.s32.totalorder %s131, %s132
    %p143 = scmp.eq.s32.totalorder %s18, 0
    %p144 = por %p142, %p143
    %p145 = scmp.ne.s32.totalorder %s131, %s132
    %p146 = scmp.eq.s32.totalorder %s19, 3
    %p147 = por %p145, %p146
    %p149 = scmp.ne.s32.totalorder %s132, %s148
    %p150 = scmp.eq.s32.totalorder %s19, 0
    %p151 = por %p149, %p150
    %s152 = ssub.s32 %s20, %s32
    %s153 = ssub.s32 %s21, %s28
    %s154 = sor.u32 %s152, %s153
    %p155 = scmp.eq.s32.totalorder %s154, 0
    %s157 = sadd.s32 %s156, 1
    %s158 = scalar_select %p155, %s156, %s157
    %p161 = pneg %p155
    %p162 = scmp.eq.s32.totalorder %s13, 3
    %p163 = por %p161, %p162
    %p164 = scmp.ne.s32.totalorder %s156, %s159
    %p165 = scmp.eq.s32.totalorder %s13, 0
    %p166 = por %p164, %p165
    %p167 = scmp.ne.s32.totalorder %s156, %s159
    %p168 = scmp.eq.s32.totalorder %s18, 3
    %p169 = por %p167, %p168
    %p170 = scmp.ne.s32.totalorder %s159, %s160
    %p171 = scmp.eq.s32.totalorder %s18, 0
    %p172 = por %p170, %p171
    %p173 = scmp.ne.s32.totalorder %s159, %s160
    %p174 = scmp.eq.s32.totalorder %s19, 3
    %p175 = por %p173, %p174
    %p177 = scmp.ne.s32.totalorder %s160, %s176
    %p178 = scmp.eq.s32.totalorder %s19, 0
    %p179 = por %p177, %p178
    %s180 = ssub.s32 %s20, %s32
    %s181 = ssub.s32 %s21, %s28
    %s182 = sor.u32 %s180, %s181
    %p183 = scmp.eq.s32.totalorder %s182, 0
    %s185 = sadd.s32 %s184, 1
    %s186 = scalar_select %p183, %s184, %s185
    %p189 = pneg %p183
    %p190 = scmp.eq.s32.totalorder %s13, 3
    %p191 = por %p189, %p190
    %p192 = scmp.ne.s32.totalorder %s184, %s187
    %p193 = scmp.eq.s32.totalorder %s13, 0
    %p194 = por %p192, %p193
    %p195 = scmp.ne.s32.totalorder %s184, %s187
    %p196 = scmp.eq.s32.totalorder %s18, 3
    %p197 = por %p195, %p196
    %p198 = scmp.ne.s32.totalorder %s187, %s188
    %p199 = scmp.eq.s32.totalorder %s18, 0
    %p200 = por %p198, %p199
    %p201 = scmp.ne.s32.totalorder %s187, %s188
    %p202 = scmp.eq.s32.totalorder %s19, 3
    %p203 = por %p201, %p202
    %p205 = scmp.ne.s32.totalorder %s188, %s204
    %p206 = scmp.eq.s32.totalorder %s19, 0
    %p207 = por %p205, %p206
    %p208 = scmp.le.s32.totalorder 1, %s13
    %p209 = scmp.lt.s32.totalorder %s13, 5
    %p210 = pnand %p208, %p209
    %p211 = pneg %p210
    // Predicated region
    $region9: #{gpt_forward.5} parent=5 // pred_check
      _
    $region10: #{gpt_forward.5} parent=5 // pred_check_branch
      %213 = sbr.rel (%p210) target = $region12
    $region11: #{gpt_forward.5} parent=5 // pred_region
      %s214 = ssub.s32 %s13, 1
      // Predicated region
      $region13: #{gpt_forward.5} parent=11 // pred_check
        %p215 = pneg %p74
      $region14: #{gpt_forward.5} parent=11 // pred_check_branch
        %217 = sbr.rel (%p215) target = $region16
      $region15: #{gpt_forward.5} parent=11 // pred_region
        _
      $region16: #{gpt_forward.5} parent=11 // pred_fallthru
        _
      // Predicated region
      $region17: #{gpt_forward.5} parent=11 // pred_check
        %p218 = pneg %p95
      $region18: #{gpt_forward.5} parent=11 // pred_check_branch
        %220 = sbr.rel (%p218) target = $region20
      $region19: #{gpt_forward.5} parent=11 // pred_region
        _
      $region20: #{gpt_forward.5} parent=11 // pred_fallthru
        _
      // Predicated region
      $region21: #{gpt_forward.5} parent=11 // pred_check
        %p221 = pneg %p116
      $region22: #{gpt_forward.5} parent=11 // pred_check_branch
        %223 = sbr.rel (%p221) target = $region24
      $region23: #{gpt_forward.5} parent=11 // pred_region
        _
      $region24: #{gpt_forward.5} parent=11 // pred_fallthru
        _
    $region12: #{gpt_forward.5} parent=5 // pred_fallthru
      _
    %p224 = scmp.lt.s32.totalorder %s13, 4
    // Predicated region
    $region25: #{gpt_forward.5} parent=5 // pred_check
      %p225 = pneg %p224
    $region26: #{gpt_forward.5} parent=5 // pred_check_branch
      %227 = sbr.rel (%p225) target = $region28
    $region27: #{gpt_forward.5} parent=5 // pred_region
      // Predicated region
      $region29: #{gpt_forward.5} parent=27 // pred_check
        %p228 = pneg %p47
      $region30: #{gpt_forward.5} parent=27 // pred_check_branch
        %230 = sbr.rel (%p228) target = $region32
      $region31: #{gpt_forward.5} parent=27 // pred_region
        %s231 = smul.u32 16, %s21
        %p232 = scmp.lt.s32.totalorder %s20, 3
        %s233 = scalar_select %p232, %s20, 3
        %p234 = scmp.lt.s32.totalorder %s231, 15
        %s235 = scalar_select %p234, %s231, 15
        %s236 = smul.addr %s233, 16
        %s237 = sadd.s32 %s235, %s236
        %s238 = smul.addr %s237, 4
        %s239 = scalar_lea.vmem %s0, %s238
        %s240 = smul.u32 16, %s21
      $region32: #{gpt_forward.5} parent=27 // pred_fallthru
        _
    $region28: #{gpt_forward.5} parent=5 // pred_fallthru
      _
    %p241 = scmp.le.s32.totalorder 1, %s13
    %p242 = scmp.lt.s32.totalorder %s13, 5
    %p243 = pnand %p241, %p242
    %p244 = pneg %p243
    // Predicated region
    $region33: #{gpt_forward.5} parent=5 // pred_check
      _
    $region34: #{gpt_forward.5} parent=5 // pred_check_branch
      %246 = sbr.rel (%p243) target = $region36
    $region35: #{gpt_forward.5} parent=5 // pred_region
      %s247 = ssub.s32 %s13, 1
      %s248 = smul.u32 16, %s23
      %p249 = scmp.lt.s32.totalorder %s22, 3
      %s250 = scalar_select %p249, %s22, 3
      %p251 = scmp.lt.s32.totalorder %s248, 15
      %s252 = scalar_select %p251, %s248, 15
      %s253 = smul.addr %s250, 16
      %s254 = sadd.s32 %s252, %s253
      %s255 = smul.addr %s254, 4
      %s256 = scalar_lea.vmem %s0, %s255
      %p257 = pneg %p53
      %p258 = pneg %p50
      %p259 = pneg %p74
      %p260 = pneg %p71
      %p261 = pneg %p95
      %p262 = pneg %p92
      %p263 = pneg %p116
      %p264 = pneg %p113
      %p265 = pneg %p144
      %p266 = pneg %p141
      %s267 = smul.u32 16, %s23
      %p268 = scmp.lt.s32.totalorder %s22, 3
      %s269 = scalar_select %p268, %s22, 3
      %p270 = scmp.lt.s32.totalorder %s267, 15
      %s271 = scalar_select %p270, %s267, 15
      %s272 = smul.addr %s269, 32
      %s273 = sadd.s32 %s271, %s272
      %s274 = smul.addr %s273, 4
      %s275 = scalar_lea.vmem %s4, %s274
      %p276 = pneg %p172
      %p277 = pneg %p169
      %s278 = smul.u32 16, %s23
      %p279 = scmp.lt.s32.totalorder %s22, 3
      %s280 = scalar_select %p279, %s22, 3
      %p281 = scmp.lt.s32.totalorder %s278, 15
      %s282 = scalar_select %p281, %s278, 15
      %s283 = smul.addr %s280, 32
      %s284 = sadd.s32 %s282, %s283
      %s285 = smul.addr %s284, 4
      %s286 = scalar_lea.vmem %s5, %s285
      %p287 = pneg %p200
      %p288 = pneg %p197
      %s289 = smul.u32 16, %s23
      %p290 = scmp.lt.s32.totalorder %s22, 3
      %s291 = scalar_select %p290, %s22, 3
      %p292 = scmp.lt.s32.totalorder %s289, 15
      %s293 = scalar_select %p292, %s289, 15
      %s294 = smul.addr %s291, 32
      %s295 = sadd.s32 %s293, %s294
      %s296 = smul.addr %s295, 4
      %s297 = scalar_lea.vmem %s6, %s296
      %s298 = smul.u32 16, %s23
      %p299 = scmp.lt.s32.totalorder %s22, 3
      %s300 = scalar_select %p299, %s22, 3
      %p301 = scmp.lt.s32.totalorder %s298, 15
      %s302 = scalar_select %p301, %s298, 15
      %s303 = smul.addr %s300, 16
      %s304 = sadd.s32 %s302, %s303
      %s305 = smul.addr %s304, 4
      %s306 = scalar_lea.vmem %s0, %s305
      %s307 = smul.u32 16, %s23
      %s308 = smul.u32 16, %s23
      %p309 = scmp.lt.s32.totalorder %s22, 3
      %s310 = scalar_select %p309, %s22, 3
      %p311 = scmp.lt.s32.totalorder %s308, 15
      %s312 = scalar_select %p311, %s308, 15
      %s313 = smul.addr %s310, 32
      %s314 = sadd.s32 %s312, %s313
      %s315 = smul.addr %s314, 4
      %s316 = scalar_lea.vmem %s4, %s315
      %s317 = smul.u32 16, %s23
      %s318 = smul.u32 16, %s23
      %p319 = scmp.lt.s32.totalorder %s22, 3
      %s320 = scalar_select %p319, %s22, 3
      %p321 = scmp.lt.s32.totalorder %s318, 15
      %s322 = scalar_select %p321, %s318, 15
      %s323 = smul.addr %s320, 32
      %s324 = sadd.s32 %s322, %s323
      %s325 = smul.addr %s324, 4
      %s326 = scalar_lea.vmem %s5, %s325
      %s327 = smul.u32 16, %s23
      %s328 = smul.u32 16, %s23
      %p329 = scmp.lt.s32.totalorder %s22, 3
      %s330 = scalar_select %p329, %s22, 3
      %p331 = scmp.lt.s32.totalorder %s328, 15
      %s332 = scalar_select %p331, %s328, 15
      %s333 = smul.addr %s330, 32
      %s334 = sadd.s32 %s332, %s333
      %s335 = smul.addr %s334, 4
      %s336 = scalar_lea.vmem %s6, %s335
      %s337 = smul.u32 16, %s23
      %v339 = vld [vmem:[%s306] sm:$0xf]
      %v340 = vld [vmem:[%s306 + $0x4] sm:$0xf]
      %v341 = vld [vmem:[%s306 + $0x8] sm:$0xf]
      %v342 = vld [vmem:[%s306 + $0xc] sm:$0xf]
      %v343 = vld [vmem:[%s306 + $0x10] sm:$0xf]
      %v344 = vld [vmem:[%s306 + $0x14] sm:$0xf]
      %v345 = vld [vmem:[%s306 + $0x18] sm:$0xf]
      %v346 = vld [vmem:[%s306 + $0x1c] sm:$0xf]
      %v347 = vld [vmem:[%s306 + $0x20] sm:$0xf]
      %v348 = vld [vmem:[%s306 + $0x24] sm:$0xf]
      %v349 = vld [vmem:[%s306 + $0x28] sm:$0xf]
      %v350 = vld [vmem:[%s306 + $0x2c] sm:$0xf]
      %v351 = vld [vmem:[%s306 + $0x30] sm:$0xf]
      %v352 = vld [vmem:[%s306 + $0x34] sm:$0xf]
      %v353 = vld [vmem:[%s306 + $0x38] sm:$0xf]
      %v354 = vld [vmem:[%s306 + $0x3c] sm:$0xf]
      %v355 = vunpack.c.l.bf16 %v339
      %v356 = vunpack.c.l.bf16 %v340
      %v357 = vunpack.c.l.bf16 %v341
      %v358 = vunpack.c.l.bf16 %v342
      %v359 = vunpack.c.l.bf16 %v343
      %v360 = vunpack.c.l.bf16 %v344
      %v361 = vunpack.c.l.bf16 %v345
      %v362 = vunpack.c.l.bf16 %v346
      %v363 = vunpack.c.l.bf16 %v347
      %v364 = vunpack.c.l.bf16 %v348
      %v365 = vunpack.c.l.bf16 %v349
      %v366 = vunpack.c.l.bf16 %v350
      %v367 = vunpack.c.l.bf16 %v351
      %v368 = vunpack.c.l.bf16 %v352
      %v369 = vunpack.c.l.bf16 %v353
      %v370 = vunpack.c.l.bf16 %v354
      %v371 = vld [vmem:[%s1] sm:$0x1]
      %v372 = vld [vmem:[%s2] sm:$0x1]
      %373 = vadd.xlane.f32.xlu0 %v355
      %v374 = vpop.xlane.xlu0 %373
      %375 = vadd.xlane.f32.xlu0 %v356
      %v376 = vpop.xlane.xlu0 %375
      %377 = vadd.xlane.f32.xlu0 %v357
      %v378 = vpop.xlane.xlu0 %377
      %379 = vadd.xlane.f32.xlu0 %v358
      %v380 = vpop.xlane.xlu0 %379
      %381 = vadd.xlane.f32.xlu0 %v359
      %v382 = vpop.xlane.xlu0 %381
      %383 = vadd.xlane.f32.xlu0 %v360
      %v384 = vpop.xlane.xlu0 %383
      %385 = vadd.xlane.f32.xlu0 %v361
      %v386 = vpop.xlane.xlu0 %385
      %387 = vadd.xlane.f32.xlu0 %v362
      %v388 = vpop.xlane.xlu0 %387
      %389 = vadd.xlane.f32.xlu0 %v363
      %v390 = vpop.xlane.xlu0 %389
      %391 = vadd.xlane.f32.xlu0 %v364
      %v392 = vpop.xlane.xlu0 %391
      %393 = vadd.xlane.f32.xlu0 %v365
      %v394 = vpop.xlane.xlu0 %393
      %395 = vadd.xlane.f32.xlu0 %v366
      %v396 = vpop.xlane.xlu0 %395
      %397 = vadd.xlane.f32.xlu0 %v367
      %v398 = vpop.xlane.xlu0 %397
      %399 = vadd.xlane.f32.xlu0 %v368
      %v400 = vpop.xlane.xlu0 %399
      %401 = vadd.xlane.f32.xlu0 %v369
      %v402 = vpop.xlane.xlu0 %401
      %403 = vadd.xlane.f32.xlu0 %v370
      %v404 = vpop.xlane.xlu0 %403
      %v405 = vrcp.pop 128.0
      %v406 = vmul.f32 %v374, %v405
      %v407 = vmul.f32 %v376, %v405
      %v408 = vmul.f32 %v378, %v405
      %v409 = vmul.f32 %v380, %v405
      %v410 = vmul.f32 %v382, %v405
      %v411 = vmul.f32 %v384, %v405
      %v412 = vmul.f32 %v386, %v405
      %v413 = vmul.f32 %v388, %v405
      %v414 = vmul.f32 %v390, %v405
      %v415 = vmul.f32 %v392, %v405
      %v416 = vmul.f32 %v394, %v405
      %v417 = vmul.f32 %v396, %v405
      %v418 = vmul.f32 %v398, %v405
      %v419 = vmul.f32 %v400, %v405
      %v420 = vmul.f32 %v402, %v405
      %v421 = vmul.f32 %v404, %v405
      %v422 = vsub.f32 %v355, %v406
      %v423 = vsub.f32 %v356, %v407
      %v424 = vsub.f32 %v357, %v408
      %v425 = vsub.f32 %v358, %v409
      %v426 = vsub.f32 %v359, %v410
      %v427 = vsub.f32 %v360, %v411
      %v428 = vsub.f32 %v361, %v412
      %v429 = vsub.f32 %v362, %v413
      %v430 = vsub.f32 %v363, %v414
      %v431 = vsub.f32 %v364, %v415
      %v432 = vsub.f32 %v365, %v416
      %v433 = vsub.f32 %v366, %v417
      %v434 = vsub.f32 %v367, %v418
      %v435 = vsub.f32 %v368, %v419
      %v436 = vsub.f32 %v369, %v420
      %v437 = vsub.f32 %v370, %v421
      %v438 = vmul.f32 %v422, %v422
      %v439 = vmul.f32 %v423, %v423
      %v440 = vmul.f32 %v424, %v424
      %v441 = vmul.f32 %v425, %v425
      %v442 = vmul.f32 %v426, %v426
      %v443 = vmul.f32 %v427, %v427
      %v444 = vmul.f32 %v428, %v428
      %v445 = vmul.f32 %v429, %v429
      %v446 = vmul.f32 %v430, %v430
      %v447 = vmul.f32 %v431, %v431
      %v448 = vmul.f32 %v432, %v432
      %v449 = vmul.f32 %v433, %v433
      %v450 = vmul.f32 %v434, %v434
      %v451 = vmul.f32 %v435, %v435
      %v452 = vmul.f32 %v436, %v436
      %v453 = vmul.f32 %v437, %v437
      %454 = vadd.xlane.f32.xlu0 %v438
      %v455 = vpop.xlane.xlu0 %454
      %456 = vadd.xlane.f32.xlu0 %v439
      %v457 = vpop.xlane.xlu0 %456
      %458 = vadd.xlane.f32.xlu0 %v440
      %v459 = vpop.xlane.xlu0 %458
      %460 = vadd.xlane.f32.xlu0 %v441
      %v461 = vpop.xlane.xlu0 %460
      %462 = vadd.xlane.f32.xlu0 %v442
      %v463 = vpop.xlane.xlu0 %462
      %464 = vadd.xlane.f32.xlu0 %v443
      %v465 = vpop.xlane.xlu0 %464
      %466 = vadd.xlane.f32.xlu0 %v444
      %v467 = vpop.xlane.xlu0 %466
      %468 = vadd.xlane.f32.xlu0 %v445
      %v469 = vpop.xlane.xlu0 %468
      %470 = vadd.xlane.f32.xlu0 %v446
      %v471 = vpop.xlane.xlu0 %470
      %472 = vadd.xlane.f32.xlu0 %v447
      %v473 = vpop.xlane.xlu0 %472
      %474 = vadd.xlane.f32.xlu0 %v448
      %v475 = vpop.xlane.xlu0 %474
      %476 = vadd.xlane.f32.xlu0 %v449
      %v477 = vpop.xlane.xlu0 %476
      %478 = vadd.xlane.f32.xlu0 %v450
      %v479 = vpop.xlane.xlu0 %478
      %480 = vadd.xlane.f32.xlu0 %v451
      %v481 = vpop.xlane.xlu0 %480
      %482 = vadd.xlane.f32.xlu0 %v452
      %v483 = vpop.xlane.xlu0 %482
      %484 = vadd.xlane.f32.xlu0 %v453
      %v485 = vpop.xlane.xlu0 %484
      %v486 = vmul.f32 %v455, %v405
      %v487 = vmul.f32 %v457, %v405
      %v488 = vmul.f32 %v459, %v405
      %v489 = vmul.f32 %v461, %v405
      %v490 = vmul.f32 %v463, %v405
      %v491 = vmul.f32 %v465, %v405
      %v492 = vmul.f32 %v467, %v405
      %v493 = vmul.f32 %v469, %v405
      %v494 = vmul.f32 %v471, %v405
      %v495 = vmul.f32 %v473, %v405
      %v496 = vmul.f32 %v475, %v405
      %v497 = vmul.f32 %v477, %v405
      %v498 = vmul.f32 %v479, %v405
      %v499 = vmul.f32 %v481, %v405
      %v500 = vmul.f32 %v483, %v405
      %v501 = vmul.f32 %v485, %v405
      %v502 = vadd.f32 %v486, 1e-05
      %v503 = vadd.f32 %v487, 1e-05
      %v504 = vadd.f32 %v488, 1e-05
      %v505 = vadd.f32 %v489, 1e-05
      %v506 = vadd.f32 %v490, 1e-05
      %v507 = vadd.f32 %v491, 1e-05
      %v508 = vadd.f32 %v492, 1e-05
      %v509 = vadd.f32 %v493, 1e-05
      %v510 = vadd.f32 %v494, 1e-05
      %v511 = vadd.f32 %v495, 1e-05
      %v512 = vadd.f32 %v496, 1e-05
      %v513 = vadd.f32 %v497, 1e-05
      %v514 = vadd.f32 %v498, 1e-05
      %v515 = vadd.f32 %v499, 1e-05
      %v516 = vadd.f32 %v500, 1e-05
      %v517 = vadd.f32 %v501, 1e-05
      %v518 = vrsqrt.pop %v502
      %v519 = vrsqrt.pop %v503
      %v520 = vrsqrt.pop %v504
      %v521 = vrsqrt.pop %v505
      %v522 = vrsqrt.pop %v506
      %v523 = vrsqrt.pop %v507
      %v524 = vrsqrt.pop %v508
      %v525 = vrsqrt.pop %v509
      %v526 = vrsqrt.pop %v510
      %v527 = vrsqrt.pop %v511
      %v528 = vrsqrt.pop %v512
      %v529 = vrsqrt.pop %v513
      %v530 = vrsqrt.pop %v514
      %v531 = vrsqrt.pop %v515
      %v532 = vrsqrt.pop %v516
      %v533 = vrsqrt.pop %v517
      %v534 = vmul.f32 %v422, %v518
      %v535 = vmul.f32 %v423, %v519
      %v536 = vmul.f32 %v424, %v520
      %v537 = vmul.f32 %v425, %v521
      %v538 = vmul.f32 %v426, %v522
      %v539 = vmul.f32 %v427, %v523
      %v540 = vmul.f32 %v428, %v524
      %v541 = vmul.f32 %v429, %v525
      %v542 = vmul.f32 %v430, %v526
      %v543 = vmul.f32 %v431, %v527
      %v544 = vmul.f32 %v432, %v528
      %v545 = vmul.f32 %v433, %v529
      %v546 = vmul.f32 %v434, %v530
      %v547 = vmul.f32 %v435, %v531
      %v548 = vmul.f32 %v436, %v532
      %v549 = vmul.f32 %v437, %v533
      %v551 = vlaneseq
      %v552 = vshrl.u32 %v551, 7
      %v553 = vsub.s32 0, %v552
      %v554 = vrot.slane %v371, %v553
      %v556 = vmul.f32 %v534, %v554
      %v557 = vmul.f32 %v535, %v554
      %v558 = vmul.f32 %v536, %v554
      %v559 = vmul.f32 %v537, %v554
      %v560 = vmul.f32 %v538, %v554
      %v561 = vmul.f32 %v539, %v554
      %v562 = vmul.f32 %v540, %v554
      %v563 = vmul.f32 %v541, %v554
      %v564 = vmul.f32 %v542, %v554
      %v565 = vmul.f32 %v543, %v554
      %v566 = vmul.f32 %v544, %v554
      %v567 = vmul.f32 %v545, %v554
      %v568 = vmul.f32 %v546, %v554
      %v569 = vmul.f32 %v547, %v554
      %v570 = vmul.f32 %v548, %v554
      %v571 = vmul.f32 %v549, %v554
      %v573 = vlaneseq
      %v574 = vshrl.u32 %v573, 7
      %v575 = vsub.s32 0, %v574
      %v576 = vrot.slane %v372, %v575
      %v578 = vadd.f32 %v556, %v576
      %v579 = vadd.f32 %v557, %v576
      %v580 = vadd.f32 %v558, %v576
      %v581 = vadd.f32 %v559, %v576
      %v582 = vadd.f32 %v560, %v576
      %v583 = vadd.f32 %v561, %v576
      %v584 = vadd.f32 %v562, %v576
      %v585 = vadd.f32 %v563, %v576
      %v586 = vadd.f32 %v564, %v576
      %v587 = vadd.f32 %v565, %v576
      %v588 = vadd.f32 %v566, %v576
      %v589 = vadd.f32 %v567, %v576
      %v590 = vadd.f32 %v568, %v576
      %v591 = vadd.f32 %v569, %v576
      %v592 = vadd.f32 %v570, %v576
      %v593 = vadd.f32 %v571, %v576
      %v594 = vpack.c.bf16 %v579, %v578
      %v595 = vpack.c.bf16 %v581, %v580
      %v596 = vpack.c.bf16 %v583, %v582
      %v597 = vpack.c.bf16 %v585, %v584
      %v598 = vpack.c.bf16 %v587, %v586
      %v599 = vpack.c.bf16 %v589, %v588
      %v600 = vpack.c.bf16 %v591, %v590
      %v601 = vpack.c.bf16 %v593, %v592
      %v602 = vld [vmem:[%s3] sm:$0xff]
      %v603 = vld [vmem:[%s3 + $0x8] sm:$0xf]
      %v604 = vld [vmem:[%s3 + $0xc] sm:$0xff]
      %v605 = vld [vmem:[%s3 + $0x14] sm:$0xf]
      %v606 = vld [vmem:[%s3 + $0x18] sm:$0xff]
      %v607 = vld [vmem:[%s3 + $0x20] sm:$0xf]
      %v608 = vld [vmem:[%s3 + $0x24] sm:$0xff]
      %v609 = vld [vmem:[%s3 + $0x2c] sm:$0xf]
      %v610 = vld [vmem:[%s3 + $0x30] sm:$0xff]
      %v611 = vld [vmem:[%s3 + $0x38] sm:$0xf]
      %v612 = vld [vmem:[%s3 + $0x3c] sm:$0xff]
      %v613 = vld [vmem:[%s3 + $0x44] sm:$0xf]
      %v614 = vld [vmem:[%s3 + $0x48] sm:$0xff]
      %v615 = vld [vmem:[%s3 + $0x50] sm:$0xf]
      %v616 = vld [vmem:[%s3 + $0x54] sm:$0xff]
      %v617 = vld [vmem:[%s3 + $0x5c] sm:$0xf]
      %v618 = vld [vmem:[%s3 + $0x60] sm:$0xff]
      %v619 = vld [vmem:[%s3 + $0x68] sm:$0xf]
      %v620 = vld [vmem:[%s3 + $0x6c] sm:$0xff]
      %v621 = vld [vmem:[%s3 + $0x74] sm:$0xf]
      %v622 = vld [vmem:[%s3 + $0x78] sm:$0xff]
      %v623 = vld [vmem:[%s3 + $0x80] sm:$0xf]
      %v624 = vld [vmem:[%s3 + $0x84] sm:$0xff]
      %v625 = vld [vmem:[%s3 + $0x8c] sm:$0xf]
      %v626 = vld [vmem:[%s3 + $0x90] sm:$0xff]
      %v627 = vld [vmem:[%s3 + $0x98] sm:$0xf]
      %v628 = vld [vmem:[%s3 + $0x9c] sm:$0xff]
      %v629 = vld [vmem:[%s3 + $0xa4] sm:$0xf]
      %v630 = vld [vmem:[%s3 + $0xa8] sm:$0xff]
      %v631 = vld [vmem:[%s3 + $0xb0] sm:$0xf]
      %v632 = vld [vmem:[%s3 + $0xb4] sm:$0xff]
      %v633 = vld [vmem:[%s3 + $0xbc] sm:$0xf]
      %v666 = vunpack.c.l.b16 %v602
      %v667 = vunpack.c.h.b16 %v602
      %v668 = vunpack.c.l.b16 %v603
      %v669 = vunpack.c.l.b16 %v604
      %v670 = vunpack.c.h.b16 %v604
      %v671 = vunpack.c.l.b16 %v605
      %v672 = vunpack.c.l.b16 %v606
      %v673 = vunpack.c.h.b16 %v606
      %v674 = vunpack.c.l.b16 %v607
      %v675 = vunpack.c.l.b16 %v608
      %v676 = vunpack.c.h.b16 %v608
      %v677 = vunpack.c.l.b16 %v609
      %v678 = vunpack.c.l.b16 %v610
      %v679 = vunpack.c.h.b16 %v610
      %v680 = vunpack.c.l.b16 %v611
      %v681 = vunpack.c.l.b16 %v612
      %v682 = vunpack.c.h.b16 %v612
      %v683 = vunpack.c.l.b16 %v613
      %v684 = vunpack.c.l.b16 %v614
      %v685 = vunpack.c.h.b16 %v614
      %v686 = vunpack.c.l.b16 %v615
      %v687 = vunpack.c.l.b16 %v616
      %v688 = vunpack.c.h.b16 %v616
      %v689 = vunpack.c.l.b16 %v617
      %v690 = vunpack.c.l.b16 %v618
      %v691 = vunpack.c.h.b16 %v618
      %v692 = vunpack.c.l.b16 %v619
      %v693 = vunpack.c.l.b16 %v620
      %v694 = vunpack.c.h.b16 %v620
      %v695 = vunpack.c.l.b16 %v621
      %v696 = vunpack.c.l.b16 %v622
      %v697 = vunpack.c.h.b16 %v622
      %v698 = vunpack.c.l.b16 %v623
      %v699 = vunpack.c.l.b16 %v624
      %v700 = vunpack.c.h.b16 %v624
      %v701 = vunpack.c.l.b16 %v625
      %v702 = vunpack.c.l.b16 %v626
      %v703 = vunpack.c.h.b16 %v626
      %v704 = vunpack.c.l.b16 %v627
      %v705 = vunpack.c.l.b16 %v628
      %v706 = vunpack.c.h.b16 %v628
      %v707 = vunpack.c.l.b16 %v629
      %v708 = vunpack.c.l.b16 %v630
      %v709 = vunpack.c.h.b16 %v630
      %v710 = vunpack.c.l.b16 %v631
      %v711 = vunpack.c.l.b16 %v632
      %v712 = vunpack.c.h.b16 %v632
      %v713 = vunpack.c.l.b16 %v633
      %v714 = vpack.c.b16 %v669, %v666
      %v715 = vpack.c.b16 %v670, %v667
      %v716 = vpack.c.b16 %v671, %v668
      %v717 = vpack.c.b16 %v675, %v672
      %v718 = vpack.c.b16 %v676, %v673
      %v719 = vpack.c.b16 %v677, %v674
      %v720 = vpack.c.b16 %v681, %v678
      %v721 = vpack.c.b16 %v682, %v679
      %v722 = vpack.c.b16 %v683, %v680
      %v723 = vpack.c.b16 %v687, %v684
      %v724 = vpack.c.b16 %v688, %v685
      %v725 = vpack.c.b16 %v689, %v686
      %v726 = vpack.c.b16 %v693, %v690
      %v727 = vpack.c.b16 %v694, %v691
      %v728 = vpack.c.b16 %v695, %v692
      %v729 = vpack.c.b16 %v699, %v696
      %v730 = vpack.c.b16 %v700, %v697
      %v731 = vpack.c.b16 %v701, %v698
      %v732 = vpack.c.b16 %v705, %v702
      %v733 = vpack.c.b16 %v706, %v703
      %v734 = vpack.c.b16 %v707, %v704
      %v735 = vpack.c.b16 %v711, %v708
      %v736 = vpack.c.b16 %v712, %v709
      %v737 = vpack.c.b16 %v713, %v710
      %762 = vmatprep.subr.bf16.mxu0 %v736
      %763 = vmatpush1.bf16.msra.mxu0 %v735
      %764 = vmatprep.subr.bf16.mxu0 %v733
      %765 = vmatpush1.bf16.msra.mxu0 %v732
      %766 = vmatprep.subr.bf16.mxu0 %v730
      %767 = vmatpush1.bf16.msra.mxu0 %v729
      %768 = vmatprep.subr.bf16.mxu0 %v727
      %769 = vmatpush1.bf16.msra.mxu0 %v726
      %770 = vmatprep.subr.bf16.mxu0 %v724
      %771 = vmatpush1.bf16.msra.mxu0 %v723
      %772 = vmatprep.subr.bf16.mxu0 %v721
      %773 = vmatpush1.bf16.msra.mxu0 %v720
      %774 = vmatprep.subr.bf16.mxu0 %v718
      %775 = vmatpush1.bf16.msra.mxu0 %v717
      %776 = vmatprep.subr.bf16.mxu0 %v715
      %777 = vmatpush1.bf16.msra.mxu0 %v714
      %778 = vmatprep.subr.bf16.mxu0 0
      %779 = vmatpush2.bf16.msra.mxu0 0
      %780 = vmatprep.subr.bf16.mxu0 0
      %781 = vmatpush2.bf16.msra.mxu0 0
      %782 = vmatprep.subr.bf16.mxu0 0
      %783 = vmatpush2.bf16.msra.mxu0 0
      %784 = vmatprep.subr.bf16.mxu0 0
      %785 = vmatpush2.bf16.msra.mxu0 0
      %786 = vmatprep.subr.bf16.mxu0 0
      %787 = vmatpush2.bf16.msra.mxu0 0
      %788 = vmatprep.subr.bf16.mxu0 0
      %789 = vmatpush2.bf16.msra.mxu0 0
      %790 = vmatprep.subr.bf16.mxu0 0
      %791 = vmatpush2.bf16.msra.mxu0 0
      %792 = vmatprep.subr.bf16.mxu0 0
      %793 = vmatpush2.bf16.msra.mxu0 0
      %794 = vmatprep.mubr.bf16.mxu0 0
      %795 = vmatmul.mubr.bf16.gmra.mxu0 %v594
      %v796 = vpop.f32.mrf.mxu0
      %v797 = vadd.f32 0.0, %v796
      %v798 = vpop.f32.mrf.mxu0
      %v799 = vadd.f32 0.0, %v798
      %v800 = vpop.f32.mrf.mxu0
      %v801 = vadd.f32 0.0, %v800
      %v802 = vpop.f32.mrf.mxu0
      %v803 = vadd.f32 0.0, %v802
      %804 = vmatprep.mubr.bf16.mxu0 0
      %805 = vmatmul.mubr.bf16.gmra.mxu0 %v595
      %v806 = vpop.f32.mrf.mxu0
      %v807 = vadd.f32 0.0, %v806
      %v808 = vpop.f32.mrf.mxu0
      %v809 = vadd.f32 0.0, %v808
      %v810 = vpop.f32.mrf.mxu0
      %v811 = vadd.f32 0.0, %v810
      %v812 = vpop.f32.mrf.mxu0
      %v813 = vadd.f32 0.0, %v812
      %814 = vmatprep.mubr.bf16.mxu0 0
      %815 = vmatmul.mubr.bf16.gmra.mxu0 %v596
      %v816 = vpop.f32.mrf.mxu0
      %v817 = vadd.f32 0.0, %v816
      %v818 = vpop.f32.mrf.mxu0
      %v819 = vadd.f32 0.0, %v818
      %v820 = vpop.f32.mrf.mxu0
      %v821 = vadd.f32 0.0, %v820
      %v822 = vpop.f32.mrf.mxu0
      %v823 = vadd.f32 0.0, %v822
      %824 = vmatprep.mubr.bf16.mxu0 0
      %825 = vmatmul.mubr.bf16.gmra.mxu0 %v597
      %v826 = vpop.f32.mrf.mxu0
      %v827 = vadd.f32 0.0, %v826
      %v828 = vpop.f32.mrf.mxu0
      %v829 = vadd.f32 0.0, %v828
      %v830 = vpop.f32.mrf.mxu0
      %v831 = vadd.f32 0.0, %v830
      %v832 = vpop.f32.mrf.mxu0
      %v833 = vadd.f32 0.0, %v832
      %834 = vmatprep.mubr.bf16.mxu0 0
      %835 = vmatmul.mubr.bf16.gmra.mxu0 %v598
      %v836 = vpop.f32.mrf.mxu0
      %v837 = vadd.f32 0.0, %v836
      %v838 = vpop.f32.mrf.mxu0
      %v839 = vadd.f32 0.0, %v838
      %v840 = vpop.f32.mrf.mxu0
      %v841 = vadd.f32 0.0, %v840
      %v842 = vpop.f32.mrf.mxu0
      %v843 = vadd.f32 0.0, %v842
      %844 = vmatprep.mubr.bf16.mxu0 0
      %845 = vmatmul.mubr.bf16.gmra.mxu0 %v599
      %v846 = vpop.f32.mrf.mxu0
      %v847 = vadd.f32 0.0, %v846
      %v848 = vpop.f32.mrf.mxu0
      %v849 = vadd.f32 0.0, %v848
      %v850 = vpop.f32.mrf.mxu0
      %v851 = vadd.f32 0.0, %v850
      %v852 = vpop.f32.mrf.mxu0
      %v853 = vadd.f32 0.0, %v852
      %854 = vmatprep.mubr.bf16.mxu0 0
      %855 = vmatmul.mubr.bf16.gmra.mxu0 %v600
      %v856 = vpop.f32.mrf.mxu0
      %v857 = vadd.f32 0.0, %v856
      %v858 = vpop.f32.mrf.mxu0
      %v859 = vadd.f32 0.0, %v858
      %v860 = vpop.f32.mrf.mxu0
      %v861 = vadd.f32 0.0, %v860
      %v862 = vpop.f32.mrf.mxu0
      %v863 = vadd.f32 0.0, %v862
      %864 = vmatprep.mubr.bf16.mxu0 0
      %865 = vmatmul.mubr.bf16.gmra.mxu0 %v601
      %v866 = vpop.f32.mrf.mxu0
      %v867 = vadd.f32 0.0, %v866
      %v868 = vpop.f32.mrf.mxu0
      %v869 = vadd.f32 0.0, %v868
      %v870 = vpop.f32.mrf.mxu0
      %v871 = vadd.f32 0.0, %v870
      %v872 = vpop.f32.mrf.mxu0
      %v873 = vadd.f32 0.0, %v872
      %874 = vdwg.mxu0
      %875 = vmatprep.subr.bf16.mxu0 0
      %876 = vmatpush1.bf16.msra.mxu0 %v737
      %877 = vmatprep.subr.bf16.mxu0 0
      %878 = vmatpush1.bf16.msra.mxu0 %v734
      %879 = vmatprep.subr.bf16.mxu0 0
      %880 = vmatpush1.bf16.msra.mxu0 %v731
      %881 = vmatprep.subr.bf16.mxu0 0
      %882 = vmatpush1.bf16.msra.mxu0 %v728
      %883 = vmatprep.subr.bf16.mxu0 0
      %884 = vmatpush1.bf16.msra.mxu0 %v725
      %885 = vmatprep.subr.bf16.mxu0 0
      %886 = vmatpush1.bf16.msra.mxu0 %v722
      %887 = vmatprep.subr.bf16.mxu0 0
      %888 = vmatpush1.bf16.msra.mxu0 %v719
      %889 = vmatprep.subr.bf16.mxu0 0
      %890 = vmatpush1.bf16.msra.mxu0 %v716
      %891 = vmatprep.subr.bf16.mxu0 0
      %892 = vmatpush2.bf16.msra.mxu0 0
      %893 = vmatprep.subr.bf16.mxu0 0
      %894 = vmatpush2.bf16.msra.mxu0 0
      %895 = vmatprep.subr.bf16.mxu0 0
      %896 = vmatpush2.bf16.msra.mxu0 0
      %897 = vmatprep.subr.bf16.mxu0 0
      %898 = vmatpush2.bf16.msra.mxu0 0
      %899 = vmatprep.subr.bf16.mxu0 0
      %900 = vmatpush2.bf16.msra.mxu0 0
      %901 = vmatprep.subr.bf16.mxu0 0
      %902 = vmatpush2.bf16.msra.mxu0 0
      %903 = vmatprep.subr.bf16.mxu0 0
      %904 = vmatpush2.bf16.msra.mxu0 0
      %905 = vmatprep.subr.bf16.mxu0 0
      %906 = vmatpush2.bf16.msra.mxu0 0
      %907 = vmatprep.mubr.bf16.mxu0 0
      %908 = vmatmul.mubr.bf16.gmra.mxu0 %v594
      %v909 = vpop.f32.mrf.mxu0
      %v910 = vadd.f32 0.0, %v909
      %v911 = vpop.f32.mrf.mxu0
      %v912 = vpop.f32.mrf.mxu0
      %v913 = vadd.f32 0.0, %v912
      %v914 = vpop.f32.mrf.mxu0
      %915 = vmatprep.mubr.bf16.mxu0 0
      %916 = vmatmul.mubr.bf16.gmra.mxu0 %v595
      %v917 = vpop.f32.mrf.mxu0
      %v918 = vadd.f32 0.0, %v917
      %v919 = vpop.f32.mrf.mxu0
      %v920 = vpop.f32.mrf.mxu0
      %v921 = vadd.f32 0.0, %v920
      %v922 = vpop.f32.mrf.mxu0
      %923 = vmatprep.mubr.bf16.mxu0 0
      %924 = vmatmul.mubr.bf16.gmra.mxu0 %v596
      %v925 = vpop.f32.mrf.mxu0
      %v926 = vadd.f32 0.0, %v925
      %v927 = vpop.f32.mrf.mxu0
      %v928 = vpop.f32.mrf.mxu0
      %v929 = vadd.f32 0.0, %v928
      %v930 = vpop.f32.mrf.mxu0
      %931 = vmatprep.mubr.bf16.mxu0 0
      %932 = vmatmul.mubr.bf16.gmra.mxu0 %v597
      %v933 = vpop.f32.mrf.mxu0
      %v934 = vadd.f32 0.0, %v933
      %v935 = vpop.f32.mrf.mxu0
      %v936 = vpop.f32.mrf.mxu0
      %v937 = vadd.f32 0.0, %v936
      %v938 = vpop.f32.mrf.mxu0
      %939 = vmatprep.mubr.bf16.mxu0 0
      %940 = vmatmul.mubr.bf16.gmra.mxu0 %v598
      %v941 = vpop.f32.mrf.mxu0
      %v942 = vadd.f32 0.0, %v941
      %v943 = vpop.f32.mrf.mxu0
      %v944 = vpop.f32.mrf.mxu0
      %v945 = vadd.f32 0.0, %v944
      %v946 = vpop.f32.mrf.mxu0
      %947 = vmatprep.mubr.bf16.mxu0 0
      %948 = vmatmul.mubr.bf16.gmra.mxu0 %v599
      %v949 = vpop.f32.mrf.mxu0
      %v950 = vadd.f32 0.0, %v949
      %v951 = vpop.f32.mrf.mxu0
      %v952 = vpop.f32.mrf.mxu0
      %v953 = vadd.f32 0.0, %v952
      %v954 = vpop.f32.mrf.mxu0
      %955 = vmatprep.mubr.bf16.mxu0 0
      %956 = vmatmul.mubr.bf16.gmra.mxu0 %v600
      %v957 = vpop.f32.mrf.mxu0
      %v958 = vadd.f32 0.0, %v957
      %v959 = vpop.f32.mrf.mxu0
      %v960 = vpop.f32.mrf.mxu0
      %v961 = vadd.f32 0.0, %v960
      %v962 = vpop.f32.mrf.mxu0
      %963 = vmatprep.mubr.bf16.mxu0 0
      %964 = vmatmul.mubr.bf16.gmra.mxu0 %v601
      %v965 = vpop.f32.mrf.mxu0
      %v966 = vadd.f32 0.0, %v965
      %v967 = vpop.f32.mrf.mxu0
      %v968 = vpop.f32.mrf.mxu0
      %v969 = vadd.f32 0.0, %v968
      %v970 = vpop.f32.mrf.mxu0
      %971 = vdwg.mxu0
      %v972 = vpack.c.bf16 %v801, %v797
      %v973 = vpack.c.bf16 %v803, %v799
      %v974 = vpack.c.bf16 %v913, %v910
      %v975 = vpack.c.bf16 %v811, %v807
      %v976 = vpack.c.bf16 %v813, %v809
      %v977 = vpack.c.bf16 %v921, %v918
      %v978 = vpack.c.bf16 %v821, %v817
      %v979 = vpack.c.bf16 %v823, %v819
      %v980 = vpack.c.bf16 %v929, %v926
      %v981 = vpack.c.bf16 %v831, %v827
      %v982 = vpack.c.bf16 %v833, %v829
      %v983 = vpack.c.bf16 %v937, %v934
      %v984 = vpack.c.bf16 %v841, %v837
      %v985 = vpack.c.bf16 %v843, %v839
      %v986 = vpack.c.bf16 %v945, %v942
      %v987 = vpack.c.bf16 %v851, %v847
      %v988 = vpack.c.bf16 %v853, %v849
      %v989 = vpack.c.bf16 %v953, %v950
      %v990 = vpack.c.bf16 %v861, %v857
      %v991 = vpack.c.bf16 %v863, %v859
      %v992 = vpack.c.bf16 %v961, %v958
      %v993 = vpack.c.bf16 %v871, %v867
      %v994 = vpack.c.bf16 %v873, %v869
      %v995 = vpack.c.bf16 %v969, %v966
      %v1004 = vunpack.c.l.b16 %v972
      %v1005 = vunpack.c.h.b16 %v972
      %v1006 = vunpack.c.l.b16 %v975
      %v1007 = vunpack.c.h.b16 %v975
      %v1008 = vunpack.c.l.b16 %v978
      %v1009 = vunpack.c.h.b16 %v978
      %v1010 = vunpack.c.l.b16 %v981
      %v1011 = vunpack.c.h.b16 %v981
      %v1012 = vunpack.c.l.b16 %v984
      %v1013 = vunpack.c.h.b16 %v984
      %v1014 = vunpack.c.l.b16 %v987
      %v1015 = vunpack.c.h.b16 %v987
      %v1016 = vunpack.c.l.b16 %v990
      %v1017 = vunpack.c.h.b16 %v990
      %v1018 = vunpack.c.l.b16 %v993
      %v1019 = vunpack.c.h.b16 %v993
      %v1020 = vpack.c.b16 %v1004, %v1004
      %v1021 = vpack.c.b16 %v1005, %v1005
      %v1022 = vpack.c.b16 %v1006, %v1006
      %v1023 = vpack.c.b16 %v1007, %v1007
      %v1024 = vpack.c.b16 %v1008, %v1008
      %v1025 = vpack.c.b16 %v1009, %v1009
      %v1026 = vpack.c.b16 %v1010, %v1010
      %v1027 = vpack.c.b16 %v1011, %v1011
      %v1028 = vpack.c.b16 %v1012, %v1012
      %v1029 = vpack.c.b16 %v1013, %v1013
      %v1030 = vpack.c.b16 %v1014, %v1014
      %v1031 = vpack.c.b16 %v1015, %v1015
      %v1032 = vpack.c.b16 %v1016, %v1016
      %v1033 = vpack.c.b16 %v1017, %v1017
      %v1034 = vpack.c.b16 %v1018, %v1018
      %v1035 = vpack.c.b16 %v1019, %v1019
      %vm1052 = vcmask 519168
      %1053 = vst.msk [vmem:[%s316] sm:$0xf] %vm1052, %v1020
      %1054 = vst.msk [vmem:[%s316 + $0x4] sm:$0xf] %vm1052, %v1021
      %1055 = vst.msk [vmem:[%s316 + $0x8] sm:$0xf] %vm1052, %v1022
      %1056 = vst.msk [vmem:[%s316 + $0xc] sm:$0xf] %vm1052, %v1023
      %1057 = vst.msk [vmem:[%s316 + $0x10] sm:$0xf] %vm1052, %v1024
      %1058 = vst.msk [vmem:[%s316 + $0x14] sm:$0xf] %vm1052, %v1025
      %1059 = vst.msk [vmem:[%s316 + $0x18] sm:$0xf] %vm1052, %v1026
      %1060 = vst.msk [vmem:[%s316 + $0x1c] sm:$0xf] %vm1052, %v1027
      %1061 = vst.msk [vmem:[%s316 + $0x20] sm:$0xf] %vm1052, %v1028
      %1062 = vst.msk [vmem:[%s316 + $0x24] sm:$0xf] %vm1052, %v1029
      %1063 = vst.msk [vmem:[%s316 + $0x28] sm:$0xf] %vm1052, %v1030
      %1064 = vst.msk [vmem:[%s316 + $0x2c] sm:$0xf] %vm1052, %v1031
      %1065 = vst.msk [vmem:[%s316 + $0x30] sm:$0xf] %vm1052, %v1032
      %1066 = vst.msk [vmem:[%s316 + $0x34] sm:$0xf] %vm1052, %v1033
      %1067 = vst.msk [vmem:[%s316 + $0x38] sm:$0xf] %vm1052, %v1034
      %1068 = vst.msk [vmem:[%s316 + $0x3c] sm:$0xf] %vm1052, %v1035
      %v1077 = vunpack.c.l.b16 %v973
      %v1078 = vunpack.c.h.b16 %v973
      %v1079 = vunpack.c.l.b16 %v976
      %v1080 = vunpack.c.h.b16 %v976
      %v1081 = vunpack.c.l.b16 %v979
      %v1082 = vunpack.c.h.b16 %v979
      %v1083 = vunpack.c.l.b16 %v982
      %v1084 = vunpack.c.h.b16 %v982
      %v1085 = vunpack.c.l.b16 %v985
      %v1086 = vunpack.c.h.b16 %v985
      %v1087 = vunpack.c.l.b16 %v988
      %v1088 = vunpack.c.h.b16 %v988
      %v1089 = vunpack.c.l.b16 %v991
      %v1090 = vunpack.c.h.b16 %v991
      %v1091 = vunpack.c.l.b16 %v994
      %v1092 = vunpack.c.h.b16 %v994
      %v1093 = vpack.c.b16 %v1077, %v1077
      %v1094 = vpack.c.b16 %v1078, %v1078
      %v1095 = vpack.c.b16 %v1079, %v1079
      %v1096 = vpack.c.b16 %v1080, %v1080
      %v1097 = vpack.c.b16 %v1081, %v1081
      %v1098 = vpack.c.b16 %v1082, %v1082
      %v1099 = vpack.c.b16 %v1083, %v1083
      %v1100 = vpack.c.b16 %v1084, %v1084
      %v1101 = vpack.c.b16 %v1085, %v1085
      %v1102 = vpack.c.b16 %v1086, %v1086
      %v1103 = vpack.c.b16 %v1087, %v1087
      %v1104 = vpack.c.b16 %v1088, %v1088
      %v1105 = vpack.c.b16 %v1089, %v1089
      %v1106 = vpack.c.b16 %v1090, %v1090
      %v1107 = vpack.c.b16 %v1091, %v1091
      %v1108 = vpack.c.b16 %v1092, %v1092
      %1125 = vst.msk [vmem:[%s326] sm:$0xf] %vm1052, %v1093
      %1126 = vst.msk [vmem:[%s326 + $0x4] sm:$0xf] %vm1052, %v1094
      %1127 = vst.msk [vmem:[%s326 + $0x8] sm:$0xf] %vm1052, %v1095
      %1128 = vst.msk [vmem:[%s326 + $0xc] sm:$0xf] %vm1052, %v1096
      %1129 = vst.msk [vmem:[%s326 + $0x10] sm:$0xf] %vm1052, %v1097
      %1130 = vst.msk [vmem:[%s326 + $0x14] sm:$0xf] %vm1052, %v1098
      %1131 = vst.msk [vmem:[%s326 + $0x18] sm:$0xf] %vm1052, %v1099
      %1132 = vst.msk [vmem:[%s326 + $0x1c] sm:$0xf] %vm1052, %v1100
      %1133 = vst.msk [vmem:[%s326 + $0x20] sm:$0xf] %vm1052, %v1101
      %1134 = vst.msk [vmem:[%s326 + $0x24] sm:$0xf] %vm1052, %v1102
      %1135 = vst.msk [vmem:[%s326 + $0x28] sm:$0xf] %vm1052, %v1103
      %1136 = vst.msk [vmem:[%s326 + $0x2c] sm:$0xf] %vm1052, %v1104
      %1137 = vst.msk [vmem:[%s326 + $0x30] sm:$0xf] %vm1052, %v1105
      %1138 = vst.msk [vmem:[%s326 + $0x34] sm:$0xf] %vm1052, %v1106
      %1139 = vst.msk [vmem:[%s326 + $0x38] sm:$0xf] %vm1052, %v1107
      %1140 = vst.msk [vmem:[%s326 + $0x3c] sm:$0xf] %vm1052, %v1108
      %v1149 = vunpack.c.l.b16 %v974
      %v1150 = vunpack.c.h.b16 %v974
      %v1151 = vunpack.c.l.b16 %v977
      %v1152 = vunpack.c.h.b16 %v977
      %v1153 = vunpack.c.l.b16 %v980
      %v1154 = vunpack.c.h.b16 %v980
      %v1155 = vunpack.c.l.b16 %v983
      %v1156 = vunpack.c.h.b16 %v983
      %v1157 = vunpack.c.l.b16 %v986
      %v1158 = vunpack.c.h.b16 %v986
      %v1159 = vunpack.c.l.b16 %v989
      %v1160 = vunpack.c.h.b16 %v989
      %v1161 = vunpack.c.l.b16 %v992
      %v1162 = vunpack.c.h.b16 %v992
      %v1163 = vunpack.c.l.b16 %v995
      %v1164 = vunpack.c.h.b16 %v995
      %v1165 = vpack.c.b16 %v1149, %v1149
      %v1166 = vpack.c.b16 %v1150, %v1150
      %v1167 = vpack.c.b16 %v1151, %v1151
      %v1168 = vpack.c.b16 %v1152, %v1152
      %v1169 = vpack.c.b16 %v1153, %v1153
      %v1170 = vpack.c.b16 %v1154, %v1154
      %v1171 = vpack.c.b16 %v1155, %v1155
      %v1172 = vpack.c.b16 %v1156, %v1156
      %v1173 = vpack.c.b16 %v1157, %v1157
      %v1174 = vpack.c.b16 %v1158, %v1158
      %v1175 = vpack.c.b16 %v1159, %v1159
      %v1176 = vpack.c.b16 %v1160, %v1160
      %v1177 = vpack.c.b16 %v1161, %v1161
      %v1178 = vpack.c.b16 %v1162, %v1162
      %v1179 = vpack.c.b16 %v1163, %v1163
      %v1180 = vpack.c.b16 %v1164, %v1164
      %1197 = vst.msk [vmem:[%s336] sm:$0xf] %vm1052, %v1165
      %1198 = vst.msk [vmem:[%s336 + $0x4] sm:$0xf] %vm1052, %v1166
      %1199 = vst.msk [vmem:[%s336 + $0x8] sm:$0xf] %vm1052, %v1167
      %1200 = vst.msk [vmem:[%s336 + $0xc] sm:$0xf] %vm1052, %v1168
      %1201 = vst.msk [vmem:[%s336 + $0x10] sm:$0xf] %vm1052, %v1169
      %1202 = vst.msk [vmem:[%s336 + $0x14] sm:$0xf] %vm1052, %v1170
      %1203 = vst.msk [vmem:[%s336 + $0x18] sm:$0xf] %vm1052, %v1171
      %1204 = vst.msk [vmem:[%s336 + $0x1c] sm:$0xf] %vm1052, %v1172
      %1205 = vst.msk [vmem:[%s336 + $0x20] sm:$0xf] %vm1052, %v1173
      %1206 = vst.msk [vmem:[%s336 + $0x24] sm:$0xf] %vm1052, %v1174
      %1207 = vst.msk [vmem:[%s336 + $0x28] sm:$0xf] %vm1052, %v1175
      %1208 = vst.msk [vmem:[%s336 + $0x2c] sm:$0xf] %vm1052, %v1176
      %1209 = vst.msk [vmem:[%s336 + $0x30] sm:$0xf] %vm1052, %v1177
      %1210 = vst.msk [vmem:[%s336 + $0x34] sm:$0xf] %vm1052, %v1178
      %1211 = vst.msk [vmem:[%s336 + $0x38] sm:$0xf] %vm1052, %v1179
      %1212 = vst.msk [vmem:[%s336 + $0x3c] sm:$0xf] %vm1052, %v1180
      %1213 = vrot.lane.b32.xlu0 %v1020, 64
      %v1214 = vpop.permute.xlu0 %1213
      %1215 = vrot.lane.b32.xlu0 %v1021, 64
      %v1216 = vpop.permute.xlu0 %1215
      %1217 = vrot.lane.b32.xlu0 %v1022, 64
      %v1218 = vpop.permute.xlu0 %1217
      %1219 = vrot.lane.b32.xlu0 %v1023, 64
      %v1220 = vpop.permute.xlu0 %1219
      %1221 = vrot.lane.b32.xlu0 %v1024, 64
      %v1222 = vpop.permute.xlu0 %1221
      %1223 = vrot.lane.b32.xlu0 %v1025, 64
      %v1224 = vpop.permute.xlu0 %1223
      %1225 = vrot.lane.b32.xlu0 %v1026, 64
      %v1226 = vpop.permute.xlu0 %1225
      %1227 = vrot.lane.b32.xlu0 %v1027, 64
      %v1228 = vpop.permute.xlu0 %1227
      %1229 = vrot.lane.b32.xlu0 %v1028, 64
      %v1230 = vpop.permute.xlu0 %1229
      %1231 = vrot.lane.b32.xlu0 %v1029, 64
      %v1232 = vpop.permute.xlu0 %1231
      %1233 = vrot.lane.b32.xlu0 %v1030, 64
      %v1234 = vpop.permute.xlu0 %1233
      %1235 = vrot.lane.b32.xlu0 %v1031, 64
      %v1236 = vpop.permute.xlu0 %1235
      %1237 = vrot.lane.b32.xlu0 %v1032, 64
      %v1238 = vpop.permute.xlu0 %1237
      %1239 = vrot.lane.b32.xlu0 %v1033, 64
      %v1240 = vpop.permute.xlu0 %1239
      %1241 = vrot.lane.b32.xlu0 %v1034, 64
      %v1242 = vpop.permute.xlu0 %1241
      %1243 = vrot.lane.b32.xlu0 %v1035, 64
      %v1244 = vpop.permute.xlu0 %1243
      %s1261 = scalar_lea.vmem %s316, 64
      %1262 = vst.msk [vmem:[%s1261] sm:$0xf] %vm1052, %v1214
      %1263 = vst.msk [vmem:[%s1261 + $0x4] sm:$0xf] %vm1052, %v1216
      %1264 = vst.msk [vmem:[%s1261 + $0x8] sm:$0xf] %vm1052, %v1218
      %1265 = vst.msk [vmem:[%s1261 + $0xc] sm:$0xf] %vm1052, %v1220
      %1266 = vst.msk [vmem:[%s1261 + $0x10] sm:$0xf] %vm1052, %v1222
      %1267 = vst.msk [vmem:[%s1261 + $0x14] sm:$0xf] %vm1052, %v1224
      %1268 = vst.msk [vmem:[%s1261 + $0x18] sm:$0xf] %vm1052, %v1226
      %1269 = vst.msk [vmem:[%s1261 + $0x1c] sm:$0xf] %vm1052, %v1228
      %1270 = vst.msk [vmem:[%s1261 + $0x20] sm:$0xf] %vm1052, %v1230
      %1271 = vst.msk [vmem:[%s1261 + $0x24] sm:$0xf] %vm1052, %v1232
      %1272 = vst.msk [vmem:[%s1261 + $0x28] sm:$0xf] %vm1052, %v1234
      %1273 = vst.msk [vmem:[%s1261 + $0x2c] sm:$0xf] %vm1052, %v1236
      %1274 = vst.msk [vmem:[%s1261 + $0x30] sm:$0xf] %vm1052, %v1238
      %1275 = vst.msk [vmem:[%s1261 + $0x34] sm:$0xf] %vm1052, %v1240
      %1276 = vst.msk [vmem:[%s1261 + $0x38] sm:$0xf] %vm1052, %v1242
      %1277 = vst.msk [vmem:[%s1261 + $0x3c] sm:$0xf] %vm1052, %v1244
      %1278 = vrot.lane.b32.xlu0 %v1093, 64
      %v1279 = vpop.permute.xlu0 %1278
      %1280 = vrot.lane.b32.xlu0 %v1094, 64
      %v1281 = vpop.permute.xlu0 %1280
      %1282 = vrot.lane.b32.xlu0 %v1095, 64
      %v1283 = vpop.permute.xlu0 %1282
      %1284 = vrot.lane.b32.xlu0 %v1096, 64
      %v1285 = vpop.permute.xlu0 %1284
      %1286 = vrot.lane.b32.xlu0 %v1097, 64
      %v1287 = vpop.permute.xlu0 %1286
      %1288 = vrot.lane.b32.xlu0 %v1098, 64
      %v1289 = vpop.permute.xlu0 %1288
      %1290 = vrot.lane.b32.xlu0 %v1099, 64
      %v1291 = vpop.permute.xlu0 %1290
      %1292 = vrot.lane.b32.xlu0 %v1100, 64
      %v1293 = vpop.permute.xlu0 %1292
      %1294 = vrot.lane.b32.xlu0 %v1101, 64
      %v1295 = vpop.permute.xlu0 %1294
      %1296 = vrot.lane.b32.xlu0 %v1102, 64
      %v1297 = vpop.permute.xlu0 %1296
      %1298 = vrot.lane.b32.xlu0 %v1103, 64
      %v1299 = vpop.permute.xlu0 %1298
      %1300 = vrot.lane.b32.xlu0 %v1104, 64
      %v1301 = vpop.permute.xlu0 %1300
      %1302 = vrot.lane.b32.xlu0 %v1105, 64
      %v1303 = vpop.permute.xlu0 %1302
      %1304 = vrot.lane.b32.xlu0 %v1106, 64
      %v1305 = vpop.permute.xlu0 %1304
      %1306 = vrot.lane.b32.xlu0 %v1107, 64
      %v1307 = vpop.permute.xlu0 %1306
      %1308 = vrot.lane.b32.xlu0 %v1108, 64
      %v1309 = vpop.permute.xlu0 %1308
      %s1326 = scalar_lea.vmem %s326, 64
      %1327 = vst.msk [vmem:[%s1326] sm:$0xf] %vm1052, %v1279
      %1328 = vst.msk [vmem:[%s1326 + $0x4] sm:$0xf] %vm1052, %v1281
      %1329 = vst.msk [vmem:[%s1326 + $0x8] sm:$0xf] %vm1052, %v1283
      %1330 = vst.msk [vmem:[%s1326 + $0xc] sm:$0xf] %vm1052, %v1285
      %1331 = vst.msk [vmem:[%s1326 + $0x10] sm:$0xf] %vm1052, %v1287
      %1332 = vst.msk [vmem:[%s1326 + $0x14] sm:$0xf] %vm1052, %v1289
      %1333 = vst.msk [vmem:[%s1326 + $0x18] sm:$0xf] %vm1052, %v1291
      %1334 = vst.msk [vmem:[%s1326 + $0x1c] sm:$0xf] %vm1052, %v1293
      %1335 = vst.msk [vmem:[%s1326 + $0x20] sm:$0xf] %vm1052, %v1295
      %1336 = vst.msk [vmem:[%s1326 + $0x24] sm:$0xf] %vm1052, %v1297
      %1337 = vst.msk [vmem:[%s1326 + $0x28] sm:$0xf] %vm1052, %v1299
      %1338 = vst.msk [vmem:[%s1326 + $0x2c] sm:$0xf] %vm1052, %v1301
      %1339 = vst.msk [vmem:[%s1326 + $0x30] sm:$0xf] %vm1052, %v1303
      %1340 = vst.msk [vmem:[%s1326 + $0x34] sm:$0xf] %vm1052, %v1305
      %1341 = vst.msk [vmem:[%s1326 + $0x38] sm:$0xf] %vm1052, %v1307
      %1342 = vst.msk [vmem:[%s1326 + $0x3c] sm:$0xf] %vm1052, %v1309
      %1343 = vrot.lane.b32.xlu0 %v1165, 64
      %v1344 = vpop.permute.xlu0 %1343
      %1345 = vrot.lane.b32.xlu0 %v1166, 64
      %v1346 = vpop.permute.xlu0 %1345
      %1347 = vrot.lane.b32.xlu0 %v1167, 64
      %v1348 = vpop.permute.xlu0 %1347
      %1349 = vrot.lane.b32.xlu0 %v1168, 64
      %v1350 = vpop.permute.xlu0 %1349
      %1351 = vrot.lane.b32.xlu0 %v1169, 64
      %v1352 = vpop.permute.xlu0 %1351
      %1353 = vrot.lane.b32.xlu0 %v1170, 64
      %v1354 = vpop.permute.xlu0 %1353
      %1355 = vrot.lane.b32.xlu0 %v1171, 64
      %v1356 = vpop.permute.xlu0 %1355
      %1357 = vrot.lane.b32.xlu0 %v1172, 64
      %v1358 = vpop.permute.xlu0 %1357
      %1359 = vrot.lane.b32.xlu0 %v1173, 64
      %v1360 = vpop.permute.xlu0 %1359
      %1361 = vrot.lane.b32.xlu0 %v1174, 64
      %v1362 = vpop.permute.xlu0 %1361
      %1363 = vrot.lane.b32.xlu0 %v1175, 64
      %v1364 = vpop.permute.xlu0 %1363
      %1365 = vrot.lane.b32.xlu0 %v1176, 64
      %v1366 = vpop.permute.xlu0 %1365
      %1367 = vrot.lane.b32.xlu0 %v1177, 64
      %v1368 = vpop.permute.xlu0 %1367
      %1369 = vrot.lane.b32.xlu0 %v1178, 64
      %v1370 = vpop.permute.xlu0 %1369
      %1371 = vrot.lane.b32.xlu0 %v1179, 64
      %v1372 = vpop.permute.xlu0 %1371
      %1373 = vrot.lane.b32.xlu0 %v1180, 64
      %v1374 = vpop.permute.xlu0 %1373
      %s1391 = scalar_lea.vmem %s336, 64
      %1392 = vst.msk [vmem:[%s1391] sm:$0xf] %vm1052, %v1344
      %1393 = vst.msk [vmem:[%s1391 + $0x4] sm:$0xf] %vm1052, %v1346
      %1394 = vst.msk [vmem:[%s1391 + $0x8] sm:$0xf] %vm1052, %v1348
      %1395 = vst.msk [vmem:[%s1391 + $0xc] sm:$0xf] %vm1052, %v1350
      %1396 = vst.msk [vmem:[%s1391 + $0x10] sm:$0xf] %vm1052, %v1352
      %1397 = vst.msk [vmem:[%s1391 + $0x14] sm:$0xf] %vm1052, %v1354
      %1398 = vst.msk [vmem:[%s1391 + $0x18] sm:$0xf] %vm1052, %v1356
      %1399 = vst.msk [vmem:[%s1391 + $0x1c] sm:$0xf] %vm1052, %v1358
      %1400 = vst.msk [vmem:[%s1391 + $0x20] sm:$0xf] %vm1052, %v1360
      %1401 = vst.msk [vmem:[%s1391 + $0x24] sm:$0xf] %vm1052, %v1362
      %1402 = vst.msk [vmem:[%s1391 + $0x28] sm:$0xf] %vm1052, %v1364
      %1403 = vst.msk [vmem:[%s1391 + $0x2c] sm:$0xf] %vm1052, %v1366
      %1404 = vst.msk [vmem:[%s1391 + $0x30] sm:$0xf] %vm1052, %v1368
      %1405 = vst.msk [vmem:[%s1391 + $0x34] sm:$0xf] %vm1052, %v1370
      %1406 = vst.msk [vmem:[%s1391 + $0x38] sm:$0xf] %vm1052, %v1372
      %1407 = vst.msk [vmem:[%s1391 + $0x3c] sm:$0xf] %vm1052, %v1374
      %s1408 = smul.u32 16, %s23
      %p1409 = scmp.lt.s32.totalorder %s22, 3
      %s1410 = scalar_select %p1409, %s22, 3
      %p1411 = scmp.lt.s32.totalorder %s1408, 15
      %s1412 = scalar_select %p1411, %s1408, 15
      %s1413 = smul.addr %s1410, 32
      %s1414 = sadd.s32 %s1412, %s1413
      %s1415 = smul.addr %s1414, 4
      %s1416 = scalar_lea.vmem %s4, %s1415
      %s1417 = smul.u32 16, %s23
      %p1418 = scmp.lt.s32.totalorder %s22, 3
      %s1419 = scalar_select %p1418, %s22, 3
      %p1420 = scmp.lt.s32.totalorder %s1417, 15
      %s1421 = scalar_select %p1420, %s1417, 15
      %s1422 = smul.addr %s1419, 32
      %s1423 = sadd.s32 %s1421, %s1422
      %s1424 = smul.addr %s1423, 4
      %s1425 = scalar_lea.vmem %s5, %s1424
      %s1426 = smul.u32 16, %s23
      %p1427 = scmp.lt.s32.totalorder %s22, 3
      %s1428 = scalar_select %p1427, %s22, 3
      %p1429 = scmp.lt.s32.totalorder %s1426, 15
      %s1430 = scalar_select %p1429, %s1426, 15
      %s1431 = smul.addr %s1428, 32
      %s1432 = sadd.s32 %s1430, %s1431
      %s1433 = smul.addr %s1432, 4
      %s1434 = scalar_lea.vmem %s6, %s1433
      // Predicated region
      $region37: #{gpt_forward.5} parent=35 // pred_check
        %p1435 = pneg %p141
      $region38: #{gpt_forward.5} parent=35 // pred_check_branch
        %1437 = sbr.rel (%p1435) target = $region40
      $region39: #{gpt_forward.5} parent=35 // pred_region
        %s1438 = smul.u32 16, %s23
      $region40: #{gpt_forward.5} parent=35 // pred_fallthru
        _
      // Predicated region
      $region41: #{gpt_forward.5} parent=35 // pred_check
        %p1439 = pneg %p169
      $region42: #{gpt_forward.5} parent=35 // pred_check_branch
        %1441 = sbr.rel (%p1439) target = $region44
      $region43: #{gpt_forward.5} parent=35 // pred_region
        %s1442 = smul.u32 16, %s23
      $region44: #{gpt_forward.5} parent=35 // pred_fallthru
        _
      // Predicated region
      $region45: #{gpt_forward.5} parent=35 // pred_check
        %p1443 = pneg %p197
      $region46: #{gpt_forward.5} parent=35 // pred_check_branch
        %1445 = sbr.rel (%p1443) target = $region48
      $region47: #{gpt_forward.5} parent=35 // pred_region
        %s1446 = smul.u32 16, %s23
      $region48: #{gpt_forward.5} parent=35 // pred_fallthru
        _
    $region36: #{gpt_forward.5} parent=5 // pred_fallthru
      _
    %p1447 = scmp.le.s32.totalorder 2, %s13
    // Predicated region
    $region49: #{gpt_forward.5} parent=5 // pred_check
      %p1448 = pneg %p1447
    $region50: #{gpt_forward.5} parent=5 // pred_check_branch
      %1450 = sbr.rel (%p1448) target = $region52
    $region51: #{gpt_forward.5} parent=5 // pred_region
      %s1451 = ssub.s32 %s13, 2
      // Predicated region
      $region53: #{gpt_forward.5} parent=51 // pred_check
        %p1452 = pneg %p147
      $region54: #{gpt_forward.5} parent=51 // pred_check_branch
        %1454 = sbr.rel (%p1452) target = $region56
      $region55: #{gpt_forward.5} parent=51 // pred_region
        %s1455 = smul.u32 16, %s25
        %p1456 = scmp.lt.s32.totalorder %s24, 3
        %s1457 = scalar_select %p1456, %s24, 3
        %p1458 = scmp.lt.s32.totalorder %s1455, 15
        %s1459 = scalar_select %p1458, %s1455, 15
        %s1460 = smul.addr %s1457, 32
        %s1461 = sadd.s32 %s1459, %s1460
        %s1462 = smul.addr %s1461, 4
        %s1463 = scalar_lea.vmem %s4, %s1462
      $region56: #{gpt_forward.5} parent=51 // pred_fallthru
        _
      // Predicated region
      $region57: #{gpt_forward.5} parent=51 // pred_check
        %p1464 = pneg %p175
      $region58: #{gpt_forward.5} parent=51 // pred_check_branch
        %1466 = sbr.rel (%p1464) target = $region60
      $region59: #{gpt_forward.5} parent=51 // pred_region
        %s1467 = smul.u32 16, %s25
        %p1468 = scmp.lt.s32.totalorder %s24, 3
        %s1469 = scalar_select %p1468, %s24, 3
        %p1470 = scmp.lt.s32.totalorder %s1467, 15
        %s1471 = scalar_select %p1470, %s1467, 15
        %s1472 = smul.addr %s1469, 32
        %s1473 = sadd.s32 %s1471, %s1472
        %s1474 = smul.addr %s1473, 4
        %s1475 = scalar_lea.vmem %s5, %s1474
      $region60: #{gpt_forward.5} parent=51 // pred_fallthru
        _
      // Predicated region
      $region61: #{gpt_forward.5} parent=51 // pred_check
        %p1476 = pneg %p203
      $region62: #{gpt_forward.5} parent=51 // pred_check_branch
        %1478 = sbr.rel (%p1476) target = $region64
      $region63: #{gpt_forward.5} parent=51 // pred_region
        %s1479 = smul.u32 16, %s25
        %p1480 = scmp.lt.s32.totalorder %s24, 3
        %s1481 = scalar_select %p1480, %s24, 3
        %p1482 = scmp.lt.s32.totalorder %s1479, 15
        %s1483 = scalar_select %p1482, %s1479, 15
        %s1484 = smul.addr %s1481, 32
        %s1485 = sadd.s32 %s1483, %s1484
        %s1486 = smul.addr %s1485, 4
        %s1487 = scalar_lea.vmem %s6, %s1486
      $region64: #{gpt_forward.5} parent=51 // pred_fallthru
        _
    $region52: #{gpt_forward.5} parent=5 // pred_fallthru
      _
  $region6: #{gpt_forward.5} parent=0 // loop_footer
    %s17 = sadd.s32 1, %s13
  $region7: #{gpt_forward.5} parent=0 // loop_footer_branch
    %12 = sbr.rel target = $region3
  $region8: #{gpt_forward.5} parent=0 // loop_exit
    _

// kernel: gpt_forward.6
$region0: #{gpt_forward.6}
  #allocation0 [shape = 'u32[]', space=smem, size = 0x4, offset = 0x4, fixed_abs, tag = 'smem constant byte address 0x4 - core index']
  #allocation1 [shape = 'u32[144,128]{1,0:T(1,128)}', space=vmem, size = 0x12000, scoped, tag = 'internal scratch']
  %s0 = inlined_call_operand.vmem [shape: bf16[4,128,128], index: 0, kind: input, shape index: {}]
  %s1 = inlined_call_operand.vmem [shape: bf16[4,2,128,64], index: 1, kind: input, shape index: {}]
  %s2 = inlined_call_operand.vmem [shape: bf16[4,2,128,64], index: 2, kind: input, shape index: {}]
  %s3 = inlined_call_operand.vmem [shape: bf16[4,2,128,64], index: 3, kind: input, shape index: {}]
  %s4 = inlined_call_operand.vmem [shape: bf16[128,128], index: 4, kind: input, shape index: {}]
  %s5 = inlined_call_operand.vmem [shape: f32[1,128], index: 5, kind: input, shape index: {}]
  %s6 = inlined_call_operand.vmem [shape: f32[1,128], index: 6, kind: input, shape index: {}]
  %s7 = inlined_call_operand.vmem [shape: f32[1,128], index: 7, kind: input, shape index: {}]
  %s8 = inlined_call_operand.vmem [shape: bf16[128,512], index: 8, kind: input, shape index: {}]
  %s9 = inlined_call_operand.vmem [shape: f32[1,512], index: 9, kind: input, shape index: {}]
  %s10 = inlined_call_operand.vmem [shape: bf16[512,128], index: 10, kind: input, shape index: {}]
  %s11 = inlined_call_operand.vmem [shape: f32[1,128], index: 11, kind: input, shape index: {}]
  %s12 = inlined_call_operand.vmem [shape: bf16[4,128,128], index: 12, kind: output, shape index: {}]
  %s13 = sld [smem:[#allocation0]]
  $region81: #{gpt_forward.6} parent=0
    _
  %s15 = ssub.s32 1, %s13
  %s16 = scalar_select 0, %s15, %s13
  loop: start=0, step=1, limit=6
  $region2: #{gpt_forward.6} parent=0 // loop_pre_header
    _
  $region3: #{gpt_forward.6} parent=0 // loop_header
    %s18 = sphi 0, %s22
    %p19 = scmp.ge.s32.totalorder %s18, 6
    %s25 = sphi 0, %s37
    %s26 = sphi 0, %s33
    %s27 = sphi 0, %s25
    %s28 = sphi 0, %s26
    %s29 = sphi 0, %s27
    %s30 = sphi 0, %s28
    %s42 = sphi 0, %s44
    %s45 = sphi 0, %s42
    %s46 = sphi 0, %s45
    %s62 = sphi 0, %s46
    %s70 = sphi 0, %s72
    %s73 = sphi 0, %s70
    %s74 = sphi 0, %s73
    %s90 = sphi 0, %s74
    %s96 = sphi 0, %s98
    %s99 = sphi 0, %s96
    %s100 = sphi 0, %s99
    %s116 = sphi 0, %s100
    %s122 = sphi 0, %s124
    %s125 = sphi 0, %s122
    %s126 = sphi 0, %s125
    %s142 = sphi 0, %s126
    %s146 = sphi 0, %s146
    %s148 = sphi 0, %s146
    %s149 = sphi 0, %s148
    %s163 = sphi 0, %s149
    %s167 = sphi 0, %s167
    %s169 = sphi 0, %s167
    %s170 = sphi 0, %s169
    %s184 = sphi 0, %s170
    %s188 = sphi 0, %s188
    %s190 = sphi 0, %s188
    %s191 = sphi 0, %s190
    %s205 = sphi 0, %s191
    %s209 = sphi 0, %s209
    %s211 = sphi 0, %s209
    %s212 = sphi 0, %s211
    %s226 = sphi 0, %s212
    %s230 = sphi 0, %s230
    %s232 = sphi 0, %s230
    %s233 = sphi 0, %s232
    %s247 = sphi 0, %s233
    %s251 = sphi 0, %s251
    %s253 = sphi 0, %s251
    %s254 = sphi 0, %s253
    %s268 = sphi 0, %s254
    %s272 = sphi 0, %s272
    %s274 = sphi 0, %s272
    %s275 = sphi 0, %s274
    %s289 = sphi 0, %s275
    %s293 = sphi 0, %s293
    %s295 = sphi 0, %s293
    %s296 = sphi 0, %s295
    %s310 = sphi 0, %s296
    %s318 = sphi 0, %s320
    %s321 = sphi 0, %s318
    %s322 = sphi 0, %s321
    %s338 = sphi 0, %s322
  $region4: #{gpt_forward.6} parent=0 // loop_header_branch
    %21 = sbr.rel (%p19) target = $region8
  $region5: #{gpt_forward.6} parent=0 // loop_body
    %s23 = ssub.s32 %s18, 1
    %s24 = ssub.s32 %s18, 2
    %s31 = sadd.s32 1, %s26
    %p32 = scmp.ge.s32.totalorder %s31, 1
    %s33 = scalar_select %p32, 0, %s31
    %s34 = sadd.s32 1, %s25
    %s35 = scalar_select %p32, %s34, %s25
    %p36 = scmp.ge.s32.totalorder %s35, 4
    %s37 = scalar_select %p36, 0, %s35
    %s38 = ssub.s32 %s25, %s37
    %s39 = ssub.s32 %s26, %s33
    %s40 = sor.u32 %s38, %s39
    %p41 = scmp.eq.s32.totalorder %s40, 0
    %s43 = sadd.s32 %s42, 1
    %s44 = scalar_select %p41, %s42, %s43
    %p47 = pneg %p41
    %p48 = scmp.eq.s32.totalorder %s18, 3
    %p49 = por %p47, %p48
    %p50 = scmp.ne.s32.totalorder %s42, %s45
    %p51 = scmp.eq.s32.totalorder %s18, 0
    %p52 = por %p50, %p51
    %p53 = scmp.ne.s32.totalorder %s42, %s45
    %p54 = scmp.eq.s32.totalorder %s23, 3
    %p55 = por %p53, %p54
    %p56 = scmp.ne.s32.totalorder %s45, %s46
    %p57 = scmp.eq.s32.totalorder %s23, 0
    %p58 = por %p56, %p57
    %p59 = scmp.ne.s32.totalorder %s45, %s46
    %p60 = scmp.eq.s32.totalorder %s24, 3
    %p61 = por %p59, %p60
    %p63 = scmp.ne.s32.totalorder %s46, %s62
    %p64 = scmp.eq.s32.totalorder %s24, 0
    %p65 = por %p63, %p64
    %s66 = ssub.s32 %s25, %s37
    %s67 = ssub.s32 %s26, %s33
    %s68 = sor.u32 %s66, %s67
    %p69 = scmp.eq.s32.totalorder %s68, 0
    %s71 = sadd.s32 %s70, 1
    %s72 = scalar_select %p69, %s70, %s71
    %p75 = pneg %p69
    %p76 = scmp.eq.s32.totalorder %s18, 3
    %p77 = por %p75, %p76
    %p78 = scmp.ne.s32.totalorder %s70, %s73
    %p79 = scmp.eq.s32.totalorder %s18, 0
    %p80 = por %p78, %p79
    %p81 = scmp.ne.s32.totalorder %s70, %s73
    %p82 = scmp.eq.s32.totalorder %s23, 3
    %p83 = por %p81, %p82
    %p84 = scmp.ne.s32.totalorder %s73, %s74
    %p85 = scmp.eq.s32.totalorder %s23, 0
    %p86 = por %p84, %p85
    %p87 = scmp.ne.s32.totalorder %s73, %s74
    %p88 = scmp.eq.s32.totalorder %s24, 3
    %p89 = por %p87, %p88
    %p91 = scmp.ne.s32.totalorder %s74, %s90
    %p92 = scmp.eq.s32.totalorder %s24, 0
    %p93 = por %p91, %p92
    %s94 = ssub.s32 %s25, %s37
    %p95 = scmp.eq.s32.totalorder %s94, 0
    %s97 = sadd.s32 %s96, 1
    %s98 = scalar_select %p95, %s96, %s97
    %p101 = pneg %p95
    %p102 = scmp.eq.s32.totalorder %s18, 3
    %p103 = por %p101, %p102
    %p104 = scmp.ne.s32.totalorder %s96, %s99
    %p105 = scmp.eq.s32.totalorder %s18, 0
    %p106 = por %p104, %p105
    %p107 = scmp.ne.s32.totalorder %s96, %s99
    %p108 = scmp.eq.s32.totalorder %s23, 3
    %p109 = por %p107, %p108
    %p110 = scmp.ne.s32.totalorder %s99, %s100
    %p111 = scmp.eq.s32.totalorder %s23, 0
    %p112 = por %p110, %p111
    %p113 = scmp.ne.s32.totalorder %s99, %s100
    %p114 = scmp.eq.s32.totalorder %s24, 3
    %p115 = por %p113, %p114
    %p117 = scmp.ne.s32.totalorder %s100, %s116
    %p118 = scmp.eq.s32.totalorder %s24, 0
    %p119 = por %p117, %p118
    %s120 = ssub.s32 %s25, %s37
    %p121 = scmp.eq.s32.totalorder %s120, 0
    %s123 = sadd.s32 %s122, 1
    %s124 = scalar_select %p121, %s122, %s123
    %p127 = pneg %p121
    %p128 = scmp.eq.s32.totalorder %s18, 3
    %p129 = por %p127, %p128
    %p130 = scmp.ne.s32.totalorder %s122, %s125
    %p131 = scmp.eq.s32.totalorder %s18, 0
    %p132 = por %p130, %p131
    %p133 = scmp.ne.s32.totalorder %s122, %s125
    %p134 = scmp.eq.s32.totalorder %s23, 3
    %p135 = por %p133, %p134
    %p136 = scmp.ne.s32.totalorder %s125, %s126
    %p137 = scmp.eq.s32.totalorder %s23, 0
    %p138 = por %p136, %p137
    %p139 = scmp.ne.s32.totalorder %s125, %s126
    %p140 = scmp.eq.s32.totalorder %s24, 3
    %p141 = por %p139, %p140
    %p143 = scmp.ne.s32.totalorder %s126, %s142
    %p144 = scmp.eq.s32.totalorder %s24, 0
    %p145 = por %p143, %p144
    %s147 = sadd.s32 %s146, 1
    %p150 = scmp.eq.s32.totalorder %s18, 3
    %p151 = scmp.ne.s32.totalorder %s146, %s148
    %p152 = scmp.eq.s32.totalorder %s18, 0
    %p153 = por %p151, %p152
    %p154 = scmp.ne.s32.totalorder %s146, %s148
    %p155 = scmp.eq.s32.totalorder %s23, 3
    %p156 = por %p154, %p155
    %p157 = scmp.ne.s32.totalorder %s148, %s149
    %p158 = scmp.eq.s32.totalorder %s23, 0
    %p159 = por %p157, %p158
    %p160 = scmp.ne.s32.totalorder %s148, %s149
    %p161 = scmp.eq.s32.totalorder %s24, 3
    %p162 = por %p160, %p161
    %p164 = scmp.ne.s32.totalorder %s149, %s163
    %p165 = scmp.eq.s32.totalorder %s24, 0
    %p166 = por %p164, %p165
    %s168 = sadd.s32 %s167, 1
    %p171 = scmp.eq.s32.totalorder %s18, 3
    %p172 = scmp.ne.s32.totalorder %s167, %s169
    %p173 = scmp.eq.s32.totalorder %s18, 0
    %p174 = por %p172, %p173
    %p175 = scmp.ne.s32.totalorder %s167, %s169
    %p176 = scmp.eq.s32.totalorder %s23, 3
    %p177 = por %p175, %p176
    %p178 = scmp.ne.s32.totalorder %s169, %s170
    %p179 = scmp.eq.s32.totalorder %s23, 0
    %p180 = por %p178, %p179
    %p181 = scmp.ne.s32.totalorder %s169, %s170
    %p182 = scmp.eq.s32.totalorder %s24, 3
    %p183 = por %p181, %p182
    %p185 = scmp.ne.s32.totalorder %s170, %s184
    %p186 = scmp.eq.s32.totalorder %s24, 0
    %p187 = por %p185, %p186
    %s189 = sadd.s32 %s188, 1
    %p192 = scmp.eq.s32.totalorder %s18, 3
    %p193 = scmp.ne.s32.totalorder %s188, %s190
    %p194 = scmp.eq.s32.totalorder %s18, 0
    %p195 = por %p193, %p194
    %p196 = scmp.ne.s32.totalorder %s188, %s190
    %p197 = scmp.eq.s32.totalorder %s23, 3
    %p198 = por %p196, %p197
    %p199 = scmp.ne.s32.totalorder %s190, %s191
    %p200 = scmp.eq.s32.totalorder %s23, 0
    %p201 = por %p199, %p200
    %p202 = scmp.ne.s32.totalorder %s190, %s191
    %p203 = scmp.eq.s32.totalorder %s24, 3
    %p204 = por %p202, %p203
    %p206 = scmp.ne.s32.totalorder %s191, %s205
    %p207 = scmp.eq.s32.totalorder %s24, 0
    %p208 = por %p206, %p207
    %s210 = sadd.s32 %s209, 1
    %p213 = scmp.eq.s32.totalorder %s18, 3
    %p214 = scmp.ne.s32.totalorder %s209, %s211
    %p215 = scmp.eq.s32.totalorder %s18, 0
    %p216 = por %p214, %p215
    %p217 = scmp.ne.s32.totalorder %s209, %s211
    %p218 = scmp.eq.s32.totalorder %s23, 3
    %p219 = por %p217, %p218
    %p220 = scmp.ne.s32.totalorder %s211, %s212
    %p221 = scmp.eq.s32.totalorder %s23, 0
    %p222 = por %p220, %p221
    %p223 = scmp.ne.s32.totalorder %s211, %s212
    %p224 = scmp.eq.s32.totalorder %s24, 3
    %p225 = por %p223, %p224
    %p227 = scmp.ne.s32.totalorder %s212, %s226
    %p228 = scmp.eq.s32.totalorder %s24, 0
    %p229 = por %p227, %p228
    %s231 = sadd.s32 %s230, 1
    %p234 = scmp.eq.s32.totalorder %s18, 3
    %p235 = scmp.ne.s32.totalorder %s230, %s232
    %p236 = scmp.eq.s32.totalorder %s18, 0
    %p237 = por %p235, %p236
    %p238 = scmp.ne.s32.totalorder %s230, %s232
    %p239 = scmp.eq.s32.totalorder %s23, 3
    %p240 = por %p238, %p239
    %p241 = scmp.ne.s32.totalorder %s232, %s233
    %p242 = scmp.eq.s32.totalorder %s23, 0
    %p243 = por %p241, %p242
    %p244 = scmp.ne.s32.totalorder %s232, %s233
    %p245 = scmp.eq.s32.totalorder %s24, 3
    %p246 = por %p244, %p245
    %p248 = scmp.ne.s32.totalorder %s233, %s247
    %p249 = scmp.eq.s32.totalorder %s24, 0
    %p250 = por %p248, %p249
    %s252 = sadd.s32 %s251, 1
    %p255 = scmp.eq.s32.totalorder %s18, 3
    %p256 = scmp.ne.s32.totalorder %s251, %s253
    %p257 = scmp.eq.s32.totalorder %s18, 0
    %p258 = por %p256, %p257
    %p259 = scmp.ne.s32.totalorder %s251, %s253
    %p260 = scmp.eq.s32.totalorder %s23, 3
    %p261 = por %p259, %p260
    %p262 = scmp.ne.s32.totalorder %s253, %s254
    %p263 = scmp.eq.s32.totalorder %s23, 0
    %p264 = por %p262, %p263
    %p265 = scmp.ne.s32.totalorder %s253, %s254
    %p266 = scmp.eq.s32.totalorder %s24, 3
    %p267 = por %p265, %p266
    %p269 = scmp.ne.s32.totalorder %s254, %s268
    %p270 = scmp.eq.s32.totalorder %s24, 0
    %p271 = por %p269, %p270
    %s273 = sadd.s32 %s272, 1
    %p276 = scmp.eq.s32.totalorder %s18, 3
    %p277 = scmp.ne.s32.totalorder %s272, %s274
    %p278 = scmp.eq.s32.totalorder %s18, 0
    %p279 = por %p277, %p278
    %p280 = scmp.ne.s32.totalorder %s272, %s274
    %p281 = scmp.eq.s32.totalorder %s23, 3
    %p282 = por %p280, %p281
    %p283 = scmp.ne.s32.totalorder %s274, %s275
    %p284 = scmp.eq.s32.totalorder %s23, 0
    %p285 = por %p283, %p284
    %p286 = scmp.ne.s32.totalorder %s274, %s275
    %p287 = scmp.eq.s32.totalorder %s24, 3
    %p288 = por %p286, %p287
    %p290 = scmp.ne.s32.totalorder %s275, %s289
    %p291 = scmp.eq.s32.totalorder %s24, 0
    %p292 = por %p290, %p291
    %s294 = sadd.s32 %s293, 1
    %p297 = scmp.eq.s32.totalorder %s18, 3
    %p298 = scmp.ne.s32.totalorder %s293, %s295
    %p299 = scmp.eq.s32.totalorder %s18, 0
    %p300 = por %p298, %p299
    %p301 = scmp.ne.s32.totalorder %s293, %s295
    %p302 = scmp.eq.s32.totalorder %s23, 3
    %p303 = por %p301, %p302
    %p304 = scmp.ne.s32.totalorder %s295, %s296
    %p305 = scmp.eq.s32.totalorder %s23, 0
    %p306 = por %p304, %p305
    %p307 = scmp.ne.s32.totalorder %s295, %s296
    %p308 = scmp.eq.s32.totalorder %s24, 3
    %p309 = por %p307, %p308
    %p311 = scmp.ne.s32.totalorder %s296, %s310
    %p312 = scmp.eq.s32.totalorder %s24, 0
    %p313 = por %p311, %p312
    %s314 = ssub.s32 %s25, %s37
    %s315 = ssub.s32 %s26, %s33
    %s316 = sor.u32 %s314, %s315
    %p317 = scmp.eq.s32.totalorder %s316, 0
    %s319 = sadd.s32 %s318, 1
    %s320 = scalar_select %p317, %s318, %s319
    %p323 = pneg %p317
    %p324 = scmp.eq.s32.totalorder %s18, 3
    %p325 = por %p323, %p324
    %p326 = scmp.ne.s32.totalorder %s318, %s321
    %p327 = scmp.eq.s32.totalorder %s18, 0
    %p328 = por %p326, %p327
    %p329 = scmp.ne.s32.totalorder %s318, %s321
    %p330 = scmp.eq.s32.totalorder %s23, 3
    %p331 = por %p329, %p330
    %p332 = scmp.ne.s32.totalorder %s321, %s322
    %p333 = scmp.eq.s32.totalorder %s23, 0
    %p334 = por %p332, %p333
    %p335 = scmp.ne.s32.totalorder %s321, %s322
    %p336 = scmp.eq.s32.totalorder %s24, 3
    %p337 = por %p335, %p336
    %p339 = scmp.ne.s32.totalorder %s322, %s338
    %p340 = scmp.eq.s32.totalorder %s24, 0
    %p341 = por %p339, %p340
    %p342 = scmp.le.s32.totalorder 1, %s18
    %p343 = scmp.lt.s32.totalorder %s18, 5
    %p344 = pnand %p342, %p343
    %p345 = pneg %p344
    // Predicated region
    $region9: #{gpt_forward.6} parent=5 // pred_check
      _
    $region10: #{gpt_forward.6} parent=5 // pred_check_branch
      %347 = sbr.rel (%p344) target = $region12
    $region11: #{gpt_forward.6} parent=5 // pred_region
      %s348 = ssub.s32 %s18, 1
      // Predicated region
      $region13: #{gpt_forward.6} parent=11 // pred_check
        %p349 = pneg %p159
      $region14: #{gpt_forward.6} parent=11 // pred_check_branch
        %351 = sbr.rel (%p349) target = $region16
      $region15: #{gpt_forward.6} parent=11 // pred_region
        _
      $region16: #{gpt_forward.6} parent=11 // pred_fallthru
        _
      // Predicated region
      $region17: #{gpt_forward.6} parent=11 // pred_check
        %p352 = pneg %p180
      $region18: #{gpt_forward.6} parent=11 // pred_check_branch
        %354 = sbr.rel (%p352) target = $region20
      $region19: #{gpt_forward.6} parent=11 // pred_region
        _
      $region20: #{gpt_forward.6} parent=11 // pred_fallthru
        _
      // Predicated region
      $region21: #{gpt_forward.6} parent=11 // pred_check
        %p355 = pneg %p201
      $region22: #{gpt_forward.6} parent=11 // pred_check_branch
        %357 = sbr.rel (%p355) target = $region24
      $region23: #{gpt_forward.6} parent=11 // pred_region
        _
      $region24: #{gpt_forward.6} parent=11 // pred_fallthru
        _
      // Predicated region
      $region25: #{gpt_forward.6} parent=11 // pred_check
        %p358 = pneg %p222
      $region26: #{gpt_forward.6} parent=11 // pred_check_branch
        %360 = sbr.rel (%p358) target = $region28
      $region27: #{gpt_forward.6} parent=11 // pred_region
        _
      $region28: #{gpt_forward.6} parent=11 // pred_fallthru
        _
      // Predicated region
      $region29: #{gpt_forward.6} parent=11 // pred_check
        %p361 = pneg %p243
      $region30: #{gpt_forward.6} parent=11 // pred_check_branch
        %363 = sbr.rel (%p361) target = $region32
      $region31: #{gpt_forward.6} parent=11 // pred_region
        _
      $region32: #{gpt_forward.6} parent=11 // pred_fallthru
        _
      // Predicated region
      $region33: #{gpt_forward.6} parent=11 // pred_check
        %p364 = pneg %p264
      $region34: #{gpt_forward.6} parent=11 // pred_check_branch
        %366 = sbr.rel (%p364) target = $region36
      $region35: #{gpt_forward.6} parent=11 // pred_region
        _
      $region36: #{gpt_forward.6} parent=11 // pred_fallthru
        _
      // Predicated region
      $region37: #{gpt_forward.6} parent=11 // pred_check
        %p367 = pneg %p285
      $region38: #{gpt_forward.6} parent=11 // pred_check_branch
        %369 = sbr.rel (%p367) target = $region40
      $region39: #{gpt_forward.6} parent=11 // pred_region
        _
      $region40: #{gpt_forward.6} parent=11 // pred_fallthru
        _
      // Predicated region
      $region41: #{gpt_forward.6} parent=11 // pred_check
        %p370 = pneg %p306
      $region42: #{gpt_forward.6} parent=11 // pred_check_branch
        %372 = sbr.rel (%p370) target = $region44
      $region43: #{gpt_forward.6} parent=11 // pred_region
        _
      $region44: #{gpt_forward.6} parent=11 // pred_fallthru
        _
    $region12: #{gpt_forward.6} parent=5 // pred_fallthru
      _
    %p373 = scmp.lt.s32.totalorder %s18, 4
    // Predicated region
    $region45: #{gpt_forward.6} parent=5 // pred_check
      %p374 = pneg %p373
    $region46: #{gpt_forward.6} parent=5 // pred_check_branch
      %376 = sbr.rel (%p374) target = $region48
    $region47: #{gpt_forward.6} parent=5 // pred_region
      // Predicated region
      $region49: #{gpt_forward.6} parent=47 // pred_check
        %p377 = pneg %p52
      $region50: #{gpt_forward.6} parent=47 // pred_check_branch
        %379 = sbr.rel (%p377) target = $region52
      $region51: #{gpt_forward.6} parent=47 // pred_region
        %s380 = smul.u32 16, %s26
        %p381 = scmp.lt.s32.totalorder %s25, 3
        %s382 = scalar_select %p381, %s25, 3
        %p383 = scmp.lt.s32.totalorder %s380, 15
        %s384 = scalar_select %p383, %s380, 15
        %s385 = smul.addr %s382, 16
        %s386 = sadd.s32 %s384, %s385
        %s387 = smul.addr %s386, 4
        %s388 = scalar_lea.vmem %s0, %s387
        %s389 = smul.u32 16, %s26
      $region52: #{gpt_forward.6} parent=47 // pred_fallthru
        _
      // Predicated region
      $region53: #{gpt_forward.6} parent=47 // pred_check
        %p390 = pneg %p80
      $region54: #{gpt_forward.6} parent=47 // pred_check_branch
        %392 = sbr.rel (%p390) target = $region56
      $region55: #{gpt_forward.6} parent=47 // pred_region
        %s393 = smul.u32 16, %s26
        %p394 = scmp.lt.s32.totalorder %s25, 3
        %s395 = scalar_select %p394, %s25, 3
        %p396 = scmp.lt.s32.totalorder %s393, 15
        %s397 = scalar_select %p396, %s393, 15
        %s398 = smul.addr %s395, 32
        %s399 = sadd.s32 %s397, %s398
        %s400 = smul.addr %s399, 4
        %s401 = scalar_lea.vmem %s1, %s400
        %s402 = smul.u32 16, %s26
      $region56: #{gpt_forward.6} parent=47 // pred_fallthru
        _
      // Predicated region
      $region57: #{gpt_forward.6} parent=47 // pred_check
        %p403 = pneg %p106
      $region58: #{gpt_forward.6} parent=47 // pred_check_branch
        %405 = sbr.rel (%p403) target = $region60
      $region59: #{gpt_forward.6} parent=47 // pred_region
        %p406 = scmp.lt.s32.totalorder %s25, 3
        %s407 = scalar_select %p406, %s25, 3
        %s408 = smul.addr %s407, 32
        %s409 = smul.addr %s408, 4
        %s410 = scalar_lea.vmem %s2, %s409
      $region60: #{gpt_forward.6} parent=47 // pred_fallthru
        _
      // Predicated region
      $region61: #{gpt_forward.6} parent=47 // pred_check
        %p411 = pneg %p132
      $region62: #{gpt_forward.6} parent=47 // pred_check_branch
        %413 = sbr.rel (%p411) target = $region64
      $region63: #{gpt_forward.6} parent=47 // pred_region
        %p414 = scmp.lt.s32.totalorder %s25, 3
        %s415 = scalar_select %p414, %s25, 3
        %s416 = smul.addr %s415, 32
        %s417 = smul.addr %s416, 4
        %s418 = scalar_lea.vmem %s3, %s417
      $region64: #{gpt_forward.6} parent=47 // pred_fallthru
        _
    $region48: #{gpt_forward.6} parent=5 // pred_fallthru
      _
    %p419 = scmp.le.s32.totalorder 1, %s18
    %p420 = scmp.lt.s32.totalorder %s18, 5
    %p421 = pnand %p419, %p420
    %p422 = pneg %p421
    // Predicated region
    $region65: #{gpt_forward.6} parent=5 // pred_check
      _
    $region66: #{gpt_forward.6} parent=5 // pred_check_branch
      %424 = sbr.rel (%p421) target = $region68
    $region67: #{gpt_forward.6} parent=5 // pred_region
      %s425 = ssub.s32 %s18, 1
      %s426 = smul.u32 16, %s28
      %p427 = scmp.lt.s32.totalorder %s27, 3
      %s428 = scalar_select %p427, %s27, 3
      %p429 = scmp.lt.s32.totalorder %s426, 15
      %s430 = scalar_select %p429, %s426, 15
      %s431 = smul.addr %s428, 16
      %s432 = sadd.s32 %s430, %s431
      %s433 = smul.addr %s432, 4
      %s434 = scalar_lea.vmem %s0, %s433
      %p435 = pneg %p58
      %p436 = pneg %p55
      %s437 = smul.u32 16, %s28
      %p438 = scmp.lt.s32.totalorder %s27, 3
      %s439 = scalar_select %p438, %s27, 3
      %p440 = scmp.lt.s32.totalorder %s437, 15
      %s441 = scalar_select %p440, %s437, 15
      %s442 = smul.addr %s439, 32
      %s443 = sadd.s32 %s441, %s442
      %s444 = smul.addr %s443, 4
      %s445 = scalar_lea.vmem %s1, %s444
      %p446 = pneg %p86
      %p447 = pneg %p83
      %p448 = scmp.lt.s32.totalorder %s27, 3
      %s449 = scalar_select %p448, %s27, 3
      %s450 = smul.addr %s449, 32
      %s451 = smul.addr %s450, 4
      %s452 = scalar_lea.vmem %s2, %s451
      %p453 = pneg %p112
      %p454 = pneg %p109
      %p455 = scmp.lt.s32.totalorder %s27, 3
      %s456 = scalar_select %p455, %s27, 3
      %s457 = smul.addr %s456, 32
      %s458 = smul.addr %s457, 4
      %s459 = scalar_lea.vmem %s3, %s458
      %p460 = pneg %p138
      %p461 = pneg %p135
      %p462 = pneg %p159
      %p463 = pneg %p156
      %p464 = pneg %p180
      %p465 = pneg %p177
      %p466 = pneg %p201
      %p467 = pneg %p198
      %p468 = pneg %p222
      %p469 = pneg %p219
      %p470 = pneg %p243
      %p471 = pneg %p240
      %p472 = pneg %p264
      %p473 = pneg %p261
      %p474 = pneg %p285
      %p475 = pneg %p282
      %p476 = pneg %p306
      %p477 = pneg %p303
      %p478 = pneg %p334
      %p479 = pneg %p331
      %s480 = smul.u32 16, %s28
      %p481 = scmp.lt.s32.totalorder %s27, 3
      %s482 = scalar_select %p481, %s27, 3
      %p483 = scmp.lt.s32.totalorder %s480, 15
      %s484 = scalar_select %p483, %s480, 15
      %s485 = smul.addr %s482, 16
      %s486 = sadd.s32 %s484, %s485
      %s487 = smul.addr %s486, 4
      %s488 = scalar_lea.vmem %s12, %s487
      %s489 = smul.u32 16, %s28
      %p490 = scmp.lt.s32.totalorder %s27, 3
      %s491 = scalar_select %p490, %s27, 3
      %p492 = scmp.lt.s32.totalorder %s489, 15
      %s493 = scalar_select %p492, %s489, 15
      %s494 = smul.addr %s491, 16
      %s495 = sadd.s32 %s493, %s494
      %s496 = smul.addr %s495, 4
      %s497 = scalar_lea.vmem %s0, %s496
      %s498 = smul.u32 16, %s28
      %s499 = smul.u32 16, %s28
      %p500 = scmp.lt.s32.totalorder %s27, 3
      %s501 = scalar_select %p500, %s27, 3
      %p502 = scmp.lt.s32.totalorder %s499, 15
      %s503 = scalar_select %p502, %s499, 15
      %s504 = smul.addr %s501, 32
      %s505 = sadd.s32 %s503, %s504
      %s506 = smul.addr %s505, 4
      %s507 = scalar_lea.vmem %s1, %s506
      %s508 = smul.u32 16, %s28
      %p509 = scmp.lt.s32.totalorder %s27, 3
      %s510 = scalar_select %p509, %s27, 3
      %s511 = smul.addr %s510, 32
      %s512 = smul.addr %s511, 4
      %s513 = scalar_lea.vmem %s2, %s512
      %p514 = scmp.lt.s32.totalorder %s27, 3
      %s515 = scalar_select %p514, %s27, 3
      %s516 = smul.addr %s515, 32
      %s517 = smul.addr %s516, 4
      %s518 = scalar_lea.vmem %s3, %s517
      %s519 = smul.u32 16, %s28
      %p520 = scmp.lt.s32.totalorder %s27, 3
      %s521 = scalar_select %p520, %s27, 3
      %p522 = scmp.lt.s32.totalorder %s519, 15
      %s523 = scalar_select %p522, %s519, 15
      %s524 = smul.addr %s521, 16
      %s525 = sadd.s32 %s523, %s524
      %s526 = smul.addr %s525, 4
      %s527 = scalar_lea.vmem %s12, %s526
      %s528 = smul.u32 16, %s28
      %v530 = vld [vmem:[%s497] sm:$0xf]
      %v531 = vld [vmem:[%s497 + $0x4] sm:$0xf]
      %v532 = vld [vmem:[%s497 + $0x8] sm:$0xf]
      %v533 = vld [vmem:[%s497 + $0xc] sm:$0xf]
      %v534 = vld [vmem:[%s497 + $0x10] sm:$0xf]
      %v535 = vld [vmem:[%s497 + $0x14] sm:$0xf]
      %v536 = vld [vmem:[%s497 + $0x18] sm:$0xf]
      %v537 = vld [vmem:[%s497 + $0x1c] sm:$0xf]
      %v538 = vld [vmem:[%s497 + $0x20] sm:$0xf]
      %v539 = vld [vmem:[%s497 + $0x24] sm:$0xf]
      %v540 = vld [vmem:[%s497 + $0x28] sm:$0xf]
      %v541 = vld [vmem:[%s497 + $0x2c] sm:$0xf]
      %v542 = vld [vmem:[%s497 + $0x30] sm:$0xf]
      %v543 = vld [vmem:[%s497 + $0x34] sm:$0xf]
      %v544 = vld [vmem:[%s497 + $0x38] sm:$0xf]
      %v545 = vld [vmem:[%s497 + $0x3c] sm:$0xf]
      %v546 = vunpack.c.l.bf16 %v530
      %v547 = vunpack.c.l.bf16 %v531
      %v548 = vunpack.c.l.bf16 %v532
      %v549 = vunpack.c.l.bf16 %v533
      %v550 = vunpack.c.l.bf16 %v534
      %v551 = vunpack.c.l.bf16 %v535
      %v552 = vunpack.c.l.bf16 %v536
      %v553 = vunpack.c.l.bf16 %v537
      %v554 = vunpack.c.l.bf16 %v538
      %v555 = vunpack.c.l.bf16 %v539
      %v556 = vunpack.c.l.bf16 %v540
      %v557 = vunpack.c.l.bf16 %v541
      %v558 = vunpack.c.l.bf16 %v542
      %v559 = vunpack.c.l.bf16 %v543
      %v560 = vunpack.c.l.bf16 %v544
      %v561 = vunpack.c.l.bf16 %v545
      %s562 = smul.u32 %s28, 128
      %v563 = vlaneseq
      %v564 = vshrl.u32 %v563, 7
      %v565 = vadd.s32 %v564, 8
      %v566 = vadd.s32 %v564, 16
      %v567 = vadd.s32 %v564, 24
      %v568 = vadd.s32 %v564, 32
      %v569 = vadd.s32 %v564, 40
      %v570 = vadd.s32 %v564, 48
      %v571 = vadd.s32 %v564, 56
      %v572 = vadd.s32 %v564, 64
      %v573 = vadd.s32 %v564, 72
      %v574 = vadd.s32 %v564, 80
      %v575 = vadd.s32 %v564, 88
      %v576 = vadd.s32 %v564, 96
      %v577 = vadd.s32 %v564, 104
      %v578 = vadd.s32 %v564, 112
      %v579 = vadd.s32 %v564, 120
      %v580 = vstv %s562
      %v581 = vadd.s32 %v580, %v564
      %v582 = vadd.s32 %v580, %v565
      %v583 = vadd.s32 %v580, %v566
      %v584 = vadd.s32 %v580, %v567
      %v585 = vadd.s32 %v580, %v568
      %v586 = vadd.s32 %v580, %v569
      %v587 = vadd.s32 %v580, %v570
      %v588 = vadd.s32 %v580, %v571
      %v589 = vadd.s32 %v580, %v572
      %v590 = vadd.s32 %v580, %v573
      %v591 = vadd.s32 %v580, %v574
      %v592 = vadd.s32 %v580, %v575
      %v593 = vadd.s32 %v580, %v576
      %v594 = vadd.s32 %v580, %v577
      %v595 = vadd.s32 %v580, %v578
      %v596 = vadd.s32 %v580, %v579
      %v597 = vlaneseq
      %v598 = vand.u32 %v597, 127
      %vm599 = vcmp.le.s32.totalorder %v598, %v581
      %vm600 = vcmp.le.s32.totalorder %v598, %v582
      %vm601 = vcmp.le.s32.totalorder %v598, %v583
      %vm602 = vcmp.le.s32.totalorder %v598, %v584
      %vm603 = vcmp.le.s32.totalorder %v598, %v585
      %vm604 = vcmp.le.s32.totalorder %v598, %v586
      %vm605 = vcmp.le.s32.totalorder %v598, %v587
      %vm606 = vcmp.le.s32.totalorder %v598, %v588
      %vm607 = vcmp.le.s32.totalorder %v598, %v589
      %vm608 = vcmp.le.s32.totalorder %v598, %v590
      %vm609 = vcmp.le.s32.totalorder %v598, %v591
      %vm610 = vcmp.le.s32.totalorder %v598, %v592
      %vm611 = vcmp.le.s32.totalorder %v598, %v593
      %vm612 = vcmp.le.s32.totalorder %v598, %v594
      %vm613 = vcmp.le.s32.totalorder %v598, %v595
      %vm614 = vcmp.le.s32.totalorder %v598, %v596
      %v615 = vld [vmem:[%s507] sm:$0xf]
      %v616 = vld [vmem:[%s507 + $0x4] sm:$0xf]
      %v617 = vld [vmem:[%s507 + $0x8] sm:$0xf]
      %v618 = vld [vmem:[%s507 + $0xc] sm:$0xf]
      %v619 = vld [vmem:[%s507 + $0x10] sm:$0xf]
      %v620 = vld [vmem:[%s507 + $0x14] sm:$0xf]
      %v621 = vld [vmem:[%s507 + $0x18] sm:$0xf]
      %v622 = vld [vmem:[%s507 + $0x1c] sm:$0xf]
      %v623 = vld [vmem:[%s507 + $0x20] sm:$0xf]
      %v624 = vld [vmem:[%s507 + $0x24] sm:$0xf]
      %v625 = vld [vmem:[%s507 + $0x28] sm:$0xf]
      %v626 = vld [vmem:[%s507 + $0x2c] sm:$0xf]
      %v627 = vld [vmem:[%s507 + $0x30] sm:$0xf]
      %v628 = vld [vmem:[%s507 + $0x34] sm:$0xf]
      %v629 = vld [vmem:[%s507 + $0x38] sm:$0xf]
      %v630 = vld [vmem:[%s507 + $0x3c] sm:$0xf]
      %v631 = vld [vmem:[%s513] sm:$0xf]
      %v632 = vld [vmem:[%s513 + $0x4] sm:$0xf]
      %v633 = vld [vmem:[%s513 + $0x8] sm:$0xf]
      %v634 = vld [vmem:[%s513 + $0xc] sm:$0xf]
      %v635 = vld [vmem:[%s513 + $0x10] sm:$0xf]
      %v636 = vld [vmem:[%s513 + $0x14] sm:$0xf]
      %v637 = vld [vmem:[%s513 + $0x18] sm:$0xf]
      %v638 = vld [vmem:[%s513 + $0x1c] sm:$0xf]
      %v639 = vld [vmem:[%s513 + $0x20] sm:$0xf]
      %v640 = vld [vmem:[%s513 + $0x24] sm:$0xf]
      %v641 = vld [vmem:[%s513 + $0x28] sm:$0xf]
      %v642 = vld [vmem:[%s513 + $0x2c] sm:$0xf]
      %v643 = vld [vmem:[%s513 + $0x30] sm:$0xf]
      %v644 = vld [vmem:[%s513 + $0x34] sm:$0xf]
      %v645 = vld [vmem:[%s513 + $0x38] sm:$0xf]
      %v646 = vld [vmem:[%s513 + $0x3c] sm:$0xf]
      %v647 = vld [vmem:[%s518] sm:$0xf]
      %v648 = vld [vmem:[%s518 + $0x4] sm:$0xf]
      %v649 = vld [vmem:[%s518 + $0x8] sm:$0xf]
      %v650 = vld [vmem:[%s518 + $0xc] sm:$0xf]
      %v651 = vld [vmem:[%s518 + $0x10] sm:$0xf]
      %v652 = vld [vmem:[%s518 + $0x14] sm:$0xf]
      %v653 = vld [vmem:[%s518 + $0x18] sm:$0xf]
      %v654 = vld [vmem:[%s518 + $0x1c] sm:$0xf]
      %v655 = vld [vmem:[%s518 + $0x20] sm:$0xf]
      %v656 = vld [vmem:[%s518 + $0x24] sm:$0xf]
      %v657 = vld [vmem:[%s518 + $0x28] sm:$0xf]
      %v658 = vld [vmem:[%s518 + $0x2c] sm:$0xf]
      %v659 = vld [vmem:[%s518 + $0x30] sm:$0xf]
      %v660 = vld [vmem:[%s518 + $0x34] sm:$0xf]
      %v661 = vld [vmem:[%s518 + $0x38] sm:$0xf]
      %v662 = vld [vmem:[%s518 + $0x3c] sm:$0xf]
      %v679 = vunpack.c.l.b16 %v615
      %v680 = vunpack.c.l.b16 %v616
      %v681 = vunpack.c.l.b16 %v617
      %v682 = vunpack.c.l.b16 %v618
      %v683 = vunpack.c.l.b16 %v619
      %v684 = vunpack.c.l.b16 %v620
      %v685 = vunpack.c.l.b16 %v621
      %v686 = vunpack.c.l.b16 %v622
      %v687 = vunpack.c.l.b16 %v623
      %v688 = vunpack.c.l.b16 %v624
      %v689 = vunpack.c.l.b16 %v625
      %v690 = vunpack.c.l.b16 %v626
      %v691 = vunpack.c.l.b16 %v627
      %v692 = vunpack.c.l.b16 %v628
      %v693 = vunpack.c.l.b16 %v629
      %v694 = vunpack.c.l.b16 %v630
      %v695 = vpack.c.b16 %v680, %v679
      %v696 = vpack.c.b16 %v682, %v681
      %v697 = vpack.c.b16 %v684, %v683
      %v698 = vpack.c.b16 %v686, %v685
      %v699 = vpack.c.b16 %v688, %v687
      %v700 = vpack.c.b16 %v690, %v689
      %v701 = vpack.c.b16 %v692, %v691
      %v702 = vpack.c.b16 %v694, %v693
      %v719 = vunpack.c.l.b16 %v631
      %v720 = vunpack.c.l.b16 %v632
      %v721 = vunpack.c.l.b16 %v633
      %v722 = vunpack.c.l.b16 %v634
      %v723 = vunpack.c.l.b16 %v635
      %v724 = vunpack.c.l.b16 %v636
      %v725 = vunpack.c.l.b16 %v637
      %v726 = vunpack.c.l.b16 %v638
      %v727 = vunpack.c.l.b16 %v639
      %v728 = vunpack.c.l.b16 %v640
      %v729 = vunpack.c.l.b16 %v641
      %v730 = vunpack.c.l.b16 %v642
      %v731 = vunpack.c.l.b16 %v643
      %v732 = vunpack.c.l.b16 %v644
      %v733 = vunpack.c.l.b16 %v645
      %v734 = vunpack.c.l.b16 %v646
      %v735 = vpack.c.b16 %v720, %v719
      %v736 = vpack.c.b16 %v722, %v721
      %v737 = vpack.c.b16 %v724, %v723
      %v738 = vpack.c.b16 %v726, %v725
      %v739 = vpack.c.b16 %v728, %v727
      %v740 = vpack.c.b16 %v730, %v729
      %v741 = vpack.c.b16 %v732, %v731
      %v742 = vpack.c.b16 %v734, %v733
      %vm743 = vcmask 523264
      %v745 = vsel %vm743, %v695, 0
      %v748 = vsel %vm743, %v696, 0
      %v751 = vsel %vm743, %v697, 0
      %v754 = vsel %vm743, %v698, 0
      %v757 = vsel %vm743, %v699, 0
      %v760 = vsel %vm743, %v700, 0
      %v763 = vsel %vm743, %v701, 0
      %v766 = vsel %vm743, %v702, 0
      %v769 = vsel %vm743, %v735, 0
      %v772 = vsel %vm743, %v736, 0
      %v775 = vsel %vm743, %v737, 0
      %v778 = vsel %vm743, %v738, 0
      %v781 = vsel %vm743, %v739, 0
      %v784 = vsel %vm743, %v740, 0
      %v787 = vsel %vm743, %v741, 0
      %v790 = vsel %vm743, %v742, 0
      %792 = vmatprep.subr.bf16.mxu0 0
      %793 = vmatpush1.bf16.xpose.msra.mxu0 %v790
      %794 = vmatprep.subr.bf16.mxu0 0
      %795 = vmatpush1.bf16.xpose.msra.mxu0 %v787
      %796 = vmatprep.subr.bf16.mxu0 0
      %797 = vmatpush1.bf16.xpose.msra.mxu0 %v784
      %798 = vmatprep.subr.bf16.mxu0 0
      %799 = vmatpush1.bf16.xpose.msra.mxu0 %v781
      %800 = vmatprep.subr.bf16.mxu0 0
      %801 = vmatpush1.bf16.xpose.msra.mxu0 %v778
      %802 = vmatprep.subr.bf16.mxu0 0
      %803 = vmatpush1.bf16.xpose.msra.mxu0 %v775
      %804 = vmatprep.subr.bf16.mxu0 0
      %805 = vmatpush1.bf16.xpose.msra.mxu0 %v772
      %806 = vmatprep.subr.bf16.mxu0 0
      %807 = vmatpush1.bf16.xpose.msra.mxu0 %v769
      %808 = vmatprep.subr.bf16.mxu0 0
      %809 = vmatpush2.bf16.xpose.msra.mxu0 0
      %810 = vmatprep.subr.bf16.mxu0 0
      %811 = vmatpush2.bf16.xpose.msra.mxu0 0
      %812 = vmatprep.subr.bf16.mxu0 0
      %813 = vmatpush2.bf16.xpose.msra.mxu0 0
      %814 = vmatprep.subr.bf16.mxu0 0
      %815 = vmatpush2.bf16.xpose.msra.mxu0 0
      %816 = vmatprep.subr.bf16.mxu0 0
      %817 = vmatpush2.bf16.xpose.msra.mxu0 0
      %818 = vmatprep.subr.bf16.mxu0 0
      %819 = vmatpush2.bf16.xpose.msra.mxu0 0
      %820 = vmatprep.subr.bf16.mxu0 0
      %821 = vmatpush2.bf16.xpose.msra.mxu0 0
      %822 = vmatprep.subr.bf16.mxu0 0
      %823 = vmatpush2.bf16.xpose.msra.mxu0 0
      %824 = vmatprep.mubr.bf16.mxu0 0
      %825 = vmatmul.mubr.bf16.gmra.mxu0 %v745
      %v826 = vpop.f32.mrf.mxu0
      %v827 = vadd.f32 0.0, %v826
      %v828 = vpop.f32.mrf.mxu0
      %v829 = vpop.f32.mrf.mxu0
      %v830 = vadd.f32 0.0, %v829
      %v831 = vpop.f32.mrf.mxu0
      %832 = vmatprep.mubr.bf16.mxu0 0
      %833 = vmatmul.mubr.bf16.gmra.mxu0 %v748
      %v834 = vpop.f32.mrf.mxu0
      %v835 = vadd.f32 0.0, %v834
      %v836 = vpop.f32.mrf.mxu0
      %v837 = vpop.f32.mrf.mxu0
      %v838 = vadd.f32 0.0, %v837
      %v839 = vpop.f32.mrf.mxu0
      %840 = vmatprep.mubr.bf16.mxu0 0
      %841 = vmatmul.mubr.bf16.gmra.mxu0 %v751
      %v842 = vpop.f32.mrf.mxu0
      %v843 = vadd.f32 0.0, %v842
      %v844 = vpop.f32.mrf.mxu0
      %v845 = vpop.f32.mrf.mxu0
      %v846 = vadd.f32 0.0, %v845
      %v847 = vpop.f32.mrf.mxu0
      %848 = vmatprep.mubr.bf16.mxu0 0
      %849 = vmatmul.mubr.bf16.gmra.mxu0 %v754
      %v850 = vpop.f32.mrf.mxu0
      %v851 = vadd.f32 0.0, %v850
      %v852 = vpop.f32.mrf.mxu0
      %v853 = vpop.f32.mrf.mxu0
      %v854 = vadd.f32 0.0, %v853
      %v855 = vpop.f32.mrf.mxu0
      %856 = vmatprep.mubr.bf16.mxu0 0
      %857 = vmatmul.mubr.bf16.gmra.mxu0 %v757
      %v858 = vpop.f32.mrf.mxu0
      %v859 = vadd.f32 0.0, %v858
      %v860 = vpop.f32.mrf.mxu0
      %v861 = vpop.f32.mrf.mxu0
      %v862 = vadd.f32 0.0, %v861
      %v863 = vpop.f32.mrf.mxu0
      %864 = vmatprep.mubr.bf16.mxu0 0
      %865 = vmatmul.mubr.bf16.gmra.mxu0 %v760
      %v866 = vpop.f32.mrf.mxu0
      %v867 = vadd.f32 0.0, %v866
      %v868 = vpop.f32.mrf.mxu0
      %v869 = vpop.f32.mrf.mxu0
      %v870 = vadd.f32 0.0, %v869
      %v871 = vpop.f32.mrf.mxu0
      %872 = vmatprep.mubr.bf16.mxu0 0
      %873 = vmatmul.mubr.bf16.gmra.mxu0 %v763
      %v874 = vpop.f32.mrf.mxu0
      %v875 = vadd.f32 0.0, %v874
      %v876 = vpop.f32.mrf.mxu0
      %v877 = vpop.f32.mrf.mxu0
      %v878 = vadd.f32 0.0, %v877
      %v879 = vpop.f32.mrf.mxu0
      %880 = vmatprep.mubr.bf16.mxu0 0
      %881 = vmatmul.mubr.bf16.gmra.mxu0 %v766
      %v882 = vpop.f32.mrf.mxu0
      %v883 = vadd.f32 0.0, %v882
      %v884 = vpop.f32.mrf.mxu0
      %v885 = vpop.f32.mrf.mxu0
      %v886 = vadd.f32 0.0, %v885
      %v887 = vpop.f32.mrf.mxu0
      %888 = vdwg.mxu0
      %v889 = vmul.f32 %v827, 0.125
      %v890 = vmul.f32 %v830, 0.125
      %v891 = vmul.f32 %v835, 0.125
      %v892 = vmul.f32 %v838, 0.125
      %v893 = vmul.f32 %v843, 0.125
      %v894 = vmul.f32 %v846, 0.125
      %v895 = vmul.f32 %v851, 0.125
      %v896 = vmul.f32 %v854, 0.125
      %v897 = vmul.f32 %v859, 0.125
      %v898 = vmul.f32 %v862, 0.125
      %v899 = vmul.f32 %v867, 0.125
      %v900 = vmul.f32 %v870, 0.125
      %v901 = vmul.f32 %v875, 0.125
      %v902 = vmul.f32 %v878, 0.125
      %v903 = vmul.f32 %v883, 0.125
      %v904 = vmul.f32 %v886, 0.125
      %v905 = vsel %vm599, %v889, -inf
      %v906 = vsel %vm600, %v890, -inf
      %v907 = vsel %vm601, %v891, -inf
      %v908 = vsel %vm602, %v892, -inf
      %v909 = vsel %vm603, %v893, -inf
      %v910 = vsel %vm604, %v894, -inf
      %v911 = vsel %vm605, %v895, -inf
      %v912 = vsel %vm606, %v896, -inf
      %v913 = vsel %vm607, %v897, -inf
      %v914 = vsel %vm608, %v898, -inf
      %v915 = vsel %vm609, %v899, -inf
      %v916 = vsel %vm610, %v900, -inf
      %v917 = vsel %vm611, %v901, -inf
      %v918 = vsel %vm612, %v902, -inf
      %v919 = vsel %vm613, %v903, -inf
      %v920 = vsel %vm614, %v904, -inf
      %921 = vmax.xlane.f32.xlu0 %v905
      %v922 = vpop.xlane.xlu0 %921
      %923 = vmax.xlane.f32.xlu0 %v906
      %v924 = vpop.xlane.xlu0 %923
      %925 = vmax.xlane.f32.xlu0 %v907
      %v926 = vpop.xlane.xlu0 %925
      %927 = vmax.xlane.f32.xlu0 %v908
      %v928 = vpop.xlane.xlu0 %927
      %929 = vmax.xlane.f32.xlu0 %v909
      %v930 = vpop.xlane.xlu0 %929
      %931 = vmax.xlane.f32.xlu0 %v910
      %v932 = vpop.xlane.xlu0 %931
      %933 = vmax.xlane.f32.xlu0 %v911
      %v934 = vpop.xlane.xlu0 %933
      %935 = vmax.xlane.f32.xlu0 %v912
      %v936 = vpop.xlane.xlu0 %935
      %937 = vmax.xlane.f32.xlu0 %v913
      %v938 = vpop.xlane.xlu0 %937
      %939 = vmax.xlane.f32.xlu0 %v914
      %v940 = vpop.xlane.xlu0 %939
      %941 = vmax.xlane.f32.xlu0 %v915
      %v942 = vpop.xlane.xlu0 %941
      %943 = vmax.xlane.f32.xlu0 %v916
      %v944 = vpop.xlane.xlu0 %943
      %945 = vmax.xlane.f32.xlu0 %v917
      %v946 = vpop.xlane.xlu0 %945
      %947 = vmax.xlane.f32.xlu0 %v918
      %v948 = vpop.xlane.xlu0 %947
      %949 = vmax.xlane.f32.xlu0 %v919
      %v950 = vpop.xlane.xlu0 %949
      %951 = vmax.xlane.f32.xlu0 %v920
      %v952 = vpop.xlane.xlu0 %951
      %v953 = vsub.f32 %v905, %v922
      %v954 = vsub.f32 %v906, %v924
      %v955 = vsub.f32 %v907, %v926
      %v956 = vsub.f32 %v908, %v928
      %v957 = vsub.f32 %v909, %v930
      %v958 = vsub.f32 %v910, %v932
      %v959 = vsub.f32 %v911, %v934
      %v960 = vsub.f32 %v912, %v936
      %v961 = vsub.f32 %v913, %v938
      %v962 = vsub.f32 %v914, %v940
      %v963 = vsub.f32 %v915, %v942
      %v964 = vsub.f32 %v916, %v944
      %v965 = vsub.f32 %v917, %v946
      %v966 = vsub.f32 %v918, %v948
      %v967 = vsub.f32 %v919, %v950
      %v968 = vsub.f32 %v920, %v952
      %v969 = vmul.f32 %v953, 1.442695
      %v970 = vpow.pop %v969
      %v971 = vmul.f32 %v954, 1.442695
      %v972 = vpow.pop %v971
      %v973 = vmul.f32 %v955, 1.442695
      %v974 = vpow.pop %v973
      %v975 = vmul.f32 %v956, 1.442695
      %v976 = vpow.pop %v975
      %v977 = vmul.f32 %v957, 1.442695
      %v978 = vpow.pop %v977
      %v979 = vmul.f32 %v958, 1.442695
      %v980 = vpow.pop %v979
      %v981 = vmul.f32 %v959, 1.442695
      %v982 = vpow.pop %v981
      %v983 = vmul.f32 %v960, 1.442695
      %v984 = vpow.pop %v983
      %v985 = vmul.f32 %v961, 1.442695
      %v986 = vpow.pop %v985
      %v987 = vmul.f32 %v962, 1.442695
      %v988 = vpow.pop %v987
      %v989 = vmul.f32 %v963, 1.442695
      %v990 = vpow.pop %v989
      %v991 = vmul.f32 %v964, 1.442695
      %v992 = vpow.pop %v991
      %v993 = vmul.f32 %v965, 1.442695
      %v994 = vpow.pop %v993
      %v995 = vmul.f32 %v966, 1.442695
      %v996 = vpow.pop %v995
      %v997 = vmul.f32 %v967, 1.442695
      %v998 = vpow.pop %v997
      %v999 = vmul.f32 %v968, 1.442695
      %v1000 = vpow.pop %v999
      %1001 = vadd.xlane.f32.xlu0 %v970
      %v1002 = vpop.xlane.xlu0 %1001
      %1003 = vadd.xlane.f32.xlu0 %v972
      %v1004 = vpop.xlane.xlu0 %1003
      %1005 = vadd.xlane.f32.xlu0 %v974
      %v1006 = vpop.xlane.xlu0 %1005
      %1007 = vadd.xlane.f32.xlu0 %v976
      %v1008 = vpop.xlane.xlu0 %1007
      %1009 = vadd.xlane.f32.xlu0 %v978
      %v1010 = vpop.xlane.xlu0 %1009
      %1011 = vadd.xlane.f32.xlu0 %v980
      %v1012 = vpop.xlane.xlu0 %1011
      %1013 = vadd.xlane.f32.xlu0 %v982
      %v1014 = vpop.xlane.xlu0 %1013
      %1015 = vadd.xlane.f32.xlu0 %v984
      %v1016 = vpop.xlane.xlu0 %1015
      %1017 = vadd.xlane.f32.xlu0 %v986
      %v1018 = vpop.xlane.xlu0 %1017
      %1019 = vadd.xlane.f32.xlu0 %v988
      %v1020 = vpop.xlane.xlu0 %1019
      %1021 = vadd.xlane.f32.xlu0 %v990
      %v1022 = vpop.xlane.xlu0 %1021
      %1023 = vadd.xlane.f32.xlu0 %v992
      %v1024 = vpop.xlane.xlu0 %1023
      %1025 = vadd.xlane.f32.xlu0 %v994
      %v1026 = vpop.xlane.xlu0 %1025
      %1027 = vadd.xlane.f32.xlu0 %v996
      %v1028 = vpop.xlane.xlu0 %1027
      %1029 = vadd.xlane.f32.xlu0 %v998
      %v1030 = vpop.xlane.xlu0 %1029
      %1031 = vadd.xlane.f32.xlu0 %v1000
      %v1032 = vpop.xlane.xlu0 %1031
      %v1033 = vrcp.pop %v1002
      %v1034 = vrcp.pop %v1004
      %v1035 = vrcp.pop %v1006
      %v1036 = vrcp.pop %v1008
      %v1037 = vrcp.pop %v1010
      %v1038 = vrcp.pop %v1012
      %v1039 = vrcp.pop %v1014
      %v1040 = vrcp.pop %v1016
      %v1041 = vrcp.pop %v1018
      %v1042 = vrcp.pop %v1020
      %v1043 = vrcp.pop %v1022
      %v1044 = vrcp.pop %v1024
      %v1045 = vrcp.pop %v1026
      %v1046 = vrcp.pop %v1028
      %v1047 = vrcp.pop %v1030
      %v1048 = vrcp.pop %v1032
      %v1049 = vmul.f32 %v970, %v1033
      %v1050 = vmul.f32 %v972, %v1034
      %v1051 = vmul.f32 %v974, %v1035
      %v1052 = vmul.f32 %v976, %v1036
      %v1053 = vmul.f32 %v978, %v1037
      %v1054 = vmul.f32 %v980, %v1038
      %v1055 = vmul.f32 %v982, %v1039
      %v1056 = vmul.f32 %v984, %v1040
      %v1057 = vmul.f32 %v986, %v1041
      %v1058 = vmul.f32 %v988, %v1042
      %v1059 = vmul.f32 %v990, %v1043
      %v1060 = vmul.f32 %v992, %v1044
      %v1061 = vmul.f32 %v994, %v1045
      %v1062 = vmul.f32 %v996, %v1046
      %v1063 = vmul.f32 %v998, %v1047
      %v1064 = vmul.f32 %v1000, %v1048
      %v1065 = vpack.c.bf16 %v1050, %v1049
      %v1066 = vpack.c.bf16 %v1052, %v1051
      %v1067 = vpack.c.bf16 %v1054, %v1053
      %v1068 = vpack.c.bf16 %v1056, %v1055
      %v1069 = vpack.c.bf16 %v1058, %v1057
      %v1070 = vpack.c.bf16 %v1060, %v1059
      %v1071 = vpack.c.bf16 %v1062, %v1061
      %v1072 = vpack.c.bf16 %v1064, %v1063
      %v1089 = vunpack.c.l.b16 %v647
      %v1090 = vunpack.c.l.b16 %v648
      %v1091 = vunpack.c.l.b16 %v649
      %v1092 = vunpack.c.l.b16 %v650
      %v1093 = vunpack.c.l.b16 %v651
      %v1094 = vunpack.c.l.b16 %v652
      %v1095 = vunpack.c.l.b16 %v653
      %v1096 = vunpack.c.l.b16 %v654
      %v1097 = vunpack.c.l.b16 %v655
      %v1098 = vunpack.c.l.b16 %v656
      %v1099 = vunpack.c.l.b16 %v657
      %v1100 = vunpack.c.l.b16 %v658
      %v1101 = vunpack.c.l.b16 %v659
      %v1102 = vunpack.c.l.b16 %v660
      %v1103 = vunpack.c.l.b16 %v661
      %v1104 = vunpack.c.l.b16 %v662
      %v1105 = vpack.c.b16 %v1090, %v1089
      %v1106 = vpack.c.b16 %v1092, %v1091
      %v1107 = vpack.c.b16 %v1094, %v1093
      %v1108 = vpack.c.b16 %v1096, %v1095
      %v1109 = vpack.c.b16 %v1098, %v1097
      %v1110 = vpack.c.b16 %v1100, %v1099
      %v1111 = vpack.c.b16 %v1102, %v1101
      %v1112 = vpack.c.b16 %v1104, %v1103
      %1121 = vmatprep.subr.bf16.mxu0 0
      %1122 = vmatpush1.bf16.msra.mxu0 %v1112
      %1123 = vmatprep.subr.bf16.mxu0 0
      %1124 = vmatpush1.bf16.msra.mxu0 %v1111
      %1125 = vmatprep.subr.bf16.mxu0 0
      %1126 = vmatpush1.bf16.msra.mxu0 %v1110
      %1127 = vmatprep.subr.bf16.mxu0 0
      %1128 = vmatpush1.bf16.msra.mxu0 %v1109
      %1129 = vmatprep.subr.bf16.mxu0 0
      %1130 = vmatpush1.bf16.msra.mxu0 %v1108
      %1131 = vmatprep.subr.bf16.mxu0 0
      %1132 = vmatpush1.bf16.msra.mxu0 %v1107
      %1133 = vmatprep.subr.bf16.mxu0 0
      %1134 = vmatpush1.bf16.msra.mxu0 %v1106
      %1135 = vmatprep.subr.bf16.mxu0 0
      %1136 = vmatpush1.bf16.msra.mxu0 %v1105
      %1137 = vmatprep.subr.bf16.mxu0 0
      %1138 = vmatpush2.bf16.msra.mxu0 0
      %1139 = vmatprep.subr.bf16.mxu0 0
      %1140 = vmatpush2.bf16.msra.mxu0 0
      %1141 = vmatprep.subr.bf16.mxu0 0
      %1142 = vmatpush2.bf16.msra.mxu0 0
      %1143 = vmatprep.subr.bf16.mxu0 0
      %1144 = vmatpush2.bf16.msra.mxu0 0
      %1145 = vmatprep.subr.bf16.mxu0 0
      %1146 = vmatpush2.bf16.msra.mxu0 0
      %1147 = vmatprep.subr.bf16.mxu0 0
      %1148 = vmatpush2.bf16.msra.mxu0 0
      %1149 = vmatprep.subr.bf16.mxu0 0
      %1150 = vmatpush2.bf16.msra.mxu0 0
      %1151 = vmatprep.subr.bf16.mxu0 0
      %1152 = vmatpush2.bf16.msra.mxu0 0
      %1153 = vmatprep.mubr.bf16.mxu0 0
      %1154 = vmatmul.mubr.bf16.gmra.mxu0 %v1065
      %v1155 = vpop.f32.mrf.mxu0
      %v1156 = vadd.f32 0.0, %v1155
      %v1157 = vpop.f32.mrf.mxu0
      %v1158 = vpop.f32.mrf.mxu0
      %v1159 = vadd.f32 0.0, %v1158
      %v1160 = vpop.f32.mrf.mxu0
      %1161 = vmatprep.mubr.bf16.mxu0 0
      %1162 = vmatmul.mubr.bf16.gmra.mxu0 %v1066
      %v1163 = vpop.f32.mrf.mxu0
      %v1164 = vadd.f32 0.0, %v1163
      %v1165 = vpop.f32.mrf.mxu0
      %v1166 = vpop.f32.mrf.mxu0
      %v1167 = vadd.f32 0.0, %v1166
      %v1168 = vpop.f32.mrf.mxu0
      %1169 = vmatprep.mubr.bf16.mxu0 0
      %1170 = vmatmul.mubr.bf16.gmra.mxu0 %v1067
      %v1171 = vpop.f32.mrf.mxu0
      %v1172 = vadd.f32 0.0, %v1171
      %v1173 = vpop.f32.mrf.mxu0
      %v1174 = vpop.f32.mrf.mxu0
      %v1175 = vadd.f32 0.0, %v1174
      %v1176 = vpop.f32.mrf.mxu0
      %1177 = vmatprep.mubr.bf16.mxu0 0
      %1178 = vmatmul.mubr.bf16.gmra.mxu0 %v1068
      %v1179 = vpop.f32.mrf.mxu0
      %v1180 = vadd.f32 0.0, %v1179
      %v1181 = vpop.f32.mrf.mxu0
      %v1182 = vpop.f32.mrf.mxu0
      %v1183 = vadd.f32 0.0, %v1182
      %v1184 = vpop.f32.mrf.mxu0
      %1185 = vmatprep.mubr.bf16.mxu0 0
      %1186 = vmatmul.mubr.bf16.gmra.mxu0 %v1069
      %v1187 = vpop.f32.mrf.mxu0
      %v1188 = vadd.f32 0.0, %v1187
      %v1189 = vpop.f32.mrf.mxu0
      %v1190 = vpop.f32.mrf.mxu0
      %v1191 = vadd.f32 0.0, %v1190
      %v1192 = vpop.f32.mrf.mxu0
      %1193 = vmatprep.mubr.bf16.mxu0 0
      %1194 = vmatmul.mubr.bf16.gmra.mxu0 %v1070
      %v1195 = vpop.f32.mrf.mxu0
      %v1196 = vadd.f32 0.0, %v1195
      %v1197 = vpop.f32.mrf.mxu0
      %v1198 = vpop.f32.mrf.mxu0
      %v1199 = vadd.f32 0.0, %v1198
      %v1200 = vpop.f32.mrf.mxu0
      %1201 = vmatprep.mubr.bf16.mxu0 0
      %1202 = vmatmul.mubr.bf16.gmra.mxu0 %v1071
      %v1203 = vpop.f32.mrf.mxu0
      %v1204 = vadd.f32 0.0, %v1203
      %v1205 = vpop.f32.mrf.mxu0
      %v1206 = vpop.f32.mrf.mxu0
      %v1207 = vadd.f32 0.0, %v1206
      %v1208 = vpop.f32.mrf.mxu0
      %1209 = vmatprep.mubr.bf16.mxu0 0
      %1210 = vmatmul.mubr.bf16.gmra.mxu0 %v1072
      %v1211 = vpop.f32.mrf.mxu0
      %v1212 = vadd.f32 0.0, %v1211
      %v1213 = vpop.f32.mrf.mxu0
      %v1214 = vpop.f32.mrf.mxu0
      %v1215 = vadd.f32 0.0, %v1214
      %v1216 = vpop.f32.mrf.mxu0
      %1217 = vdwg.mxu0
      %s1218 = scalar_lea.vmem %s507, 64
      %v1219 = vld [vmem:[%s1218] sm:$0xf]
      %v1220 = vld [vmem:[%s1218 + $0x4] sm:$0xf]
      %v1221 = vld [vmem:[%s1218 + $0x8] sm:$0xf]
      %v1222 = vld [vmem:[%s1218 + $0xc] sm:$0xf]
      %v1223 = vld [vmem:[%s1218 + $0x10] sm:$0xf]
      %v1224 = vld [vmem:[%s1218 + $0x14] sm:$0xf]
      %v1225 = vld [vmem:[%s1218 + $0x18] sm:$0xf]
      %v1226 = vld [vmem:[%s1218 + $0x1c] sm:$0xf]
      %v1227 = vld [vmem:[%s1218 + $0x20] sm:$0xf]
      %v1228 = vld [vmem:[%s1218 + $0x24] sm:$0xf]
      %v1229 = vld [vmem:[%s1218 + $0x28] sm:$0xf]
      %v1230 = vld [vmem:[%s1218 + $0x2c] sm:$0xf]
      %v1231 = vld [vmem:[%s1218 + $0x30] sm:$0xf]
      %v1232 = vld [vmem:[%s1218 + $0x34] sm:$0xf]
      %v1233 = vld [vmem:[%s1218 + $0x38] sm:$0xf]
      %v1234 = vld [vmem:[%s1218 + $0x3c] sm:$0xf]
      %s1235 = scalar_lea.vmem %s513, 64
      %v1236 = vld [vmem:[%s1235] sm:$0xf]
      %v1237 = vld [vmem:[%s1235 + $0x4] sm:$0xf]
      %v1238 = vld [vmem:[%s1235 + $0x8] sm:$0xf]
      %v1239 = vld [vmem:[%s1235 + $0xc] sm:$0xf]
      %v1240 = vld [vmem:[%s1235 + $0x10] sm:$0xf]
      %v1241 = vld [vmem:[%s1235 + $0x14] sm:$0xf]
      %v1242 = vld [vmem:[%s1235 + $0x18] sm:$0xf]
      %v1243 = vld [vmem:[%s1235 + $0x1c] sm:$0xf]
      %v1244 = vld [vmem:[%s1235 + $0x20] sm:$0xf]
      %v1245 = vld [vmem:[%s1235 + $0x24] sm:$0xf]
      %v1246 = vld [vmem:[%s1235 + $0x28] sm:$0xf]
      %v1247 = vld [vmem:[%s1235 + $0x2c] sm:$0xf]
      %v1248 = vld [vmem:[%s1235 + $0x30] sm:$0xf]
      %v1249 = vld [vmem:[%s1235 + $0x34] sm:$0xf]
      %v1250 = vld [vmem:[%s1235 + $0x38] sm:$0xf]
      %v1251 = vld [vmem:[%s1235 + $0x3c] sm:$0xf]
      %s1252 = scalar_lea.vmem %s518, 64
      %v1253 = vld [vmem:[%s1252] sm:$0xf]
      %v1254 = vld [vmem:[%s1252 + $0x4] sm:$0xf]
      %v1255 = vld [vmem:[%s1252 + $0x8] sm:$0xf]
      %v1256 = vld [vmem:[%s1252 + $0xc] sm:$0xf]
      %v1257 = vld [vmem:[%s1252 + $0x10] sm:$0xf]
      %v1258 = vld [vmem:[%s1252 + $0x14] sm:$0xf]
      %v1259 = vld [vmem:[%s1252 + $0x18] sm:$0xf]
      %v1260 = vld [vmem:[%s1252 + $0x1c] sm:$0xf]
      %v1261 = vld [vmem:[%s1252 + $0x20] sm:$0xf]
      %v1262 = vld [vmem:[%s1252 + $0x24] sm:$0xf]
      %v1263 = vld [vmem:[%s1252 + $0x28] sm:$0xf]
      %v1264 = vld [vmem:[%s1252 + $0x2c] sm:$0xf]
      %v1265 = vld [vmem:[%s1252 + $0x30] sm:$0xf]
      %v1266 = vld [vmem:[%s1252 + $0x34] sm:$0xf]
      %v1267 = vld [vmem:[%s1252 + $0x38] sm:$0xf]
      %v1268 = vld [vmem:[%s1252 + $0x3c] sm:$0xf]
      %v1285 = vunpack.c.l.b16 %v1219
      %v1286 = vunpack.c.l.b16 %v1220
      %v1287 = vunpack.c.l.b16 %v1221
      %v1288 = vunpack.c.l.b16 %v1222
      %v1289 = vunpack.c.l.b16 %v1223
      %v1290 = vunpack.c.l.b16 %v1224
      %v1291 = vunpack.c.l.b16 %v1225
      %v1292 = vunpack.c.l.b16 %v1226
      %v1293 = vunpack.c.l.b16 %v1227
      %v1294 = vunpack.c.l.b16 %v1228
      %v1295 = vunpack.c.l.b16 %v1229
      %v1296 = vunpack.c.l.b16 %v1230
      %v1297 = vunpack.c.l.b16 %v1231
      %v1298 = vunpack.c.l.b16 %v1232
      %v1299 = vunpack.c.l.b16 %v1233
      %v1300 = vunpack.c.l.b16 %v1234
      %v1301 = vpack.c.b16 %v1286, %v1285
      %v1302 = vpack.c.b16 %v1288, %v1287
      %v1303 = vpack.c.b16 %v1290, %v1289
      %v1304 = vpack.c.b16 %v1292, %v1291
      %v1305 = vpack.c.b16 %v1294, %v1293
      %v1306 = vpack.c.b16 %v1296, %v1295
      %v1307 = vpack.c.b16 %v1298, %v1297
      %v1308 = vpack.c.b16 %v1300, %v1299
      %v1325 = vunpack.c.l.b16 %v1236
      %v1326 = vunpack.c.l.b16 %v1237
      %v1327 = vunpack.c.l.b16 %v1238
      %v1328 = vunpack.c.l.b16 %v1239
      %v1329 = vunpack.c.l.b16 %v1240
      %v1330 = vunpack.c.l.b16 %v1241
      %v1331 = vunpack.c.l.b16 %v1242
      %v1332 = vunpack.c.l.b16 %v1243
      %v1333 = vunpack.c.l.b16 %v1244
      %v1334 = vunpack.c.l.b16 %v1245
      %v1335 = vunpack.c.l.b16 %v1246
      %v1336 = vunpack.c.l.b16 %v1247
      %v1337 = vunpack.c.l.b16 %v1248
      %v1338 = vunpack.c.l.b16 %v1249
      %v1339 = vunpack.c.l.b16 %v1250
      %v1340 = vunpack.c.l.b16 %v1251
      %v1341 = vpack.c.b16 %v1326, %v1325
      %v1342 = vpack.c.b16 %v1328, %v1327
      %v1343 = vpack.c.b16 %v1330, %v1329
      %v1344 = vpack.c.b16 %v1332, %v1331
      %v1345 = vpack.c.b16 %v1334, %v1333
      %v1346 = vpack.c.b16 %v1336, %v1335
      %v1347 = vpack.c.b16 %v1338, %v1337
      %v1348 = vpack.c.b16 %v1340, %v1339
      %v1350 = vsel %vm743, %v1301, 0
      %v1353 = vsel %vm743, %v1302, 0
      %v1356 = vsel %vm743, %v1303, 0
      %v1359 = vsel %vm743, %v1304, 0
      %v1362 = vsel %vm743, %v1305, 0
      %v1365 = vsel %vm743, %v1306, 0
      %v1368 = vsel %vm743, %v1307, 0
      %v1371 = vsel %vm743, %v1308, 0
      %v1374 = vsel %vm743, %v1341, 0
      %v1377 = vsel %vm743, %v1342, 0
      %v1380 = vsel %vm743, %v1343, 0
      %v1383 = vsel %vm743, %v1344, 0
      %v1386 = vsel %vm743, %v1345, 0
      %v1389 = vsel %vm743, %v1346, 0
      %v1392 = vsel %vm743, %v1347, 0
      %v1395 = vsel %vm743, %v1348, 0
      %1397 = vmatprep.subr.bf16.mxu0 0
      %1398 = vmatpush1.bf16.xpose.msra.mxu0 %v1395
      %1399 = vmatprep.subr.bf16.mxu0 0
      %1400 = vmatpush1.bf16.xpose.msra.mxu0 %v1392
      %1401 = vmatprep.subr.bf16.mxu0 0
      %1402 = vmatpush1.bf16.xpose.msra.mxu0 %v1389
      %1403 = vmatprep.subr.bf16.mxu0 0
      %1404 = vmatpush1.bf16.xpose.msra.mxu0 %v1386
      %1405 = vmatprep.subr.bf16.mxu0 0
      %1406 = vmatpush1.bf16.xpose.msra.mxu0 %v1383
      %1407 = vmatprep.subr.bf16.mxu0 0
      %1408 = vmatpush1.bf16.xpose.msra.mxu0 %v1380
      %1409 = vmatprep.subr.bf16.mxu0 0
      %1410 = vmatpush1.bf16.xpose.msra.mxu0 %v1377
      %1411 = vmatprep.subr.bf16.mxu0 0
      %1412 = vmatpush1.bf16.xpose.msra.mxu0 %v1374
      %1413 = vmatprep.subr.bf16.mxu0 0
      %1414 = vmatpush2.bf16.xpose.msra.mxu0 0
      %1415 = vmatprep.subr.bf16.mxu0 0
      %1416 = vmatpush2.bf16.xpose.msra.mxu0 0
      %1417 = vmatprep.subr.bf16.mxu0 0
      %1418 = vmatpush2.bf16.xpose.msra.mxu0 0
      %1419 = vmatprep.subr.bf16.mxu0 0
      %1420 = vmatpush2.bf16.xpose.msra.mxu0 0
      %1421 = vmatprep.subr.bf16.mxu0 0
      %1422 = vmatpush2.bf16.xpose.msra.mxu0 0
      %1423 = vmatprep.subr.bf16.mxu0 0
      %1424 = vmatpush2.bf16.xpose.msra.mxu0 0
      %1425 = vmatprep.subr.bf16.mxu0 0
      %1426 = vmatpush2.bf16.xpose.msra.mxu0 0
      %1427 = vmatprep.subr.bf16.mxu0 0
      %1428 = vmatpush2.bf16.xpose.msra.mxu0 0
      %1429 = vmatprep.mubr.bf16.mxu0 0
      %1430 = vmatmul.mubr.bf16.gmra.mxu0 %v1350
      %v1431 = vpop.f32.mrf.mxu0
      %v1432 = vadd.f32 0.0, %v1431
      %v1433 = vpop.f32.mrf.mxu0
      %v1434 = vpop.f32.mrf.mxu0
      %v1435 = vadd.f32 0.0, %v1434
      %v1436 = vpop.f32.mrf.mxu0
      %1437 = vmatprep.mubr.bf16.mxu0 0
      %1438 = vmatmul.mubr.bf16.gmra.mxu0 %v1353
      %v1439 = vpop.f32.mrf.mxu0
      %v1440 = vadd.f32 0.0, %v1439
      %v1441 = vpop.f32.mrf.mxu0
      %v1442 = vpop.f32.mrf.mxu0
      %v1443 = vadd.f32 0.0, %v1442
      %v1444 = vpop.f32.mrf.mxu0
      %1445 = vmatprep.mubr.bf16.mxu0 0
      %1446 = vmatmul.mubr.bf16.gmra.mxu0 %v1356
      %v1447 = vpop.f32.mrf.mxu0
      %v1448 = vadd.f32 0.0, %v1447
      %v1449 = vpop.f32.mrf.mxu0
      %v1450 = vpop.f32.mrf.mxu0
      %v1451 = vadd.f32 0.0, %v1450
      %v1452 = vpop.f32.mrf.mxu0
      %1453 = vmatprep.mubr.bf16.mxu0 0
      %1454 = vmatmul.mubr.bf16.gmra.mxu0 %v1359
      %v1455 = vpop.f32.mrf.mxu0
      %v1456 = vadd.f32 0.0, %v1455
      %v1457 = vpop.f32.mrf.mxu0
      %v1458 = vpop.f32.mrf.mxu0
      %v1459 = vadd.f32 0.0, %v1458
      %v1460 = vpop.f32.mrf.mxu0
      %1461 = vmatprep.mubr.bf16.mxu0 0
      %1462 = vmatmul.mubr.bf16.gmra.mxu0 %v1362
      %v1463 = vpop.f32.mrf.mxu0
      %v1464 = vadd.f32 0.0, %v1463
      %v1465 = vpop.f32.mrf.mxu0
      %v1466 = vpop.f32.mrf.mxu0
      %v1467 = vadd.f32 0.0, %v1466
      %v1468 = vpop.f32.mrf.mxu0
      %1469 = vmatprep.mubr.bf16.mxu0 0
      %1470 = vmatmul.mubr.bf16.gmra.mxu0 %v1365
      %v1471 = vpop.f32.mrf.mxu0
      %v1472 = vadd.f32 0.0, %v1471
      %v1473 = vpop.f32.mrf.mxu0
      %v1474 = vpop.f32.mrf.mxu0
      %v1475 = vadd.f32 0.0, %v1474
      %v1476 = vpop.f32.mrf.mxu0
      %1477 = vmatprep.mubr.bf16.mxu0 0
      %1478 = vmatmul.mubr.bf16.gmra.mxu0 %v1368
      %v1479 = vpop.f32.mrf.mxu0
      %v1480 = vadd.f32 0.0, %v1479
      %v1481 = vpop.f32.mrf.mxu0
      %v1482 = vpop.f32.mrf.mxu0
      %v1483 = vadd.f32 0.0, %v1482
      %v1484 = vpop.f32.mrf.mxu0
      %1485 = vmatprep.mubr.bf16.mxu0 0
      %1486 = vmatmul.mubr.bf16.gmra.mxu0 %v1371
      %v1487 = vpop.f32.mrf.mxu0
      %v1488 = vadd.f32 0.0, %v1487
      %v1489 = vpop.f32.mrf.mxu0
      %v1490 = vpop.f32.mrf.mxu0
      %v1491 = vadd.f32 0.0, %v1490
      %v1492 = vpop.f32.mrf.mxu0
      %1493 = vdwg.mxu0
      %v1494 = vmul.f32 %v1432, 0.125
      %v1495 = vmul.f32 %v1435, 0.125
      %v1496 = vmul.f32 %v1440, 0.125
      %v1497 = vmul.f32 %v1443, 0.125
      %v1498 = vmul.f32 %v1448, 0.125
      %v1499 = vmul.f32 %v1451, 0.125
      %v1500 = vmul.f32 %v1456, 0.125
      %v1501 = vmul.f32 %v1459, 0.125
      %v1502 = vmul.f32 %v1464, 0.125
      %v1503 = vmul.f32 %v1467, 0.125
      %v1504 = vmul.f32 %v1472, 0.125
      %v1505 = vmul.f32 %v1475, 0.125
      %v1506 = vmul.f32 %v1480, 0.125
      %v1507 = vmul.f32 %v1483, 0.125
      %v1508 = vmul.f32 %v1488, 0.125
      %v1509 = vmul.f32 %v1491, 0.125
      %v1510 = vsel %vm599, %v1494, -inf
      %v1511 = vsel %vm600, %v1495, -inf
      %v1512 = vsel %vm601, %v1496, -inf
      %v1513 = vsel %vm602, %v1497, -inf
      %v1514 = vsel %vm603, %v1498, -inf
      %v1515 = vsel %vm604, %v1499, -inf
      %v1516 = vsel %vm605, %v1500, -inf
      %v1517 = vsel %vm606, %v1501, -inf
      %v1518 = vsel %vm607, %v1502, -inf
      %v1519 = vsel %vm608, %v1503, -inf
      %v1520 = vsel %vm609, %v1504, -inf
      %v1521 = vsel %vm610, %v1505, -inf
      %v1522 = vsel %vm611, %v1506, -inf
      %v1523 = vsel %vm612, %v1507, -inf
      %v1524 = vsel %vm613, %v1508, -inf
      %v1525 = vsel %vm614, %v1509, -inf
      %1526 = vmax.xlane.f32.xlu0 %v1510
      %v1527 = vpop.xlane.xlu0 %1526
      %1528 = vmax.xlane.f32.xlu0 %v1511
      %v1529 = vpop.xlane.xlu0 %1528
      %1530 = vmax.xlane.f32.xlu0 %v1512
      %v1531 = vpop.xlane.xlu0 %1530
      %1532 = vmax.xlane.f32.xlu0 %v1513
      %v1533 = vpop.xlane.xlu0 %1532
      %1534 = vmax.xlane.f32.xlu0 %v1514
      %v1535 = vpop.xlane.xlu0 %1534
      %1536 = vmax.xlane.f32.xlu0 %v1515
      %v1537 = vpop.xlane.xlu0 %1536
      %1538 = vmax.xlane.f32.xlu0 %v1516
      %v1539 = vpop.xlane.xlu0 %1538
      %1540 = vmax.xlane.f32.xlu0 %v1517
      %v1541 = vpop.xlane.xlu0 %1540
      %1542 = vmax.xlane.f32.xlu0 %v1518
      %v1543 = vpop.xlane.xlu0 %1542
      %1544 = vmax.xlane.f32.xlu0 %v1519
      %v1545 = vpop.xlane.xlu0 %1544
      %1546 = vmax.xlane.f32.xlu0 %v1520
      %v1547 = vpop.xlane.xlu0 %1546
      %1548 = vmax.xlane.f32.xlu0 %v1521
      %v1549 = vpop.xlane.xlu0 %1548
      %1550 = vmax.xlane.f32.xlu0 %v1522
      %v1551 = vpop.xlane.xlu0 %1550
      %1552 = vmax.xlane.f32.xlu0 %v1523
      %v1553 = vpop.xlane.xlu0 %1552
      %1554 = vmax.xlane.f32.xlu0 %v1524
      %v1555 = vpop.xlane.xlu0 %1554
      %1556 = vmax.xlane.f32.xlu0 %v1525
      %v1557 = vpop.xlane.xlu0 %1556
      %v1558 = vsub.f32 %v1510, %v1527
      %v1559 = vsub.f32 %v1511, %v1529
      %v1560 = vsub.f32 %v1512, %v1531
      %v1561 = vsub.f32 %v1513, %v1533
      %v1562 = vsub.f32 %v1514, %v1535
      %v1563 = vsub.f32 %v1515, %v1537
      %v1564 = vsub.f32 %v1516, %v1539
      %v1565 = vsub.f32 %v1517, %v1541
      %v1566 = vsub.f32 %v1518, %v1543
      %v1567 = vsub.f32 %v1519, %v1545
      %v1568 = vsub.f32 %v1520, %v1547
      %v1569 = vsub.f32 %v1521, %v1549
      %v1570 = vsub.f32 %v1522, %v1551
      %v1571 = vsub.f32 %v1523, %v1553
      %v1572 = vsub.f32 %v1524, %v1555
      %v1573 = vsub.f32 %v1525, %v1557
      %v1574 = vmul.f32 %v1558, 1.442695
      %v1575 = vpow.pop %v1574
      %v1576 = vmul.f32 %v1559, 1.442695
      %v1577 = vpow.pop %v1576
      %v1578 = vmul.f32 %v1560, 1.442695
      %v1579 = vpow.pop %v1578
      %v1580 = vmul.f32 %v1561, 1.442695
      %v1581 = vpow.pop %v1580
      %v1582 = vmul.f32 %v1562, 1.442695
      %v1583 = vpow.pop %v1582
      %v1584 = vmul.f32 %v1563, 1.442695
      %v1585 = vpow.pop %v1584
      %v1586 = vmul.f32 %v1564, 1.442695
      %v1587 = vpow.pop %v1586
      %v1588 = vmul.f32 %v1565, 1.442695
      %v1589 = vpow.pop %v1588
      %v1590 = vmul.f32 %v1566, 1.442695
      %v1591 = vpow.pop %v1590
      %v1592 = vmul.f32 %v1567, 1.442695
      %v1593 = vpow.pop %v1592
      %v1594 = vmul.f32 %v1568, 1.442695
      %v1595 = vpow.pop %v1594
      %v1596 = vmul.f32 %v1569, 1.442695
      %v1597 = vpow.pop %v1596
      %v1598 = vmul.f32 %v1570, 1.442695
      %v1599 = vpow.pop %v1598
      %v1600 = vmul.f32 %v1571, 1.442695
      %v1601 = vpow.pop %v1600
      %v1602 = vmul.f32 %v1572, 1.442695
      %v1603 = vpow.pop %v1602
      %v1604 = vmul.f32 %v1573, 1.442695
      %v1605 = vpow.pop %v1604
      %1606 = vadd.xlane.f32.xlu0 %v1575
      %v1607 = vpop.xlane.xlu0 %1606
      %1608 = vadd.xlane.f32.xlu0 %v1577
      %v1609 = vpop.xlane.xlu0 %1608
      %1610 = vadd.xlane.f32.xlu0 %v1579
      %v1611 = vpop.xlane.xlu0 %1610
      %1612 = vadd.xlane.f32.xlu0 %v1581
      %v1613 = vpop.xlane.xlu0 %1612
      %1614 = vadd.xlane.f32.xlu0 %v1583
      %v1615 = vpop.xlane.xlu0 %1614
      %1616 = vadd.xlane.f32.xlu0 %v1585
      %v1617 = vpop.xlane.xlu0 %1616
      %1618 = vadd.xlane.f32.xlu0 %v1587
      %v1619 = vpop.xlane.xlu0 %1618
      %1620 = vadd.xlane.f32.xlu0 %v1589
      %v1621 = vpop.xlane.xlu0 %1620
      %1622 = vadd.xlane.f32.xlu0 %v1591
      %v1623 = vpop.xlane.xlu0 %1622
      %1624 = vadd.xlane.f32.xlu0 %v1593
      %v1625 = vpop.xlane.xlu0 %1624
      %1626 = vadd.xlane.f32.xlu0 %v1595
      %v1627 = vpop.xlane.xlu0 %1626
      %1628 = vadd.xlane.f32.xlu0 %v1597
      %v1629 = vpop.xlane.xlu0 %1628
      %1630 = vadd.xlane.f32.xlu0 %v1599
      %v1631 = vpop.xlane.xlu0 %1630
      %1632 = vadd.xlane.f32.xlu0 %v1601
      %v1633 = vpop.xlane.xlu0 %1632
      %1634 = vadd.xlane.f32.xlu0 %v1603
      %v1635 = vpop.xlane.xlu0 %1634
      %1636 = vadd.xlane.f32.xlu0 %v1605
      %v1637 = vpop.xlane.xlu0 %1636
      %v1638 = vrcp.pop %v1607
      %v1639 = vrcp.pop %v1609
      %v1640 = vrcp.pop %v1611
      %v1641 = vrcp.pop %v1613
      %v1642 = vrcp.pop %v1615
      %v1643 = vrcp.pop %v1617
      %v1644 = vrcp.pop %v1619
      %v1645 = vrcp.pop %v1621
      %v1646 = vrcp.pop %v1623
      %v1647 = vrcp.pop %v1625
      %v1648 = vrcp.pop %v1627
      %v1649 = vrcp.pop %v1629
      %v1650 = vrcp.pop %v1631
      %v1651 = vrcp.pop %v1633
      %v1652 = vrcp.pop %v1635
      %v1653 = vrcp.pop %v1637
      %v1654 = vmul.f32 %v1575, %v1638
      %v1655 = vmul.f32 %v1577, %v1639
      %v1656 = vmul.f32 %v1579, %v1640
      %v1657 = vmul.f32 %v1581, %v1641
      %v1658 = vmul.f32 %v1583, %v1642
      %v1659 = vmul.f32 %v1585, %v1643
      %v1660 = vmul.f32 %v1587, %v1644
      %v1661 = vmul.f32 %v1589, %v1645
      %v1662 = vmul.f32 %v1591, %v1646
      %v1663 = vmul.f32 %v1593, %v1647
      %v1664 = vmul.f32 %v1595, %v1648
      %v1665 = vmul.f32 %v1597, %v1649
      %v1666 = vmul.f32 %v1599, %v1650
      %v1667 = vmul.f32 %v1601, %v1651
      %v1668 = vmul.f32 %v1603, %v1652
      %v1669 = vmul.f32 %v1605, %v1653
      %v1670 = vpack.c.bf16 %v1655, %v1654
      %v1671 = vpack.c.bf16 %v1657, %v1656
      %v1672 = vpack.c.bf16 %v1659, %v1658
      %v1673 = vpack.c.bf16 %v1661, %v1660
      %v1674 = vpack.c.bf16 %v1663, %v1662
      %v1675 = vpack.c.bf16 %v1665, %v1664
      %v1676 = vpack.c.bf16 %v1667, %v1666
      %v1677 = vpack.c.bf16 %v1669, %v1668
      %v1694 = vunpack.c.l.b16 %v1253
      %v1695 = vunpack.c.l.b16 %v1254
      %v1696 = vunpack.c.l.b16 %v1255
      %v1697 = vunpack.c.l.b16 %v1256
      %v1698 = vunpack.c.l.b16 %v1257
      %v1699 = vunpack.c.l.b16 %v1258
      %v1700 = vunpack.c.l.b16 %v1259
      %v1701 = vunpack.c.l.b16 %v1260
      %v1702 = vunpack.c.l.b16 %v1261
      %v1703 = vunpack.c.l.b16 %v1262
      %v1704 = vunpack.c.l.b16 %v1263
      %v1705 = vunpack.c.l.b16 %v1264
      %v1706 = vunpack.c.l.b16 %v1265
      %v1707 = vunpack.c.l.b16 %v1266
      %v1708 = vunpack.c.l.b16 %v1267
      %v1709 = vunpack.c.l.b16 %v1268
      %v1710 = vpack.c.b16 %v1695, %v1694
      %v1711 = vpack.c.b16 %v1697, %v1696
      %v1712 = vpack.c.b16 %v1699, %v1698
      %v1713 = vpack.c.b16 %v1701, %v1700
      %v1714 = vpack.c.b16 %v1703, %v1702
      %v1715 = vpack.c.b16 %v1705, %v1704
      %v1716 = vpack.c.b16 %v1707, %v1706
      %v1717 = vpack.c.b16 %v1709, %v1708
      %1726 = vmatprep.subr.bf16.mxu0 0
      %1727 = vmatpush1.bf16.msra.mxu0 %v1717
      %1728 = vmatprep.subr.bf16.mxu0 0
      %1729 = vmatpush1.bf16.msra.mxu0 %v1716
      %1730 = vmatprep.subr.bf16.mxu0 0
      %1731 = vmatpush1.bf16.msra.mxu0 %v1715
      %1732 = vmatprep.subr.bf16.mxu0 0
      %1733 = vmatpush1.bf16.msra.mxu0 %v1714
      %1734 = vmatprep.subr.bf16.mxu0 0
      %1735 = vmatpush1.bf16.msra.mxu0 %v1713
      %1736 = vmatprep.subr.bf16.mxu0 0
      %1737 = vmatpush1.bf16.msra.mxu0 %v1712
      %1738 = vmatprep.subr.bf16.mxu0 0
      %1739 = vmatpush1.bf16.msra.mxu0 %v1711
      %1740 = vmatprep.subr.bf16.mxu0 0
      %1741 = vmatpush1.bf16.msra.mxu0 %v1710
      %1742 = vmatprep.subr.bf16.mxu0 0
      %1743 = vmatpush2.bf16.msra.mxu0 0
      %1744 = vmatprep.subr.bf16.mxu0 0
      %1745 = vmatpush2.bf16.msra.mxu0 0
      %1746 = vmatprep.subr.bf16.mxu0 0
      %1747 = vmatpush2.bf16.msra.mxu0 0
      %1748 = vmatprep.subr.bf16.mxu0 0
      %1749 = vmatpush2.bf16.msra.mxu0 0
      %1750 = vmatprep.subr.bf16.mxu0 0
      %1751 = vmatpush2.bf16.msra.mxu0 0
      %1752 = vmatprep.subr.bf16.mxu0 0
      %1753 = vmatpush2.bf16.msra.mxu0 0
      %1754 = vmatprep.subr.bf16.mxu0 0
      %1755 = vmatpush2.bf16.msra.mxu0 0
      %1756 = vmatprep.subr.bf16.mxu0 0
      %1757 = vmatpush2.bf16.msra.mxu0 0
      %1758 = vmatprep.mubr.bf16.mxu0 0
      %1759 = vmatmul.mubr.bf16.gmra.mxu0 %v1670
      %v1760 = vpop.f32.mrf.mxu0
      %v1761 = vadd.f32 0.0, %v1760
      %v1762 = vpop.f32.mrf.mxu0
      %v1763 = vpop.f32.mrf.mxu0
      %v1764 = vadd.f32 0.0, %v1763
      %v1765 = vpop.f32.mrf.mxu0
      %1766 = vmatprep.mubr.bf16.mxu0 0
      %1767 = vmatmul.mubr.bf16.gmra.mxu0 %v1671
      %v1768 = vpop.f32.mrf.mxu0
      %v1769 = vadd.f32 0.0, %v1768
      %v1770 = vpop.f32.mrf.mxu0
      %v1771 = vpop.f32.mrf.mxu0
      %v1772 = vadd.f32 0.0, %v1771
      %v1773 = vpop.f32.mrf.mxu0
      %1774 = vmatprep.mubr.bf16.mxu0 0
      %1775 = vmatmul.mubr.bf16.gmra.mxu0 %v1672
      %v1776 = vpop.f32.mrf.mxu0
      %v1777 = vadd.f32 0.0, %v1776
      %v1778 = vpop.f32.mrf.mxu0
      %v1779 = vpop.f32.mrf.mxu0
      %v1780 = vadd.f32 0.0, %v1779
      %v1781 = vpop.f32.mrf.mxu0
      %1782 = vmatprep.mubr.bf16.mxu0 0
      %1783 = vmatmul.mubr.bf16.gmra.mxu0 %v1673
      %v1784 = vpop.f32.mrf.mxu0
      %v1785 = vadd.f32 0.0, %v1784
      %v1786 = vpop.f32.mrf.mxu0
      %v1787 = vpop.f32.mrf.mxu0
      %v1788 = vadd.f32 0.0, %v1787
      %v1789 = vpop.f32.mrf.mxu0
      %1790 = vmatprep.mubr.bf16.mxu0 0
      %1791 = vmatmul.mubr.bf16.gmra.mxu0 %v1674
      %v1792 = vpop.f32.mrf.mxu0
      %v1793 = vadd.f32 0.0, %v1792
      %v1794 = vpop.f32.mrf.mxu0
      %v1795 = vpop.f32.mrf.mxu0
      %v1796 = vadd.f32 0.0, %v1795
      %v1797 = vpop.f32.mrf.mxu0
      %1798 = vmatprep.mubr.bf16.mxu0 0
      %1799 = vmatmul.mubr.bf16.gmra.mxu0 %v1675
      %v1800 = vpop.f32.mrf.mxu0
      %v1801 = vadd.f32 0.0, %v1800
      %v1802 = vpop.f32.mrf.mxu0
      %v1803 = vpop.f32.mrf.mxu0
      %v1804 = vadd.f32 0.0, %v1803
      %v1805 = vpop.f32.mrf.mxu0
      %1806 = vmatprep.mubr.bf16.mxu0 0
      %1807 = vmatmul.mubr.bf16.gmra.mxu0 %v1676
      %v1808 = vpop.f32.mrf.mxu0
      %v1809 = vadd.f32 0.0, %v1808
      %v1810 = vpop.f32.mrf.mxu0
      %v1811 = vpop.f32.mrf.mxu0
      %v1812 = vadd.f32 0.0, %v1811
      %v1813 = vpop.f32.mrf.mxu0
      %1814 = vmatprep.mubr.bf16.mxu0 0
      %1815 = vmatmul.mubr.bf16.gmra.mxu0 %v1677
      %v1816 = vpop.f32.mrf.mxu0
      %v1817 = vadd.f32 0.0, %v1816
      %v1818 = vpop.f32.mrf.mxu0
      %v1819 = vpop.f32.mrf.mxu0
      %v1820 = vadd.f32 0.0, %v1819
      %v1821 = vpop.f32.mrf.mxu0
      %1822 = vdwg.mxu0
      %1839 = vrot.lane.b32.xlu0 %v1761, 64
      %v1840 = vpop.permute.xlu0 %1839
      %1841 = vrot.lane.b32.xlu0 %v1764, 64
      %v1842 = vpop.permute.xlu0 %1841
      %1843 = vrot.lane.b32.xlu0 %v1769, 64
      %v1844 = vpop.permute.xlu0 %1843
      %1845 = vrot.lane.b32.xlu0 %v1772, 64
      %v1846 = vpop.permute.xlu0 %1845
      %1847 = vrot.lane.b32.xlu0 %v1777, 64
      %v1848 = vpop.permute.xlu0 %1847
      %1849 = vrot.lane.b32.xlu0 %v1780, 64
      %v1850 = vpop.permute.xlu0 %1849
      %1851 = vrot.lane.b32.xlu0 %v1785, 64
      %v1852 = vpop.permute.xlu0 %1851
      %1853 = vrot.lane.b32.xlu0 %v1788, 64
      %v1854 = vpop.permute.xlu0 %1853
      %1855 = vrot.lane.b32.xlu0 %v1793, 64
      %v1856 = vpop.permute.xlu0 %1855
      %1857 = vrot.lane.b32.xlu0 %v1796, 64
      %v1858 = vpop.permute.xlu0 %1857
      %1859 = vrot.lane.b32.xlu0 %v1801, 64
      %v1860 = vpop.permute.xlu0 %1859
      %1861 = vrot.lane.b32.xlu0 %v1804, 64
      %v1862 = vpop.permute.xlu0 %1861
      %1863 = vrot.lane.b32.xlu0 %v1809, 64
      %v1864 = vpop.permute.xlu0 %1863
      %1865 = vrot.lane.b32.xlu0 %v1812, 64
      %v1866 = vpop.permute.xlu0 %1865
      %1867 = vrot.lane.b32.xlu0 %v1817, 64
      %v1868 = vpop.permute.xlu0 %1867
      %1869 = vrot.lane.b32.xlu0 %v1820, 64
      %v1870 = vpop.permute.xlu0 %1869
      %v1887 = vsel %vm743, %v1156, %v1840
      %v1888 = vsel %vm743, %v1159, %v1842
      %v1889 = vsel %vm743, %v1164, %v1844
      %v1890 = vsel %vm743, %v1167, %v1846
      %v1891 = vsel %vm743, %v1172, %v1848
      %v1892 = vsel %vm743, %v1175, %v1850
      %v1893 = vsel %vm743, %v1180, %v1852
      %v1894 = vsel %vm743, %v1183, %v1854
      %v1895 = vsel %vm743, %v1188, %v1856
      %v1896 = vsel %vm743, %v1191, %v1858
      %v1897 = vsel %vm743, %v1196, %v1860
      %v1898 = vsel %vm743, %v1199, %v1862
      %v1899 = vsel %vm743, %v1204, %v1864
      %v1900 = vsel %vm743, %v1207, %v1866
      %v1901 = vsel %vm743, %v1212, %v1868
      %v1902 = vsel %vm743, %v1215, %v1870
      %v1903 = vpack.c.bf16 %v1888, %v1887
      %v1904 = vpack.c.bf16 %v1890, %v1889
      %v1905 = vpack.c.bf16 %v1892, %v1891
      %v1906 = vpack.c.bf16 %v1894, %v1893
      %v1907 = vpack.c.bf16 %v1896, %v1895
      %v1908 = vpack.c.bf16 %v1898, %v1897
      %v1909 = vpack.c.bf16 %v1900, %v1899
      %v1910 = vpack.c.bf16 %v1902, %v1901
      %v1911 = vld [vmem:[%s4] sm:$0xf]
      %v1912 = vld [vmem:[%s4 + $0x4] sm:$0xf]
      %v1913 = vld [vmem:[%s4 + $0x8] sm:$0xf]
      %v1914 = vld [vmem:[%s4 + $0xc] sm:$0xf]
      %v1915 = vld [vmem:[%s4 + $0x10] sm:$0xf]
      %v1916 = vld [vmem:[%s4 + $0x14] sm:$0xf]
      %v1917 = vld [vmem:[%s4 + $0x18] sm:$0xf]
      %v1918 = vld [vmem:[%s4 + $0x1c] sm:$0xf]
      %v1919 = vld [vmem:[%s4 + $0x20] sm:$0xf]
      %v1920 = vld [vmem:[%s4 + $0x24] sm:$0xf]
      %v1921 = vld [vmem:[%s4 + $0x28] sm:$0xf]
      %v1922 = vld [vmem:[%s4 + $0x2c] sm:$0xf]
      %v1923 = vld [vmem:[%s4 + $0x30] sm:$0xf]
      %v1924 = vld [vmem:[%s4 + $0x34] sm:$0xf]
      %v1925 = vld [vmem:[%s4 + $0x38] sm:$0xf]
      %v1926 = vld [vmem:[%s4 + $0x3c] sm:$0xf]
      %v1943 = vunpack.c.l.b16 %v1911
      %v1944 = vunpack.c.l.b16 %v1912
      %v1945 = vunpack.c.l.b16 %v1913
      %v1946 = vunpack.c.l.b16 %v1914
      %v1947 = vunpack.c.l.b16 %v1915
      %v1948 = vunpack.c.l.b16 %v1916
      %v1949 = vunpack.c.l.b16 %v1917
      %v1950 = vunpack.c.l.b16 %v1918
      %v1951 = vunpack.c.l.b16 %v1919
      %v1952 = vunpack.c.l.b16 %v1920
      %v1953 = vunpack.c.l.b16 %v1921
      %v1954 = vunpack.c.l.b16 %v1922
      %v1955 = vunpack.c.l.b16 %v1923
      %v1956 = vunpack.c.l.b16 %v1924
      %v1957 = vunpack.c.l.b16 %v1925
      %v1958 = vunpack.c.l.b16 %v1926
      %v1959 = vpack.c.b16 %v1944, %v1943
      %v1960 = vpack.c.b16 %v1946, %v1945
      %v1961 = vpack.c.b16 %v1948, %v1947
      %v1962 = vpack.c.b16 %v1950, %v1949
      %v1963 = vpack.c.b16 %v1952, %v1951
      %v1964 = vpack.c.b16 %v1954, %v1953
      %v1965 = vpack.c.b16 %v1956, %v1955
      %v1966 = vpack.c.b16 %v1958, %v1957
      %1975 = vmatprep.subr.bf16.mxu0 0
      %1976 = vmatpush1.bf16.msra.mxu0 %v1966
      %1977 = vmatprep.subr.bf16.mxu0 0
      %1978 = vmatpush1.bf16.msra.mxu0 %v1965
      %1979 = vmatprep.subr.bf16.mxu0 0
      %1980 = vmatpush1.bf16.msra.mxu0 %v1964
      %1981 = vmatprep.subr.bf16.mxu0 0
      %1982 = vmatpush1.bf16.msra.mxu0 %v1963
      %1983 = vmatprep.subr.bf16.mxu0 0
      %1984 = vmatpush1.bf16.msra.mxu0 %v1962
      %1985 = vmatprep.subr.bf16.mxu0 0
      %1986 = vmatpush1.bf16.msra.mxu0 %v1961
      %1987 = vmatprep.subr.bf16.mxu0 0
      %1988 = vmatpush1.bf16.msra.mxu0 %v1960
      %1989 = vmatprep.subr.bf16.mxu0 0
      %1990 = vmatpush1.bf16.msra.mxu0 %v1959
      %1991 = vmatprep.subr.bf16.mxu0 0
      %1992 = vmatpush2.bf16.msra.mxu0 0
      %1993 = vmatprep.subr.bf16.mxu0 0
      %1994 = vmatpush2.bf16.msra.mxu0 0
      %1995 = vmatprep.subr.bf16.mxu0 0
      %1996 = vmatpush2.bf16.msra.mxu0 0
      %1997 = vmatprep.subr.bf16.mxu0 0
      %1998 = vmatpush2.bf16.msra.mxu0 0
      %1999 = vmatprep.subr.bf16.mxu0 0
      %2000 = vmatpush2.bf16.msra.mxu0 0
      %2001 = vmatprep.subr.bf16.mxu0 0
      %2002 = vmatpush2.bf16.msra.mxu0 0
      %2003 = vmatprep.subr.bf16.mxu0 0
      %2004 = vmatpush2.bf16.msra.mxu0 0
      %2005 = vmatprep.subr.bf16.mxu0 0
      %2006 = vmatpush2.bf16.msra.mxu0 0
      %2007 = vmatprep.mubr.bf16.mxu0 0
      %2008 = vmatmul.mubr.bf16.gmra.mxu0 %v1903
      %v2009 = vpop.f32.mrf.mxu0
      %v2010 = vadd.f32 0.0, %v2009
      %v2011 = vpop.f32.mrf.mxu0
      %v2012 = vpop.f32.mrf.mxu0
      %v2013 = vadd.f32 0.0, %v2012
      %v2014 = vpop.f32.mrf.mxu0
      %2015 = vmatprep.mubr.bf16.mxu0 0
      %2016 = vmatmul.mubr.bf16.gmra.mxu0 %v1904
      %v2017 = vpop.f32.mrf.mxu0
      %v2018 = vadd.f32 0.0, %v2017
      %v2019 = vpop.f32.mrf.mxu0
      %v2020 = vpop.f32.mrf.mxu0
      %v2021 = vadd.f32 0.0, %v2020
      %v2022 = vpop.f32.mrf.mxu0
      %2023 = vmatprep.mubr.bf16.mxu0 0
      %2024 = vmatmul.mubr.bf16.gmra.mxu0 %v1905
      %v2025 = vpop.f32.mrf.mxu0
      %v2026 = vadd.f32 0.0, %v2025
      %v2027 = vpop.f32.mrf.mxu0
      %v2028 = vpop.f32.mrf.mxu0
      %v2029 = vadd.f32 0.0, %v2028
      %v2030 = vpop.f32.mrf.mxu0
      %2031 = vmatprep.mubr.bf16.mxu0 0
      %2032 = vmatmul.mubr.bf16.gmra.mxu0 %v1906
      %v2033 = vpop.f32.mrf.mxu0
      %v2034 = vadd.f32 0.0, %v2033
      %v2035 = vpop.f32.mrf.mxu0
      %v2036 = vpop.f32.mrf.mxu0
      %v2037 = vadd.f32 0.0, %v2036
      %v2038 = vpop.f32.mrf.mxu0
      %2039 = vmatprep.mubr.bf16.mxu0 0
      %2040 = vmatmul.mubr.bf16.gmra.mxu0 %v1907
      %v2041 = vpop.f32.mrf.mxu0
      %v2042 = vadd.f32 0.0, %v2041
      %v2043 = vpop.f32.mrf.mxu0
      %v2044 = vpop.f32.mrf.mxu0
      %v2045 = vadd.f32 0.0, %v2044
      %v2046 = vpop.f32.mrf.mxu0
      %2047 = vmatprep.mubr.bf16.mxu0 0
      %2048 = vmatmul.mubr.bf16.gmra.mxu0 %v1908
      %v2049 = vpop.f32.mrf.mxu0
      %v2050 = vadd.f32 0.0, %v2049
      %v2051 = vpop.f32.mrf.mxu0
      %v2052 = vpop.f32.mrf.mxu0
      %v2053 = vadd.f32 0.0, %v2052
      %v2054 = vpop.f32.mrf.mxu0
      %2055 = vmatprep.mubr.bf16.mxu0 0
      %2056 = vmatmul.mubr.bf16.gmra.mxu0 %v1909
      %v2057 = vpop.f32.mrf.mxu0
      %v2058 = vadd.f32 0.0, %v2057
      %v2059 = vpop.f32.mrf.mxu0
      %v2060 = vpop.f32.mrf.mxu0
      %v2061 = vadd.f32 0.0, %v2060
      %v2062 = vpop.f32.mrf.mxu0
      %2063 = vmatprep.mubr.bf16.mxu0 0
      %2064 = vmatmul.mubr.bf16.gmra.mxu0 %v1910
      %v2065 = vpop.f32.mrf.mxu0
      %v2066 = vadd.f32 0.0, %v2065
      %v2067 = vpop.f32.mrf.mxu0
      %v2068 = vpop.f32.mrf.mxu0
      %v2069 = vadd.f32 0.0, %v2068
      %v2070 = vpop.f32.mrf.mxu0
      %2071 = vdwg.mxu0
      %v2072 = vadd.f32 %v546, %v2010
      %v2073 = vadd.f32 %v547, %v2013
      %v2074 = vadd.f32 %v548, %v2018
      %v2075 = vadd.f32 %v549, %v2021
      %v2076 = vadd.f32 %v550, %v2026
      %v2077 = vadd.f32 %v551, %v2029
      %v2078 = vadd.f32 %v552, %v2034
      %v2079 = vadd.f32 %v553, %v2037
      %v2080 = vadd.f32 %v554, %v2042
      %v2081 = vadd.f32 %v555, %v2045
      %v2082 = vadd.f32 %v556, %v2050
      %v2083 = vadd.f32 %v557, %v2053
      %v2084 = vadd.f32 %v558, %v2058
      %v2085 = vadd.f32 %v559, %v2061
      %v2086 = vadd.f32 %v560, %v2066
      %v2087 = vadd.f32 %v561, %v2069
      %v2088 = vld [vmem:[%s5] sm:$0x1]
      %v2090 = vlaneseq
      %v2091 = vshrl.u32 %v2090, 7
      %v2092 = vsub.s32 0, %v2091
      %v2093 = vrot.slane %v2088, %v2092
      %v2095 = vadd.f32 %v2072, %v2093
      %v2096 = vadd.f32 %v2073, %v2093
      %v2097 = vadd.f32 %v2074, %v2093
      %v2098 = vadd.f32 %v2075, %v2093
      %v2099 = vadd.f32 %v2076, %v2093
      %v2100 = vadd.f32 %v2077, %v2093
      %v2101 = vadd.f32 %v2078, %v2093
      %v2102 = vadd.f32 %v2079, %v2093
      %v2103 = vadd.f32 %v2080, %v2093
      %v2104 = vadd.f32 %v2081, %v2093
      %v2105 = vadd.f32 %v2082, %v2093
      %v2106 = vadd.f32 %v2083, %v2093
      %v2107 = vadd.f32 %v2084, %v2093
      %v2108 = vadd.f32 %v2085, %v2093
      %v2109 = vadd.f32 %v2086, %v2093
      %v2110 = vadd.f32 %v2087, %v2093
      %v2111 = vld [vmem:[%s6] sm:$0x1]
      %v2112 = vld [vmem:[%s7] sm:$0x1]
      %2113 = vadd.xlane.f32.xlu0 %v2095
      %v2114 = vpop.xlane.xlu0 %2113
      %2115 = vadd.xlane.f32.xlu0 %v2096
      %v2116 = vpop.xlane.xlu0 %2115
      %2117 = vadd.xlane.f32.xlu0 %v2097
      %v2118 = vpop.xlane.xlu0 %2117
      %2119 = vadd.xlane.f32.xlu0 %v2098
      %v2120 = vpop.xlane.xlu0 %2119
      %2121 = vadd.xlane.f32.xlu0 %v2099
      %v2122 = vpop.xlane.xlu0 %2121
      %2123 = vadd.xlane.f32.xlu0 %v2100
      %v2124 = vpop.xlane.xlu0 %2123
      %2125 = vadd.xlane.f32.xlu0 %v2101
      %v2126 = vpop.xlane.xlu0 %2125
      %2127 = vadd.xlane.f32.xlu0 %v2102
      %v2128 = vpop.xlane.xlu0 %2127
      %2129 = vadd.xlane.f32.xlu0 %v2103
      %v2130 = vpop.xlane.xlu0 %2129
      %2131 = vadd.xlane.f32.xlu0 %v2104
      %v2132 = vpop.xlane.xlu0 %2131
      %2133 = vadd.xlane.f32.xlu0 %v2105
      %v2134 = vpop.xlane.xlu0 %2133
      %2135 = vadd.xlane.f32.xlu0 %v2106
      %v2136 = vpop.xlane.xlu0 %2135
      %2137 = vadd.xlane.f32.xlu0 %v2107
      %v2138 = vpop.xlane.xlu0 %2137
      %2139 = vadd.xlane.f32.xlu0 %v2108
      %v2140 = vpop.xlane.xlu0 %2139
      %2141 = vadd.xlane.f32.xlu0 %v2109
      %v2142 = vpop.xlane.xlu0 %2141
      %2143 = vadd.xlane.f32.xlu0 %v2110
      %v2144 = vpop.xlane.xlu0 %2143
      %v2145 = vrcp.pop 128.0
      %v2146 = vmul.f32 %v2114, %v2145
      %v2147 = vmul.f32 %v2116, %v2145
      %v2148 = vmul.f32 %v2118, %v2145
      %v2149 = vmul.f32 %v2120, %v2145
      %v2150 = vmul.f32 %v2122, %v2145
      %v2151 = vmul.f32 %v2124, %v2145
      %v2152 = vmul.f32 %v2126, %v2145
      %v2153 = vmul.f32 %v2128, %v2145
      %v2154 = vmul.f32 %v2130, %v2145
      %v2155 = vmul.f32 %v2132, %v2145
      %v2156 = vmul.f32 %v2134, %v2145
      %v2157 = vmul.f32 %v2136, %v2145
      %v2158 = vmul.f32 %v2138, %v2145
      %v2159 = vmul.f32 %v2140, %v2145
      %v2160 = vmul.f32 %v2142, %v2145
      %v2161 = vmul.f32 %v2144, %v2145
      %v2162 = vsub.f32 %v2095, %v2146
      %v2163 = vsub.f32 %v2096, %v2147
      %v2164 = vsub.f32 %v2097, %v2148
      %v2165 = vsub.f32 %v2098, %v2149
      %v2166 = vsub.f32 %v2099, %v2150
      %v2167 = vsub.f32 %v2100, %v2151
      %v2168 = vsub.f32 %v2101, %v2152
      %v2169 = vsub.f32 %v2102, %v2153
      %v2170 = vsub.f32 %v2103, %v2154
      %v2171 = vsub.f32 %v2104, %v2155
      %v2172 = vsub.f32 %v2105, %v2156
      %v2173 = vsub.f32 %v2106, %v2157
      %v2174 = vsub.f32 %v2107, %v2158
      %v2175 = vsub.f32 %v2108, %v2159
      %v2176 = vsub.f32 %v2109, %v2160
      %v2177 = vsub.f32 %v2110, %v2161
      %v2178 = vmul.f32 %v2162, %v2162
      %v2179 = vmul.f32 %v2163, %v2163
      %v2180 = vmul.f32 %v2164, %v2164
      %v2181 = vmul.f32 %v2165, %v2165
      %v2182 = vmul.f32 %v2166, %v2166
      %v2183 = vmul.f32 %v2167, %v2167
      %v2184 = vmul.f32 %v2168, %v2168
      %v2185 = vmul.f32 %v2169, %v2169
      %v2186 = vmul.f32 %v2170, %v2170
      %v2187 = vmul.f32 %v2171, %v2171
      %v2188 = vmul.f32 %v2172, %v2172
      %v2189 = vmul.f32 %v2173, %v2173
      %v2190 = vmul.f32 %v2174, %v2174
      %v2191 = vmul.f32 %v2175, %v2175
      %v2192 = vmul.f32 %v2176, %v2176
      %v2193 = vmul.f32 %v2177, %v2177
      %2194 = vadd.xlane.f32.xlu0 %v2178
      %v2195 = vpop.xlane.xlu0 %2194
      %2196 = vadd.xlane.f32.xlu0 %v2179
      %v2197 = vpop.xlane.xlu0 %2196
      %2198 = vadd.xlane.f32.xlu0 %v2180
      %v2199 = vpop.xlane.xlu0 %2198
      %2200 = vadd.xlane.f32.xlu0 %v2181
      %v2201 = vpop.xlane.xlu0 %2200
      %2202 = vadd.xlane.f32.xlu0 %v2182
      %v2203 = vpop.xlane.xlu0 %2202
      %2204 = vadd.xlane.f32.xlu0 %v2183
      %v2205 = vpop.xlane.xlu0 %2204
      %2206 = vadd.xlane.f32.xlu0 %v2184
      %v2207 = vpop.xlane.xlu0 %2206
      %2208 = vadd.xlane.f32.xlu0 %v2185
      %v2209 = vpop.xlane.xlu0 %2208
      %2210 = vadd.xlane.f32.xlu0 %v2186
      %v2211 = vpop.xlane.xlu0 %2210
      %2212 = vadd.xlane.f32.xlu0 %v2187
      %v2213 = vpop.xlane.xlu0 %2212
      %2214 = vadd.xlane.f32.xlu0 %v2188
      %v2215 = vpop.xlane.xlu0 %2214
      %2216 = vadd.xlane.f32.xlu0 %v2189
      %v2217 = vpop.xlane.xlu0 %2216
      %2218 = vadd.xlane.f32.xlu0 %v2190
      %v2219 = vpop.xlane.xlu0 %2218
      %2220 = vadd.xlane.f32.xlu0 %v2191
      %v2221 = vpop.xlane.xlu0 %2220
      %2222 = vadd.xlane.f32.xlu0 %v2192
      %v2223 = vpop.xlane.xlu0 %2222
      %2224 = vadd.xlane.f32.xlu0 %v2193
      %v2225 = vpop.xlane.xlu0 %2224
      %v2226 = vmul.f32 %v2195, %v2145
      %v2227 = vmul.f32 %v2197, %v2145
      %v2228 = vmul.f32 %v2199, %v2145
      %v2229 = vmul.f32 %v2201, %v2145
      %v2230 = vmul.f32 %v2203, %v2145
      %v2231 = vmul.f32 %v2205, %v2145
      %v2232 = vmul.f32 %v2207, %v2145
      %v2233 = vmul.f32 %v2209, %v2145
      %v2234 = vmul.f32 %v2211, %v2145
      %v2235 = vmul.f32 %v2213, %v2145
      %v2236 = vmul.f32 %v2215, %v2145
      %v2237 = vmul.f32 %v2217, %v2145
      %v2238 = vmul.f32 %v2219, %v2145
      %v2239 = vmul.f32 %v2221, %v2145
      %v2240 = vmul.f32 %v2223, %v2145
      %v2241 = vmul.f32 %v2225, %v2145
      %v2242 = vadd.f32 %v2226, 1e-05
      %v2243 = vadd.f32 %v2227, 1e-05
      %v2244 = vadd.f32 %v2228, 1e-05
      %v2245 = vadd.f32 %v2229, 1e-05
      %v2246 = vadd.f32 %v2230, 1e-05
      %v2247 = vadd.f32 %v2231, 1e-05
      %v2248 = vadd.f32 %v2232, 1e-05
      %v2249 = vadd.f32 %v2233, 1e-05
      %v2250 = vadd.f32 %v2234, 1e-05
      %v2251 = vadd.f32 %v2235, 1e-05
      %v2252 = vadd.f32 %v2236, 1e-05
      %v2253 = vadd.f32 %v2237, 1e-05
      %v2254 = vadd.f32 %v2238, 1e-05
      %v2255 = vadd.f32 %v2239, 1e-05
      %v2256 = vadd.f32 %v2240, 1e-05
      %v2257 = vadd.f32 %v2241, 1e-05
      %v2258 = vrsqrt.pop %v2242
      %v2259 = vrsqrt.pop %v2243
      %v2260 = vrsqrt.pop %v2244
      %v2261 = vrsqrt.pop %v2245
      %v2262 = vrsqrt.pop %v2246
      %v2263 = vrsqrt.pop %v2247
      %v2264 = vrsqrt.pop %v2248
      %v2265 = vrsqrt.pop %v2249
      %v2266 = vrsqrt.pop %v2250
      %v2267 = vrsqrt.pop %v2251
      %v2268 = vrsqrt.pop %v2252
      %v2269 = vrsqrt.pop %v2253
      %v2270 = vrsqrt.pop %v2254
      %v2271 = vrsqrt.pop %v2255
      %v2272 = vrsqrt.pop %v2256
      %v2273 = vrsqrt.pop %v2257
      %v2274 = vmul.f32 %v2162, %v2258
      %v2275 = vmul.f32 %v2163, %v2259
      %v2276 = vmul.f32 %v2164, %v2260
      %v2277 = vmul.f32 %v2165, %v2261
      %v2278 = vmul.f32 %v2166, %v2262
      %v2279 = vmul.f32 %v2167, %v2263
      %v2280 = vmul.f32 %v2168, %v2264
      %v2281 = vmul.f32 %v2169, %v2265
      %v2282 = vmul.f32 %v2170, %v2266
      %v2283 = vmul.f32 %v2171, %v2267
      %v2284 = vmul.f32 %v2172, %v2268
      %v2285 = vmul.f32 %v2173, %v2269
      %v2286 = vmul.f32 %v2174, %v2270
      %v2287 = vmul.f32 %v2175, %v2271
      %v2288 = vmul.f32 %v2176, %v2272
      %v2289 = vmul.f32 %v2177, %v2273
      %v2291 = vlaneseq
      %v2292 = vshrl.u32 %v2291, 7
      %v2293 = vsub.s32 0, %v2292
      %v2294 = vrot.slane %v2111, %v2293
      %v2296 = vmul.f32 %v2274, %v2294
      %v2297 = vmul.f32 %v2275, %v2294
      %v2298 = vmul.f32 %v2276, %v2294
      %v2299 = vmul.f32 %v2277, %v2294
      %v2300 = vmul.f32 %v2278, %v2294
      %v2301 = vmul.f32 %v2279, %v2294
      %v2302 = vmul.f32 %v2280, %v2294
      %v2303 = vmul.f32 %v2281, %v2294
      %v2304 = vmul.f32 %v2282, %v2294
      %v2305 = vmul.f32 %v2283, %v2294
      %v2306 = vmul.f32 %v2284, %v2294
      %v2307 = vmul.f32 %v2285, %v2294
      %v2308 = vmul.f32 %v2286, %v2294
      %v2309 = vmul.f32 %v2287, %v2294
      %v2310 = vmul.f32 %v2288, %v2294
      %v2311 = vmul.f32 %v2289, %v2294
      %v2313 = vlaneseq
      %v2314 = vshrl.u32 %v2313, 7
      %v2315 = vsub.s32 0, %v2314
      %v2316 = vrot.slane %v2112, %v2315
      %v2318 = vadd.f32 %v2296, %v2316
      %v2319 = vadd.f32 %v2297, %v2316
      %v2320 = vadd.f32 %v2298, %v2316
      %v2321 = vadd.f32 %v2299, %v2316
      %v2322 = vadd.f32 %v2300, %v2316
      %v2323 = vadd.f32 %v2301, %v2316
      %v2324 = vadd.f32 %v2302, %v2316
      %v2325 = vadd.f32 %v2303, %v2316
      %v2326 = vadd.f32 %v2304, %v2316
      %v2327 = vadd.f32 %v2305, %v2316
      %v2328 = vadd.f32 %v2306, %v2316
      %v2329 = vadd.f32 %v2307, %v2316
      %v2330 = vadd.f32 %v2308, %v2316
      %v2331 = vadd.f32 %v2309, %v2316
      %v2332 = vadd.f32 %v2310, %v2316
      %v2333 = vadd.f32 %v2311, %v2316
      %v2334 = vpack.c.bf16 %v2319, %v2318
      %v2335 = vpack.c.bf16 %v2321, %v2320
      %v2336 = vpack.c.bf16 %v2323, %v2322
      %v2337 = vpack.c.bf16 %v2325, %v2324
      %v2338 = vpack.c.bf16 %v2327, %v2326
      %v2339 = vpack.c.bf16 %v2329, %v2328
      %v2340 = vpack.c.bf16 %v2331, %v2330
      %v2341 = vpack.c.bf16 %v2333, %v2332
      %v2342 = vld [vmem:[%s8] sm:$0xff]
      %v2343 = vld [vmem:[%s8 + $0x8] sm:$0xff]
      %v2344 = vld [vmem:[%s8 + $0x10] sm:$0xff]
      %v2345 = vld [vmem:[%s8 + $0x18] sm:$0xff]
      %v2346 = vld [vmem:[%s8 + $0x20] sm:$0xff]
      %v2347 = vld [vmem:[%s8 + $0x28] sm:$0xff]
      %v2348 = vld [vmem:[%s8 + $0x30] sm:$0xff]
      %v2349 = vld [vmem:[%s8 + $0x38] sm:$0xff]
      %v2350 = vld [vmem:[%s8 + $0x40] sm:$0xff]
      %v2351 = vld [vmem:[%s8 + $0x48] sm:$0xff]
      %v2352 = vld [vmem:[%s8 + $0x50] sm:$0xff]
      %v2353 = vld [vmem:[%s8 + $0x58] sm:$0xff]
      %v2354 = vld [vmem:[%s8 + $0x60] sm:$0xff]
      %v2355 = vld [vmem:[%s8 + $0x68] sm:$0xff]
      %v2356 = vld [vmem:[%s8 + $0x70] sm:$0xff]
      %v2357 = vld [vmem:[%s8 + $0x78] sm:$0xff]
      %v2358 = vld [vmem:[%s8 + $0x80] sm:$0xff]
      %v2359 = vld [vmem:[%s8 + $0x88] sm:$0xff]
      %v2360 = vld [vmem:[%s8 + $0x90] sm:$0xff]
      %v2361 = vld [vmem:[%s8 + $0x98] sm:$0xff]
      %v2362 = vld [vmem:[%s8 + $0xa0] sm:$0xff]
      %v2363 = vld [vmem:[%s8 + $0xa8] sm:$0xff]
      %v2364 = vld [vmem:[%s8 + $0xb0] sm:$0xff]
      %v2365 = vld [vmem:[%s8 + $0xb8] sm:$0xff]
      %v2366 = vld [vmem:[%s8 + $0xc0] sm:$0xff]
      %v2367 = vld [vmem:[%s8 + $0xc8] sm:$0xff]
      %v2368 = vld [vmem:[%s8 + $0xd0] sm:$0xff]
      %v2369 = vld [vmem:[%s8 + $0xd8] sm:$0xff]
      %v2370 = vld [vmem:[%s8 + $0xe0] sm:$0xff]
      %v2371 = vld [vmem:[%s8 + $0xe8] sm:$0xff]
      %v2372 = vld [vmem:[%s8 + $0xf0] sm:$0xff]
      %v2373 = vld [vmem:[%s8 + $0xf8] sm:$0xff]
      %v2374 = vld [vmem:[%s9] sm:$0xf]
      %v2376 = vlaneseq
      %v2377 = vshrl.u32 %v2376, 7
      %v2378 = vsub.s32 0, %v2377
      %v2379 = vrot.slane %v2374, %v2378
      %v2380 = vlaneseq
      %v2381 = vshrl.u32 %v2380, 7
      %v2382 = vsub.s32 1, %v2381
      %v2383 = vrot.slane %v2374, %v2382
      %v2384 = vlaneseq
      %v2385 = vshrl.u32 %v2384, 7
      %v2386 = vsub.s32 2, %v2385
      %v2387 = vrot.slane %v2374, %v2386
      %v2388 = vlaneseq
      %v2389 = vshrl.u32 %v2388, 7
      %v2390 = vsub.s32 3, %v2389
      %v2391 = vrot.slane %v2374, %v2390
      %v2428 = vunpack.c.l.b16 %v2342
      %v2429 = vunpack.c.h.b16 %v2342
      %v2430 = vunpack.c.l.b16 %v2343
      %v2431 = vunpack.c.h.b16 %v2343
      %v2432 = vunpack.c.l.b16 %v2344
      %v2433 = vunpack.c.h.b16 %v2344
      %v2434 = vunpack.c.l.b16 %v2345
      %v2435 = vunpack.c.h.b16 %v2345
      %v2436 = vunpack.c.l.b16 %v2346
      %v2437 = vunpack.c.h.b16 %v2346
      %v2438 = vunpack.c.l.b16 %v2347
      %v2439 = vunpack.c.h.b16 %v2347
      %v2440 = vunpack.c.l.b16 %v2348
      %v2441 = vunpack.c.h.b16 %v2348
      %v2442 = vunpack.c.l.b16 %v2349
      %v2443 = vunpack.c.h.b16 %v2349
      %v2444 = vunpack.c.l.b16 %v2350
      %v2445 = vunpack.c.h.b16 %v2350
      %v2446 = vunpack.c.l.b16 %v2351
      %v2447 = vunpack.c.h.b16 %v2351
      %v2448 = vunpack.c.l.b16 %v2352
      %v2449 = vunpack.c.h.b16 %v2352
      %v2450 = vunpack.c.l.b16 %v2353
      %v2451 = vunpack.c.h.b16 %v2353
      %v2452 = vunpack.c.l.b16 %v2354
      %v2453 = vunpack.c.h.b16 %v2354
      %v2454 = vunpack.c.l.b16 %v2355
      %v2455 = vunpack.c.h.b16 %v2355
      %v2456 = vunpack.c.l.b16 %v2356
      %v2457 = vunpack.c.h.b16 %v2356
      %v2458 = vunpack.c.l.b16 %v2357
      %v2459 = vunpack.c.h.b16 %v2357
      %v2460 = vunpack.c.l.b16 %v2358
      %v2461 = vunpack.c.h.b16 %v2358
      %v2462 = vunpack.c.l.b16 %v2359
      %v2463 = vunpack.c.h.b16 %v2359
      %v2464 = vunpack.c.l.b16 %v2360
      %v2465 = vunpack.c.h.b16 %v2360
      %v2466 = vunpack.c.l.b16 %v2361
      %v2467 = vunpack.c.h.b16 %v2361
      %v2468 = vunpack.c.l.b16 %v2362
      %v2469 = vunpack.c.h.b16 %v2362
      %v2470 = vunpack.c.l.b16 %v2363
      %v2471 = vunpack.c.h.b16 %v2363
      %v2472 = vunpack.c.l.b16 %v2364
      %v2473 = vunpack.c.h.b16 %v2364
      %v2474 = vunpack.c.l.b16 %v2365
      %v2475 = vunpack.c.h.b16 %v2365
      %v2476 = vunpack.c.l.b16 %v2366
      %v2477 = vunpack.c.h.b16 %v2366
      %v2478 = vunpack.c.l.b16 %v2367
      %v2479 = vunpack.c.h.b16 %v2367
      %v2480 = vunpack.c.l.b16 %v2368
      %v2481 = vunpack.c.h.b16 %v2368
      %v2482 = vunpack.c.l.b16 %v2369
      %v2483 = vunpack.c.h.b16 %v2369
      %v2484 = vunpack.c.l.b16 %v2370
      %v2485 = vunpack.c.h.b16 %v2370
      %v2486 = vunpack.c.l.b16 %v2371
      %v2487 = vunpack.c.h.b16 %v2371
      %v2488 = vunpack.c.l.b16 %v2372
      %v2489 = vunpack.c.h.b16 %v2372
      %v2490 = vunpack.c.l.b16 %v2373
      %v2491 = vunpack.c.h.b16 %v2373
      %v2492 = vpack.c.b16 %v2432, %v2428
      %v2493 = vpack.c.b16 %v2433, %v2429
      %v2494 = vpack.c.b16 %v2434, %v2430
      %v2495 = vpack.c.b16 %v2435, %v2431
      %v2496 = vpack.c.b16 %v2440, %v2436
      %v2497 = vpack.c.b16 %v2441, %v2437
      %v2498 = vpack.c.b16 %v2442, %v2438
      %v2499 = vpack.c.b16 %v2443, %v2439
      %v2500 = vpack.c.b16 %v2448, %v2444
      %v2501 = vpack.c.b16 %v2449, %v2445
      %v2502 = vpack.c.b16 %v2450, %v2446
      %v2503 = vpack.c.b16 %v2451, %v2447
      %v2504 = vpack.c.b16 %v2456, %v2452
      %v2505 = vpack.c.b16 %v2457, %v2453
      %v2506 = vpack.c.b16 %v2458, %v2454
      %v2507 = vpack.c.b16 %v2459, %v2455
      %v2508 = vpack.c.b16 %v2464, %v2460
      %v2509 = vpack.c.b16 %v2465, %v2461
      %v2510 = vpack.c.b16 %v2466, %v2462
      %v2511 = vpack.c.b16 %v2467, %v2463
      %v2512 = vpack.c.b16 %v2472, %v2468
      %v2513 = vpack.c.b16 %v2473, %v2469
      %v2514 = vpack.c.b16 %v2474, %v2470
      %v2515 = vpack.c.b16 %v2475, %v2471
      %v2516 = vpack.c.b16 %v2480, %v2476
      %v2517 = vpack.c.b16 %v2481, %v2477
      %v2518 = vpack.c.b16 %v2482, %v2478
      %v2519 = vpack.c.b16 %v2483, %v2479
      %v2520 = vpack.c.b16 %v2488, %v2484
      %v2521 = vpack.c.b16 %v2489, %v2485
      %v2522 = vpack.c.b16 %v2490, %v2486
      %v2523 = vpack.c.b16 %v2491, %v2487
      %2556 = vmatprep.subr.bf16.mxu0 %v2521
      %2557 = vmatpush1.bf16.msra.mxu0 %v2520
      %2558 = vmatprep.subr.bf16.mxu0 %v2517
      %2559 = vmatpush1.bf16.msra.mxu0 %v2516
      %2560 = vmatprep.subr.bf16.mxu0 %v2513
      %2561 = vmatpush1.bf16.msra.mxu0 %v2512
      %2562 = vmatprep.subr.bf16.mxu0 %v2509
      %2563 = vmatpush1.bf16.msra.mxu0 %v2508
      %2564 = vmatprep.subr.bf16.mxu0 %v2505
      %2565 = vmatpush1.bf16.msra.mxu0 %v2504
      %2566 = vmatprep.subr.bf16.mxu0 %v2501
      %2567 = vmatpush1.bf16.msra.mxu0 %v2500
      %2568 = vmatprep.subr.bf16.mxu0 %v2497
      %2569 = vmatpush1.bf16.msra.mxu0 %v2496
      %2570 = vmatprep.subr.bf16.mxu0 %v2493
      %2571 = vmatpush1.bf16.msra.mxu0 %v2492
      %2572 = vmatprep.subr.bf16.mxu0 0
      %2573 = vmatpush2.bf16.msra.mxu0 0
      %2574 = vmatprep.subr.bf16.mxu0 0
      %2575 = vmatpush2.bf16.msra.mxu0 0
      %2576 = vmatprep.subr.bf16.mxu0 0
      %2577 = vmatpush2.bf16.msra.mxu0 0
      %2578 = vmatprep.subr.bf16.mxu0 0
      %2579 = vmatpush2.bf16.msra.mxu0 0
      %2580 = vmatprep.subr.bf16.mxu0 0
      %2581 = vmatpush2.bf16.msra.mxu0 0
      %2582 = vmatprep.subr.bf16.mxu0 0
      %2583 = vmatpush2.bf16.msra.mxu0 0
      %2584 = vmatprep.subr.bf16.mxu0 0
      %2585 = vmatpush2.bf16.msra.mxu0 0
      %2586 = vmatprep.subr.bf16.mxu0 0
      %2587 = vmatpush2.bf16.msra.mxu0 0
      %2588 = vmatprep.mubr.bf16.mxu0 0
      %2589 = vmatmul.mubr.bf16.gmra.mxu0 %v2334
      %v2590 = vpop.f32.mrf.mxu0
      %v2591 = vadd.f32 %v2379, %v2590
      %v2592 = vpop.f32.mrf.mxu0
      %v2593 = vadd.f32 %v2383, %v2592
      %v2594 = vpop.f32.mrf.mxu0
      %v2595 = vadd.f32 %v2379, %v2594
      %v2596 = vpop.f32.mrf.mxu0
      %v2597 = vadd.f32 %v2383, %v2596
      %2598 = vmatprep.mubr.bf16.mxu0 0
      %2599 = vmatmul.mubr.bf16.gmra.mxu0 %v2335
      %v2600 = vpop.f32.mrf.mxu0
      %v2601 = vadd.f32 %v2379, %v2600
      %v2602 = vpop.f32.mrf.mxu0
      %v2603 = vadd.f32 %v2383, %v2602
      %v2604 = vpop.f32.mrf.mxu0
      %v2605 = vadd.f32 %v2379, %v2604
      %v2606 = vpop.f32.mrf.mxu0
      %v2607 = vadd.f32 %v2383, %v2606
      %2608 = vmatprep.mubr.bf16.mxu0 0
      %2609 = vmatmul.mubr.bf16.gmra.mxu0 %v2336
      %v2610 = vpop.f32.mrf.mxu0
      %v2611 = vadd.f32 %v2379, %v2610
      %v2612 = vpop.f32.mrf.mxu0
      %v2613 = vadd.f32 %v2383, %v2612
      %v2614 = vpop.f32.mrf.mxu0
      %v2615 = vadd.f32 %v2379, %v2614
      %v2616 = vpop.f32.mrf.mxu0
      %v2617 = vadd.f32 %v2383, %v2616
      %2618 = vmatprep.mubr.bf16.mxu0 0
      %2619 = vmatmul.mubr.bf16.gmra.mxu0 %v2337
      %v2620 = vpop.f32.mrf.mxu0
      %v2621 = vadd.f32 %v2379, %v2620
      %v2622 = vpop.f32.mrf.mxu0
      %v2623 = vadd.f32 %v2383, %v2622
      %v2624 = vpop.f32.mrf.mxu0
      %v2625 = vadd.f32 %v2379, %v2624
      %v2626 = vpop.f32.mrf.mxu0
      %v2627 = vadd.f32 %v2383, %v2626
      %2628 = vmatprep.mubr.bf16.mxu0 0
      %2629 = vmatmul.mubr.bf16.gmra.mxu0 %v2338
      %v2630 = vpop.f32.mrf.mxu0
      %v2631 = vadd.f32 %v2379, %v2630
      %v2632 = vpop.f32.mrf.mxu0
      %v2633 = vadd.f32 %v2383, %v2632
      %v2634 = vpop.f32.mrf.mxu0
      %v2635 = vadd.f32 %v2379, %v2634
      %v2636 = vpop.f32.mrf.mxu0
      %v2637 = vadd.f32 %v2383, %v2636
      %2638 = vmatprep.mubr.bf16.mxu0 0
      %2639 = vmatmul.mubr.bf16.gmra.mxu0 %v2339
      %v2640 = vpop.f32.mrf.mxu0
      %v2641 = vadd.f32 %v2379, %v2640
      %v2642 = vpop.f32.mrf.mxu0
      %v2643 = vadd.f32 %v2383, %v2642
      %v2644 = vpop.f32.mrf.mxu0
      %v2645 = vadd.f32 %v2379, %v2644
      %v2646 = vpop.f32.mrf.mxu0
      %v2647 = vadd.f32 %v2383, %v2646
      %2648 = vmatprep.mubr.bf16.mxu0 0
      %2649 = vmatmul.mubr.bf16.gmra.mxu0 %v2340
      %v2650 = vpop.f32.mrf.mxu0
      %v2651 = vadd.f32 %v2379, %v2650
      %v2652 = vpop.f32.mrf.mxu0
      %v2653 = vadd.f32 %v2383, %v2652
      %v2654 = vpop.f32.mrf.mxu0
      %v2655 = vadd.f32 %v2379, %v2654
      %v2656 = vpop.f32.mrf.mxu0
      %v2657 = vadd.f32 %v2383, %v2656
      %2658 = vmatprep.mubr.bf16.mxu0 0
      %2659 = vmatmul.mubr.bf16.gmra.mxu0 %v2341
      %v2660 = vpop.f32.mrf.mxu0
      %v2661 = vadd.f32 %v2379, %v2660
      %v2662 = vpop.f32.mrf.mxu0
      %v2663 = vadd.f32 %v2383, %v2662
      %v2664 = vpop.f32.mrf.mxu0
      %v2665 = vadd.f32 %v2379, %v2664
      %v2666 = vpop.f32.mrf.mxu0
      %v2667 = vadd.f32 %v2383, %v2666
      %2668 = vdwg.mxu0
      %2669 = vmatprep.subr.bf16.mxu0 %v2523
      %2670 = vmatpush1.bf16.msra.mxu0 %v2522
      %2671 = vmatprep.subr.bf16.mxu0 %v2519
      %2672 = vmatpush1.bf16.msra.mxu0 %v2518
      %2673 = vmatprep.subr.bf16.mxu0 %v2515
      %2674 = vmatpush1.bf16.msra.mxu0 %v2514
      %2675 = vmatprep.subr.bf16.mxu0 %v2511
      %2676 = vmatpush1.bf16.msra.mxu0 %v2510
      %2677 = vmatprep.subr.bf16.mxu0 %v2507
      %2678 = vmatpush1.bf16.msra.mxu0 %v2506
      %2679 = vmatprep.subr.bf16.mxu0 %v2503
      %2680 = vmatpush1.bf16.msra.mxu0 %v2502
      %2681 = vmatprep.subr.bf16.mxu0 %v2499
      %2682 = vmatpush1.bf16.msra.mxu0 %v2498
      %2683 = vmatprep.subr.bf16.mxu0 %v2495
      %2684 = vmatpush1.bf16.msra.mxu0 %v2494
      %2685 = vmatprep.subr.bf16.mxu0 0
      %2686 = vmatpush2.bf16.msra.mxu0 0
      %2687 = vmatprep.subr.bf16.mxu0 0
      %2688 = vmatpush2.bf16.msra.mxu0 0
      %2689 = vmatprep.subr.bf16.mxu0 0
      %2690 = vmatpush2.bf16.msra.mxu0 0
      %2691 = vmatprep.subr.bf16.mxu0 0
      %2692 = vmatpush2.bf16.msra.mxu0 0
      %2693 = vmatprep.subr.bf16.mxu0 0
      %2694 = vmatpush2.bf16.msra.mxu0 0
      %2695 = vmatprep.subr.bf16.mxu0 0
      %2696 = vmatpush2.bf16.msra.mxu0 0
      %2697 = vmatprep.subr.bf16.mxu0 0
      %2698 = vmatpush2.bf16.msra.mxu0 0
      %2699 = vmatprep.subr.bf16.mxu0 0
      %2700 = vmatpush2.bf16.msra.mxu0 0
      %2701 = vmatprep.mubr.bf16.mxu0 0
      %2702 = vmatmul.mubr.bf16.gmra.mxu0 %v2334
      %v2703 = vpop.f32.mrf.mxu0
      %v2704 = vadd.f32 %v2387, %v2703
      %v2705 = vpop.f32.mrf.mxu0
      %v2706 = vadd.f32 %v2391, %v2705
      %v2707 = vpop.f32.mrf.mxu0
      %v2708 = vadd.f32 %v2387, %v2707
      %v2709 = vpop.f32.mrf.mxu0
      %v2710 = vadd.f32 %v2391, %v2709
      %2711 = vmatprep.mubr.bf16.mxu0 0
      %2712 = vmatmul.mubr.bf16.gmra.mxu0 %v2335
      %v2713 = vpop.f32.mrf.mxu0
      %v2714 = vadd.f32 %v2387, %v2713
      %v2715 = vpop.f32.mrf.mxu0
      %v2716 = vadd.f32 %v2391, %v2715
      %v2717 = vpop.f32.mrf.mxu0
      %v2718 = vadd.f32 %v2387, %v2717
      %v2719 = vpop.f32.mrf.mxu0
      %v2720 = vadd.f32 %v2391, %v2719
      %2721 = vmatprep.mubr.bf16.mxu0 0
      %2722 = vmatmul.mubr.bf16.gmra.mxu0 %v2336
      %v2723 = vpop.f32.mrf.mxu0
      %v2724 = vadd.f32 %v2387, %v2723
      %v2725 = vpop.f32.mrf.mxu0
      %v2726 = vadd.f32 %v2391, %v2725
      %v2727 = vpop.f32.mrf.mxu0
      %v2728 = vadd.f32 %v2387, %v2727
      %v2729 = vpop.f32.mrf.mxu0
      %v2730 = vadd.f32 %v2391, %v2729
      %2731 = vmatprep.mubr.bf16.mxu0 0
      %2732 = vmatmul.mubr.bf16.gmra.mxu0 %v2337
      %v2733 = vpop.f32.mrf.mxu0
      %v2734 = vadd.f32 %v2387, %v2733
      %v2735 = vpop.f32.mrf.mxu0
      %v2736 = vadd.f32 %v2391, %v2735
      %v2737 = vpop.f32.mrf.mxu0
      %v2738 = vadd.f32 %v2387, %v2737
      %v2739 = vpop.f32.mrf.mxu0
      %v2740 = vadd.f32 %v2391, %v2739
      %2741 = vmatprep.mubr.bf16.mxu0 0
      %2742 = vmatmul.mubr.bf16.gmra.mxu0 %v2338
      %v2743 = vpop.f32.mrf.mxu0
      %v2744 = vadd.f32 %v2387, %v2743
      %v2745 = vpop.f32.mrf.mxu0
      %v2746 = vadd.f32 %v2391, %v2745
      %v2747 = vpop.f32.mrf.mxu0
      %v2748 = vadd.f32 %v2387, %v2747
      %v2749 = vpop.f32.mrf.mxu0
      %v2750 = vadd.f32 %v2391, %v2749
      %2751 = vmatprep.mubr.bf16.mxu0 0
      %2752 = vmatmul.mubr.bf16.gmra.mxu0 %v2339
      %v2753 = vpop.f32.mrf.mxu0
      %v2754 = vadd.f32 %v2387, %v2753
      %v2755 = vpop.f32.mrf.mxu0
      %v2756 = vadd.f32 %v2391, %v2755
      %v2757 = vpop.f32.mrf.mxu0
      %v2758 = vadd.f32 %v2387, %v2757
      %v2759 = vpop.f32.mrf.mxu0
      %v2760 = vadd.f32 %v2391, %v2759
      %2761 = vmatprep.mubr.bf16.mxu0 0
      %2762 = vmatmul.mubr.bf16.gmra.mxu0 %v2340
      %v2763 = vpop.f32.mrf.mxu0
      %v2764 = vadd.f32 %v2387, %v2763
      %v2765 = vpop.f32.mrf.mxu0
      %v2766 = vadd.f32 %v2391, %v2765
      %v2767 = vpop.f32.mrf.mxu0
      %v2768 = vadd.f32 %v2387, %v2767
      %v2769 = vpop.f32.mrf.mxu0
      %v2770 = vadd.f32 %v2391, %v2769
      %2771 = vmatprep.mubr.bf16.mxu0 0
      %2772 = vmatmul.mubr.bf16.gmra.mxu0 %v2341
      %v2773 = vpop.f32.mrf.mxu0
      %v2774 = vadd.f32 %v2387, %v2773
      %v2775 = vpop.f32.mrf.mxu0
      %v2776 = vadd.f32 %v2391, %v2775
      %v2777 = vpop.f32.mrf.mxu0
      %v2778 = vadd.f32 %v2387, %v2777
      %v2779 = vpop.f32.mrf.mxu0
      %v2780 = vadd.f32 %v2391, %v2779
      %2781 = vdwg.mxu0
      %v2782 = vmax.f32 %v2591, 0.0
      %v2783 = vmax.f32 %v2593, 0.0
      %v2784 = vmax.f32 %v2704, 0.0
      %v2785 = vmax.f32 %v2706, 0.0
      %v2786 = vmax.f32 %v2595, 0.0
      %v2787 = vmax.f32 %v2597, 0.0
      %v2788 = vmax.f32 %v2708, 0.0
      %v2789 = vmax.f32 %v2710, 0.0
      %v2790 = vmax.f32 %v2601, 0.0
      %v2791 = vmax.f32 %v2603, 0.0
      %v2792 = vmax.f32 %v2714, 0.0
      %v2793 = vmax.f32 %v2716, 0.0
      %v2794 = vmax.f32 %v2605, 0.0
      %v2795 = vmax.f32 %v2607, 0.0
      %v2796 = vmax.f32 %v2718, 0.0
      %v2797 = vmax.f32 %v2720, 0.0
      %v2798 = vmax.f32 %v2611, 0.0
      %v2799 = vmax.f32 %v2613, 0.0
      %v2800 = vmax.f32 %v2724, 0.0
      %v2801 = vmax.f32 %v2726, 0.0
      %v2802 = vmax.f32 %v2615, 0.0
      %v2803 = vmax.f32 %v2617, 0.0
      %v2804 = vmax.f32 %v2728, 0.0
      %v2805 = vmax.f32 %v2730, 0.0
      %v2806 = vmax.f32 %v2621, 0.0
      %v2807 = vmax.f32 %v2623, 0.0
      %v2808 = vmax.f32 %v2734, 0.0
      %v2809 = vmax.f32 %v2736, 0.0
      %v2810 = vmax.f32 %v2625, 0.0
      %v2811 = vmax.f32 %v2627, 0.0
      %v2812 = vmax.f32 %v2738, 0.0
      %v2813 = vmax.f32 %v2740, 0.0
      %v2814 = vmax.f32 %v2631, 0.0
      %v2815 = vmax.f32 %v2633, 0.0
      %v2816 = vmax.f32 %v2744, 0.0
      %v2817 = vmax.f32 %v2746, 0.0
      %v2818 = vmax.f32 %v2635, 0.0
      %v2819 = vmax.f32 %v2637, 0.0
      %v2820 = vmax.f32 %v2748, 0.0
      %v2821 = vmax.f32 %v2750, 0.0
      %v2822 = vmax.f32 %v2641, 0.0
      %v2823 = vmax.f32 %v2643, 0.0
      %v2824 = vmax.f32 %v2754, 0.0
      %v2825 = vmax.f32 %v2756, 0.0
      %v2826 = vmax.f32 %v2645, 0.0
      %v2827 = vmax.f32 %v2647, 0.0
      %v2828 = vmax.f32 %v2758, 0.0
      %v2829 = vmax.f32 %v2760, 0.0
      %v2830 = vmax.f32 %v2651, 0.0
      %v2831 = vmax.f32 %v2653, 0.0
      %v2832 = vmax.f32 %v2764, 0.0
      %v2833 = vmax.f32 %v2766, 0.0
      %v2834 = vmax.f32 %v2655, 0.0
      %v2835 = vmax.f32 %v2657, 0.0
      %v2836 = vmax.f32 %v2768, 0.0
      %v2837 = vmax.f32 %v2770, 0.0
      %v2838 = vmax.f32 %v2661, 0.0
      %v2839 = vmax.f32 %v2663, 0.0
      %v2840 = vmax.f32 %v2774, 0.0
      %v2841 = vmax.f32 %v2776, 0.0
      %v2842 = vmax.f32 %v2665, 0.0
      %v2843 = vmax.f32 %v2667, 0.0
      %v2844 = vmax.f32 %v2778, 0.0
      %v2845 = vmax.f32 %v2780, 0.0
      %v2846 = vpack.c.bf16 %v2786, %v2782
      %v2847 = vpack.c.bf16 %v2787, %v2783
      %v2848 = vpack.c.bf16 %v2788, %v2784
      %v2849 = vpack.c.bf16 %v2789, %v2785
      %v2850 = vpack.c.bf16 %v2794, %v2790
      %v2851 = vpack.c.bf16 %v2795, %v2791
      %v2852 = vpack.c.bf16 %v2796, %v2792
      %v2853 = vpack.c.bf16 %v2797, %v2793
      %v2854 = vpack.c.bf16 %v2802, %v2798
      %v2855 = vpack.c.bf16 %v2803, %v2799
      %v2856 = vpack.c.bf16 %v2804, %v2800
      %v2857 = vpack.c.bf16 %v2805, %v2801
      %v2858 = vpack.c.bf16 %v2810, %v2806
      %v2859 = vpack.c.bf16 %v2811, %v2807
      %v2860 = vpack.c.bf16 %v2812, %v2808
      %v2861 = vpack.c.bf16 %v2813, %v2809
      %v2862 = vpack.c.bf16 %v2818, %v2814
      %v2863 = vpack.c.bf16 %v2819, %v2815
      %v2864 = vpack.c.bf16 %v2820, %v2816
      %v2865 = vpack.c.bf16 %v2821, %v2817
      %v2866 = vpack.c.bf16 %v2826, %v2822
      %v2867 = vpack.c.bf16 %v2827, %v2823
      %v2868 = vpack.c.bf16 %v2828, %v2824
      %v2869 = vpack.c.bf16 %v2829, %v2825
      %v2870 = vpack.c.bf16 %v2834, %v2830
      %v2871 = vpack.c.bf16 %v2835, %v2831
      %v2872 = vpack.c.bf16 %v2836, %v2832
      %v2873 = vpack.c.bf16 %v2837, %v2833
      %v2874 = vpack.c.bf16 %v2842, %v2838
      %v2875 = vpack.c.bf16 %v2843, %v2839
      %v2876 = vpack.c.bf16 %v2844, %v2840
      %v2877 = vpack.c.bf16 %v2845, %v2841
      %v2878 = vld [vmem:[%s10] sm:$0xf]
      %v2879 = vld [vmem:[%s10 + $0x4] sm:$0xf]
      %v2880 = vld [vmem:[%s10 + $0x8] sm:$0xf]
      %v2881 = vld [vmem:[%s10 + $0xc] sm:$0xf]
      %v2882 = vld [vmem:[%s10 + $0x10] sm:$0xf]
      %v2883 = vld [vmem:[%s10 + $0x14] sm:$0xf]
      %v2884 = vld [vmem:[%s10 + $0x18] sm:$0xf]
      %v2885 = vld [vmem:[%s10 + $0x1c] sm:$0xf]
      %v2886 = vld [vmem:[%s10 + $0x20] sm:$0xf]
      %v2887 = vld [vmem:[%s10 + $0x24] sm:$0xf]
      %v2888 = vld [vmem:[%s10 + $0x28] sm:$0xf]
      %v2889 = vld [vmem:[%s10 + $0x2c] sm:$0xf]
      %v2890 = vld [vmem:[%s10 + $0x30] sm:$0xf]
      %v2891 = vld [vmem:[%s10 + $0x34] sm:$0xf]
      %v2892 = vld [vmem:[%s10 + $0x38] sm:$0xf]
      %v2893 = vld [vmem:[%s10 + $0x3c] sm:$0xf]
      %v2894 = vld [vmem:[%s10 + $0x40] sm:$0xf]
      %v2895 = vld [vmem:[%s10 + $0x44] sm:$0xf]
      %v2896 = vld [vmem:[%s10 + $0x48] sm:$0xf]
      %v2897 = vld [vmem:[%s10 + $0x4c] sm:$0xf]
      %v2898 = vld [vmem:[%s10 + $0x50] sm:$0xf]
      %v2899 = vld [vmem:[%s10 + $0x54] sm:$0xf]
      %v2900 = vld [vmem:[%s10 + $0x58] sm:$0xf]
      %v2901 = vld [vmem:[%s10 + $0x5c] sm:$0xf]
      %v2902 = vld [vmem:[%s10 + $0x60] sm:$0xf]
      %v2903 = vld [vmem:[%s10 + $0x64] sm:$0xf]
      %v2904 = vld [vmem:[%s10 + $0x68] sm:$0xf]
      %v2905 = vld [vmem:[%s10 + $0x6c] sm:$0xf]
      %v2906 = vld [vmem:[%s10 + $0x70] sm:$0xf]
      %v2907 = vld [vmem:[%s10 + $0x74] sm:$0xf]
      %v2908 = vld [vmem:[%s10 + $0x78] sm:$0xf]
      %v2909 = vld [vmem:[%s10 + $0x7c] sm:$0xf]
      %v2910 = vld [vmem:[%s10 + $0x80] sm:$0xf]
      %v2911 = vld [vmem:[%s10 + $0x84] sm:$0xf]
      %v2912 = vld [vmem:[%s10 + $0x88] sm:$0xf]
      %v2913 = vld [vmem:[%s10 + $0x8c] sm:$0xf]
      %v2914 = vld [vmem:[%s10 + $0x90] sm:$0xf]
      %v2915 = vld [vmem:[%s10 + $0x94] sm:$0xf]
      %v2916 = vld [vmem:[%s10 + $0x98] sm:$0xf]
      %v2917 = vld [vmem:[%s10 + $0x9c] sm:$0xf]
      %v2918 = vld [vmem:[%s10 + $0xa0] sm:$0xf]
      %v2919 = vld [vmem:[%s10 + $0xa4] sm:$0xf]
      %v2920 = vld [vmem:[%s10 + $0xa8] sm:$0xf]
      %v2921 = vld [vmem:[%s10 + $0xac] sm:$0xf]
      %v2922 = vld [vmem:[%s10 + $0xb0] sm:$0xf]
      %v2923 = vld [vmem:[%s10 + $0xb4] sm:$0xf]
      %v2924 = vld [vmem:[%s10 + $0xb8] sm:$0xf]
      %v2925 = vld [vmem:[%s10 + $0xbc] sm:$0xf]
      %v2926 = vld [vmem:[%s10 + $0xc0] sm:$0xf]
      %v2927 = vld [vmem:[%s10 + $0xc4] sm:$0xf]
      %v2928 = vld [vmem:[%s10 + $0xc8] sm:$0xf]
      %v2929 = vld [vmem:[%s10 + $0xcc] sm:$0xf]
      %v2930 = vld [vmem:[%s10 + $0xd0] sm:$0xf]
      %v2931 = vld [vmem:[%s10 + $0xd4] sm:$0xf]
      %v2932 = vld [vmem:[%s10 + $0xd8] sm:$0xf]
      %v2933 = vld [vmem:[%s10 + $0xdc] sm:$0xf]
      %v2934 = vld [vmem:[%s10 + $0xe0] sm:$0xf]
      %v2935 = vld [vmem:[%s10 + $0xe4] sm:$0xf]
      %v2936 = vld [vmem:[%s10 + $0xe8] sm:$0xf]
      %v2937 = vld [vmem:[%s10 + $0xec] sm:$0xf]
      %v2938 = vld [vmem:[%s10 + $0xf0] sm:$0xf]
      %v2939 = vld [vmem:[%s10 + $0xf4] sm:$0xf]
      %v2940 = vld [vmem:[%s10 + $0xf8] sm:$0xf]
      %v2941 = vld [vmem:[%s10 + $0xfc] sm:$0xf]
      %v2942 = vld [vmem:[%s11] sm:$0x1]
      %v2944 = vlaneseq
      %v2945 = vshrl.u32 %v2944, 7
      %v2946 = vsub.s32 0, %v2945
      %v2947 = vrot.slane %v2942, %v2946
      %v3013 = vunpack.c.l.b16 %v2878
      %v3014 = vunpack.c.l.b16 %v2879
      %v3015 = vunpack.c.l.b16 %v2880
      %v3016 = vunpack.c.l.b16 %v2881
      %v3017 = vunpack.c.l.b16 %v2882
      %v3018 = vunpack.c.l.b16 %v2883
      %v3019 = vunpack.c.l.b16 %v2884
      %v3020 = vunpack.c.l.b16 %v2885
      %v3021 = vunpack.c.l.b16 %v2886
      %v3022 = vunpack.c.l.b16 %v2887
      %v3023 = vunpack.c.l.b16 %v2888
      %v3024 = vunpack.c.l.b16 %v2889
      %v3025 = vunpack.c.l.b16 %v2890
      %v3026 = vunpack.c.l.b16 %v2891
      %v3027 = vunpack.c.l.b16 %v2892
      %v3028 = vunpack.c.l.b16 %v2893
      %v3029 = vunpack.c.l.b16 %v2894
      %v3030 = vunpack.c.l.b16 %v2895
      %v3031 = vunpack.c.l.b16 %v2896
      %v3032 = vunpack.c.l.b16 %v2897
      %v3033 = vunpack.c.l.b16 %v2898
      %v3034 = vunpack.c.l.b16 %v2899
      %v3035 = vunpack.c.l.b16 %v2900
      %v3036 = vunpack.c.l.b16 %v2901
      %v3037 = vunpack.c.l.b16 %v2902
      %v3038 = vunpack.c.l.b16 %v2903
      %v3039 = vunpack.c.l.b16 %v2904
      %v3040 = vunpack.c.l.b16 %v2905
      %v3041 = vunpack.c.l.b16 %v2906
      %v3042 = vunpack.c.l.b16 %v2907
      %v3043 = vunpack.c.l.b16 %v2908
      %v3044 = vunpack.c.l.b16 %v2909
      %v3045 = vunpack.c.l.b16 %v2910
      %v3046 = vunpack.c.l.b16 %v2911
      %v3047 = vunpack.c.l.b16 %v2912
      %v3048 = vunpack.c.l.b16 %v2913
      %v3049 = vunpack.c.l.b16 %v2914
      %v3050 = vunpack.c.l.b16 %v2915
      %v3051 = vunpack.c.l.b16 %v2916
      %v3052 = vunpack.c.l.b16 %v2917
      %v3053 = vunpack.c.l.b16 %v2918
      %v3054 = vunpack.c.l.b16 %v2919
      %v3055 = vunpack.c.l.b16 %v2920
      %v3056 = vunpack.c.l.b16 %v2921
      %v3057 = vunpack.c.l.b16 %v2922
      %v3058 = vunpack.c.l.b16 %v2923
      %v3059 = vunpack.c.l.b16 %v2924
      %v3060 = vunpack.c.l.b16 %v2925
      %v3061 = vunpack.c.l.b16 %v2926
      %v3062 = vunpack.c.l.b16 %v2927
      %v3063 = vunpack.c.l.b16 %v2928
      %v3064 = vunpack.c.l.b16 %v2929
      %v3065 = vunpack.c.l.b16 %v2930
      %v3066 = vunpack.c.l.b16 %v2931
      %v3067 = vunpack.c.l.b16 %v2932
      %v3068 = vunpack.c.l.b16 %v2933
      %v3069 = vunpack.c.l.b16 %v2934
      %v3070 = vunpack.c.l.b16 %v2935
      %v3071 = vunpack.c.l.b16 %v2936
      %v3072 = vunpack.c.l.b16 %v2937
      %v3073 = vunpack.c.l.b16 %v2938
      %v3074 = vunpack.c.l.b16 %v2939
      %v3075 = vunpack.c.l.b16 %v2940
      %v3076 = vunpack.c.l.b16 %v2941
      %v3077 = vpack.c.b16 %v3014, %v3013
      %v3078 = vpack.c.b16 %v3016, %v3015
      %v3079 = vpack.c.b16 %v3018, %v3017
      %v3080 = vpack.c.b16 %v3020, %v3019
      %v3081 = vpack.c.b16 %v3022, %v3021
      %v3082 = vpack.c.b16 %v3024, %v3023
      %v3083 = vpack.c.b16 %v3026, %v3025
      %v3084 = vpack.c.b16 %v3028, %v3027
      %v3085 = vpack.c.b16 %v3030, %v3029
      %v3086 = vpack.c.b16 %v3032, %v3031
      %v3087 = vpack.c.b16 %v3034, %v3033
      %v3088 = vpack.c.b16 %v3036, %v3035
      %v3089 = vpack.c.b16 %v3038, %v3037
      %v3090 = vpack.c.b16 %v3040, %v3039
      %v3091 = vpack.c.b16 %v3042, %v3041
      %v3092 = vpack.c.b16 %v3044, %v3043
      %v3093 = vpack.c.b16 %v3046, %v3045
      %v3094 = vpack.c.b16 %v3048, %v3047
      %v3095 = vpack.c.b16 %v3050, %v3049
      %v3096 = vpack.c.b16 %v3052, %v3051
      %v3097 = vpack.c.b16 %v3054, %v3053
      %v3098 = vpack.c.b16 %v3056, %v3055
      %v3099 = vpack.c.b16 %v3058, %v3057
      %v3100 = vpack.c.b16 %v3060, %v3059
      %v3101 = vpack.c.b16 %v3062, %v3061
      %v3102 = vpack.c.b16 %v3064, %v3063
      %v3103 = vpack.c.b16 %v3066, %v3065
      %v3104 = vpack.c.b16 %v3068, %v3067
      %v3105 = vpack.c.b16 %v3070, %v3069
      %v3106 = vpack.c.b16 %v3072, %v3071
      %v3107 = vpack.c.b16 %v3074, %v3073
      %v3108 = vpack.c.b16 %v3076, %v3075
      %3141 = vmatprep.subr.bf16.mxu0 0
      %3142 = vmatpush1.bf16.msra.mxu0 %v3084
      %3143 = vmatprep.subr.bf16.mxu0 0
      %3144 = vmatpush1.bf16.msra.mxu0 %v3083
      %3145 = vmatprep.subr.bf16.mxu0 0
      %3146 = vmatpush1.bf16.msra.mxu0 %v3082
      %3147 = vmatprep.subr.bf16.mxu0 0
      %3148 = vmatpush1.bf16.msra.mxu0 %v3081
      %3149 = vmatprep.subr.bf16.mxu0 0
      %3150 = vmatpush1.bf16.msra.mxu0 %v3080
      %3151 = vmatprep.subr.bf16.mxu0 0
      %3152 = vmatpush1.bf16.msra.mxu0 %v3079
      %3153 = vmatprep.subr.bf16.mxu0 0
      %3154 = vmatpush1.bf16.msra.mxu0 %v3078
      %3155 = vmatprep.subr.bf16.mxu0 0
      %3156 = vmatpush1.bf16.msra.mxu0 %v3077
      %3157 = vmatprep.subr.bf16.mxu0 0
      %3158 = vmatpush2.bf16.msra.mxu0 %v3092
      %3159 = vmatprep.subr.bf16.mxu0 0
      %3160 = vmatpush2.bf16.msra.mxu0 %v3091
      %3161 = vmatprep.subr.bf16.mxu0 0
      %3162 = vmatpush2.bf16.msra.mxu0 %v3090
      %3163 = vmatprep.subr.bf16.mxu0 0
      %3164 = vmatpush2.bf16.msra.mxu0 %v3089
      %3165 = vmatprep.subr.bf16.mxu0 0
      %3166 = vmatpush2.bf16.msra.mxu0 %v3088
      %3167 = vmatprep.subr.bf16.mxu0 0
      %3168 = vmatpush2.bf16.msra.mxu0 %v3087
      %3169 = vmatprep.subr.bf16.mxu0 0
      %3170 = vmatpush2.bf16.msra.mxu0 %v3086
      %3171 = vmatprep.subr.bf16.mxu0 0
      %3172 = vmatpush2.bf16.msra.mxu0 %v3085
      %3173 = vmatprep.mubr.bf16.mxu0 %v2847
      %3174 = vmatmul.mubr.bf16.gmra.mxu0 %v2846
      %v3175 = vpop.f32.mrf.mxu0
      %v3176 = vadd.f32 %v2947, %v3175
      %v3177 = vpop.f32.mrf.mxu0
      %v3178 = vpop.f32.mrf.mxu0
      %v3179 = vadd.f32 %v2947, %v3178
      %v3180 = vpop.f32.mrf.mxu0
      %3181 = vmatprep.mubr.bf16.mxu0 %v2851
      %3182 = vmatmul.mubr.bf16.gmra.mxu0 %v2850
      %v3183 = vpop.f32.mrf.mxu0
      %v3184 = vadd.f32 %v2947, %v3183
      %v3185 = vpop.f32.mrf.mxu0
      %v3186 = vpop.f32.mrf.mxu0
      %v3187 = vadd.f32 %v2947, %v3186
      %v3188 = vpop.f32.mrf.mxu0
      %3189 = vmatprep.mubr.bf16.mxu0 %v2855
      %3190 = vmatmul.mubr.bf16.gmra.mxu0 %v2854
      %v3191 = vpop.f32.mrf.mxu0
      %v3192 = vadd.f32 %v2947, %v3191
      %v3193 = vpop.f32.mrf.mxu0
      %v3194 = vpop.f32.mrf.mxu0
      %v3195 = vadd.f32 %v2947, %v3194
      %v3196 = vpop.f32.mrf.mxu0
      %3197 = vmatprep.mubr.bf16.mxu0 %v2859
      %3198 = vmatmul.mubr.bf16.gmra.mxu0 %v2858
      %v3199 = vpop.f32.mrf.mxu0
      %v3200 = vadd.f32 %v2947, %v3199
      %v3201 = vpop.f32.mrf.mxu0
      %v3202 = vpop.f32.mrf.mxu0
      %v3203 = vadd.f32 %v2947, %v3202
      %v3204 = vpop.f32.mrf.mxu0
      %3205 = vmatprep.mubr.bf16.mxu0 %v2863
      %3206 = vmatmul.mubr.bf16.gmra.mxu0 %v2862
      %v3207 = vpop.f32.mrf.mxu0
      %v3208 = vadd.f32 %v2947, %v3207
      %v3209 = vpop.f32.mrf.mxu0
      %v3210 = vpop.f32.mrf.mxu0
      %v3211 = vadd.f32 %v2947, %v3210
      %v3212 = vpop.f32.mrf.mxu0
      %3213 = vmatprep.mubr.bf16.mxu0 %v2867
      %3214 = vmatmul.mubr.bf16.gmra.mxu0 %v2866
      %v3215 = vpop.f32.mrf.mxu0
      %v3216 = vadd.f32 %v2947, %v3215
      %v3217 = vpop.f32.mrf.mxu0
      %v3218 = vpop.f32.mrf.mxu0
      %v3219 = vadd.f32 %v2947, %v3218
      %v3220 = vpop.f32.mrf.mxu0
      %3221 = vmatprep.mubr.bf16.mxu0 %v2871
      %3222 = vmatmul.mubr.bf16.gmra.mxu0 %v2870
      %v3223 = vpop.f32.mrf.mxu0
      %v3224 = vadd.f32 %v2947, %v3223
      %v3225 = vpop.f32.mrf.mxu0
      %v3226 = vpop.f32.mrf.mxu0
      %v3227 = vadd.f32 %v2947, %v3226
      %v3228 = vpop.f32.mrf.mxu0
      %3229 = vmatprep.mubr.bf16.mxu0 %v2875
      %3230 = vmatmul.mubr.bf16.gmra.mxu0 %v2874
      %v3231 = vpop.f32.mrf.mxu0
      %v3232 = vadd.f32 %v2947, %v3231
      %v3233 = vpop.f32.mrf.mxu0
      %v3234 = vpop.f32.mrf.mxu0
      %v3235 = vadd.f32 %v2947, %v3234
      %v3236 = vpop.f32.mrf.mxu0
      %3237 = vdwg.mxu0
      %3238 = vmatprep.subr.bf16.mxu0 0
      %3239 = vmatpush1.bf16.msra.mxu0 %v3100
      %3240 = vmatprep.subr.bf16.mxu0 0
      %3241 = vmatpush1.bf16.msra.mxu0 %v3099
      %3242 = vmatprep.subr.bf16.mxu0 0
      %3243 = vmatpush1.bf16.msra.mxu0 %v3098
      %3244 = vmatprep.subr.bf16.mxu0 0
      %3245 = vmatpush1.bf16.msra.mxu0 %v3097
      %3246 = vmatprep.subr.bf16.mxu0 0
      %3247 = vmatpush1.bf16.msra.mxu0 %v3096
      %3248 = vmatprep.subr.bf16.mxu0 0
      %3249 = vmatpush1.bf16.msra.mxu0 %v3095
      %3250 = vmatprep.subr.bf16.mxu0 0
      %3251 = vmatpush1.bf16.msra.mxu0 %v3094
      %3252 = vmatprep.subr.bf16.mxu0 0
      %3253 = vmatpush1.bf16.msra.mxu0 %v3093
      %3254 = vmatprep.subr.bf16.mxu0 0
      %3255 = vmatpush2.bf16.msra.mxu0 %v3108
      %3256 = vmatprep.subr.bf16.mxu0 0
      %3257 = vmatpush2.bf16.msra.mxu0 %v3107
      %3258 = vmatprep.subr.bf16.mxu0 0
      %3259 = vmatpush2.bf16.msra.mxu0 %v3106
      %3260 = vmatprep.subr.bf16.mxu0 0
      %3261 = vmatpush2.bf16.msra.mxu0 %v3105
      %3262 = vmatprep.subr.bf16.mxu0 0
      %3263 = vmatpush2.bf16.msra.mxu0 %v3104
      %3264 = vmatprep.subr.bf16.mxu0 0
      %3265 = vmatpush2.bf16.msra.mxu0 %v3103
      %3266 = vmatprep.subr.bf16.mxu0 0
      %3267 = vmatpush2.bf16.msra.mxu0 %v3102
      %3268 = vmatprep.subr.bf16.mxu0 0
      %3269 = vmatpush2.bf16.msra.mxu0 %v3101
      %3270 = vmatprep.mubr.bf16.mxu0 %v2849
      %3271 = vmatmul.mubr.bf16.gmra.mxu0 %v2848
      %v3272 = vpop.f32.mrf.mxu0
      %v3273 = vadd.f32 %v3176, %v3272
      %v3274 = vpop.f32.mrf.mxu0
      %v3275 = vpop.f32.mrf.mxu0
      %v3276 = vadd.f32 %v3179, %v3275
      %v3277 = vpop.f32.mrf.mxu0
      %3278 = vmatprep.mubr.bf16.mxu0 %v2853
      %3279 = vmatmul.mubr.bf16.gmra.mxu0 %v2852
      %v3280 = vpop.f32.mrf.mxu0
      %v3281 = vadd.f32 %v3184, %v3280
      %v3282 = vpop.f32.mrf.mxu0
      %v3283 = vpop.f32.mrf.mxu0
      %v3284 = vadd.f32 %v3187, %v3283
      %v3285 = vpop.f32.mrf.mxu0
      %3286 = vmatprep.mubr.bf16.mxu0 %v2857
      %3287 = vmatmul.mubr.bf16.gmra.mxu0 %v2856
      %v3288 = vpop.f32.mrf.mxu0
      %v3289 = vadd.f32 %v3192, %v3288
      %v3290 = vpop.f32.mrf.mxu0
      %v3291 = vpop.f32.mrf.mxu0
      %v3292 = vadd.f32 %v3195, %v3291
      %v3293 = vpop.f32.mrf.mxu0
      %3294 = vmatprep.mubr.bf16.mxu0 %v2861
      %3295 = vmatmul.mubr.bf16.gmra.mxu0 %v2860
      %v3296 = vpop.f32.mrf.mxu0
      %v3297 = vadd.f32 %v3200, %v3296
      %v3298 = vpop.f32.mrf.mxu0
      %v3299 = vpop.f32.mrf.mxu0
      %v3300 = vadd.f32 %v3203, %v3299
      %v3301 = vpop.f32.mrf.mxu0
      %3302 = vmatprep.mubr.bf16.mxu0 %v2865
      %3303 = vmatmul.mubr.bf16.gmra.mxu0 %v2864
      %v3304 = vpop.f32.mrf.mxu0
      %v3305 = vadd.f32 %v3208, %v3304
      %v3306 = vpop.f32.mrf.mxu0
      %v3307 = vpop.f32.mrf.mxu0
      %v3308 = vadd.f32 %v3211, %v3307
      %v3309 = vpop.f32.mrf.mxu0
      %3310 = vmatprep.mubr.bf16.mxu0 %v2869
      %3311 = vmatmul.mubr.bf16.gmra.mxu0 %v2868
      %v3312 = vpop.f32.mrf.mxu0
      %v3313 = vadd.f32 %v3216, %v3312
      %v3314 = vpop.f32.mrf.mxu0
      %v3315 = vpop.f32.mrf.mxu0
      %v3316 = vadd.f32 %v3219, %v3315
      %v3317 = vpop.f32.mrf.mxu0
      %3318 = vmatprep.mubr.bf16.mxu0 %v2873
      %3319 = vmatmul.mubr.bf16.gmra.mxu0 %v2872
      %v3320 = vpop.f32.mrf.mxu0
      %v3321 = vadd.f32 %v3224, %v3320
      %v3322 = vpop.f32.mrf.mxu0
      %v3323 = vpop.f32.mrf.mxu0
      %v3324 = vadd.f32 %v3227, %v3323
      %v3325 = vpop.f32.mrf.mxu0
      %3326 = vmatprep.mubr.bf16.mxu0 %v2877
      %3327 = vmatmul.mubr.bf16.gmra.mxu0 %v2876
      %v3328 = vpop.f32.mrf.mxu0
      %v3329 = vadd.f32 %v3232, %v3328
      %v3330 = vpop.f32.mrf.mxu0
      %v3331 = vpop.f32.mrf.mxu0
      %v3332 = vadd.f32 %v3235, %v3331
      %v3333 = vpop.f32.mrf.mxu0
      %3334 = vdwg.mxu0
      %v3335 = vadd.f32 %v2095, %v3273
      %v3336 = vadd.f32 %v2096, %v3276
      %v3337 = vadd.f32 %v2097, %v3281
      %v3338 = vadd.f32 %v2098, %v3284
      %v3339 = vadd.f32 %v2099, %v3289
      %v3340 = vadd.f32 %v2100, %v3292
      %v3341 = vadd.f32 %v2101, %v3297
      %v3342 = vadd.f32 %v2102, %v3300
      %v3343 = vadd.f32 %v2103, %v3305
      %v3344 = vadd.f32 %v2104, %v3308
      %v3345 = vadd.f32 %v2105, %v3313
      %v3346 = vadd.f32 %v2106, %v3316
      %v3347 = vadd.f32 %v2107, %v3321
      %v3348 = vadd.f32 %v2108, %v3324
      %v3349 = vadd.f32 %v2109, %v3329
      %v3350 = vadd.f32 %v2110, %v3332
      %v3351 = vpack.c.bf16 %v3336, %v3335
      %v3352 = vpack.c.bf16 %v3338, %v3337
      %v3353 = vpack.c.bf16 %v3340, %v3339
      %v3354 = vpack.c.bf16 %v3342, %v3341
      %v3355 = vpack.c.bf16 %v3344, %v3343
      %v3356 = vpack.c.bf16 %v3346, %v3345
      %v3357 = vpack.c.bf16 %v3348, %v3347
      %v3358 = vpack.c.bf16 %v3350, %v3349
      %v3367 = vunpack.c.l.b16 %v3351
      %v3368 = vunpack.c.h.b16 %v3351
      %v3369 = vunpack.c.l.b16 %v3352
      %v3370 = vunpack.c.h.b16 %v3352
      %v3371 = vunpack.c.l.b16 %v3353
      %v3372 = vunpack.c.h.b16 %v3353
      %v3373 = vunpack.c.l.b16 %v3354
      %v3374 = vunpack.c.h.b16 %v3354
      %v3375 = vunpack.c.l.b16 %v3355
      %v3376 = vunpack.c.h.b16 %v3355
      %v3377 = vunpack.c.l.b16 %v3356
      %v3378 = vunpack.c.h.b16 %v3356
      %v3379 = vunpack.c.l.b16 %v3357
      %v3380 = vunpack.c.h.b16 %v3357
      %v3381 = vunpack.c.l.b16 %v3358
      %v3382 = vunpack.c.h.b16 %v3358
      %v3383 = vpack.c.b16 %v3367, %v3367
      %v3384 = vpack.c.b16 %v3368, %v3368
      %v3385 = vpack.c.b16 %v3369, %v3369
      %v3386 = vpack.c.b16 %v3370, %v3370
      %v3387 = vpack.c.b16 %v3371, %v3371
      %v3388 = vpack.c.b16 %v3372, %v3372
      %v3389 = vpack.c.b16 %v3373, %v3373
      %v3390 = vpack.c.b16 %v3374, %v3374
      %v3391 = vpack.c.b16 %v3375, %v3375
      %v3392 = vpack.c.b16 %v3376, %v3376
      %v3393 = vpack.c.b16 %v3377, %v3377
      %v3394 = vpack.c.b16 %v3378, %v3378
      %v3395 = vpack.c.b16 %v3379, %v3379
      %v3396 = vpack.c.b16 %v3380, %v3380
      %v3397 = vpack.c.b16 %v3381, %v3381
      %v3398 = vpack.c.b16 %v3382, %v3382
      %3415 = vst [vmem:[%s527] sm:$0xf] %v3383
      %3416 = vst [vmem:[%s527 + $0x4] sm:$0xf] %v3384
      %3417 = vst [vmem:[%s527 + $0x8] sm:$0xf] %v3385
      %3418 = vst [vmem:[%s527 + $0xc] sm:$0xf] %v3386
      %3419 = vst [vmem:[%s527 + $0x10] sm:$0xf] %v3387
      %3420 = vst [vmem:[%s527 + $0x14] sm:$0xf] %v3388
      %3421 = vst [vmem:[%s527 + $0x18] sm:$0xf] %v3389
      %3422 = vst [vmem:[%s527 + $0x1c] sm:$0xf] %v3390
      %3423 = vst [vmem:[%s527 + $0x20] sm:$0xf] %v3391
      %3424 = vst [vmem:[%s527 + $0x24] sm:$0xf] %v3392
      %3425 = vst [vmem:[%s527 + $0x28] sm:$0xf] %v3393
      %3426 = vst [vmem:[%s527 + $0x2c] sm:$0xf] %v3394
      %3427 = vst [vmem:[%s527 + $0x30] sm:$0xf] %v3395
      %3428 = vst [vmem:[%s527 + $0x34] sm:$0xf] %v3396
      %3429 = vst [vmem:[%s527 + $0x38] sm:$0xf] %v3397
      %3430 = vst [vmem:[%s527 + $0x3c] sm:$0xf] %v3398
      %s3431 = smul.u32 16, %s28
      %p3432 = scmp.lt.s32.totalorder %s27, 3
      %s3433 = scalar_select %p3432, %s27, 3
      %p3434 = scmp.lt.s32.totalorder %s3431, 15
      %s3435 = scalar_select %p3434, %s3431, 15
      %s3436 = smul.addr %s3433, 16
      %s3437 = sadd.s32 %s3435, %s3436
      %s3438 = smul.addr %s3437, 4
      %s3439 = scalar_lea.vmem %s12, %s3438
      // Predicated region
      $region69: #{gpt_forward.6} parent=67 // pred_check
        %p3440 = pneg %p331
      $region70: #{gpt_forward.6} parent=67 // pred_check_branch
        %3442 = sbr.rel (%p3440) target = $region72
      $region71: #{gpt_forward.6} parent=67 // pred_region
        %s3443 = smul.u32 16, %s28
      $region72: #{gpt_forward.6} parent=67 // pred_fallthru
        _
    $region68: #{gpt_forward.6} parent=5 // pred_fallthru
      _
    %p3444 = scmp.le.s32.totalorder 2, %s18
    // Predicated region
    $region73: #{gpt_forward.6} parent=5 // pred_check
      %p3445 = pneg %p3444
    $region74: #{gpt_forward.6} parent=5 // pred_check_branch
      %3447 = sbr.rel (%p3445) target = $region76
    $region75: #{gpt_forward.6} parent=5 // pred_region
      %s3448 = ssub.s32 %s18, 2
      // Predicated region
      $region77: #{gpt_forward.6} parent=75 // pred_check
        %p3449 = pneg %p337
      $region78: #{gpt_forward.6} parent=75 // pred_check_branch
        %3451 = sbr.rel (%p3449) target = $region80
      $region79: #{gpt_forward.6} parent=75 // pred_region
        %s3452 = smul.u32 16, %s30
        %p3453 = scmp.lt.s32.totalorder %s29, 3
        %s3454 = scalar_select %p3453, %s29, 3
        %p3455 = scmp.lt.s32.totalorder %s3452, 15
        %s3456 = scalar_select %p3455, %s3452, 15
        %s3457 = smul.addr %s3454, 16
        %s3458 = sadd.s32 %s3456, %s3457
        %s3459 = smul.addr %s3458, 4
        %s3460 = scalar_lea.vmem %s12, %s3459
      $region80: #{gpt_forward.6} parent=75 // pred_fallthru
        _
    $region76: #{gpt_forward.6} parent=5 // pred_fallthru
      _
  $region6: #{gpt_forward.6} parent=0 // loop_footer
    %s22 = sadd.s32 1, %s18
  $region7: #{gpt_forward.6} parent=0 // loop_footer_branch
    %17 = sbr.rel target = $region3
  $region8: #{gpt_forward.6} parent=0 // loop_exit
    _

</llo_original>
